<compile_context>
chip_gen: v7x
topology: tpu7x:2x2x1
jax: 0.10.0
libtpu: 0.0.40
codegen_flags: <defaults>
</compile_context>

<pallas_src>
import numpy as np
import jax
import jax.numpy as jnp
from jax import lax
from jax.experimental import pallas as pl
from jax.experimental.pallas import tpu as pltpu

LANE = 128
SUBLANE = 8


def _round_up(x, m):
    return (x + m - 1) // m * m


def _bilstm_attn_kernel(
    embeds_ref,                      # [S, BT, DinP]  f32 (time-major, padded)
    w_in_ref,                        # [DinP, 8*HP]   input proj, fwd|bwd, gates i,f,g,o
    b_in_ref,                        # [1, 8*HP]      combined biases, fwd|bwd
    whh_f_ref, whh_b_ref,            # [HP, 4*HP]     hidden-hidden weights
    attw_f_ref, attw_b_ref,          # [HP, HP]       att weight replicated across lanes
    relemb_f_ref, relemb_b_ref,      # [HP, RP]       relation embedding (transposed, split)
    relbias_ref,                     # [1, RP]
    out_ref,                         # [BT, RP]
    gates_f, gates_b,                # [S, BT, 4*HP]  scratch: precomputed input proj
    lstm_f, lstm_b,                  # [S, BT, HP]    scratch: per-direction hidden states
):
    S, BT, DinP = embeds_ref.shape
    HP = lstm_f.shape[2]
    G4 = 4 * HP

    # ---- (1) hoisted, time-independent input projection: ONE big matmul ----
    x2 = embeds_ref[...].reshape(S * BT, DinP)
    gx = jnp.dot(x2, w_in_ref[...], preferred_element_type=jnp.float32) + b_in_ref[...]
    gates_f[...] = gx[:, 0:G4].reshape(S, BT, G4)
    gates_b[...] = gx[:, G4:2 * G4].reshape(S, BT, G4)

    # hoist weight loads out of the recurrence
    w_hh_f = whh_f_ref[...]
    w_hh_b = whh_b_ref[...]

    def cell(g_pre, h, c, w_hh):
        g = g_pre + jnp.dot(h, w_hh, preferred_element_type=jnp.float32)
        # lane-aligned gate slices (each gate spans a full 128-lane multiple)
        i_g = jax.nn.sigmoid(g[:, 0:HP])
        f_g = jax.nn.sigmoid(g[:, HP:2 * HP])
        g_g = jnp.tanh(g[:, 2 * HP:3 * HP])
        o_g = jax.nn.sigmoid(g[:, 3 * HP:4 * HP])
        c_new = f_g * c + i_g * g_g
        h_new = o_g * jnp.tanh(c_new)
        return h_new, c_new

    zeros = jnp.zeros((BT, HP), jnp.float32)

    # ---- (2) fully-unrolled recurrences (S static): only h @ Whh per step ----
    h, c = zeros, zeros
    for t in range(S):                      # forward direction
        h, c = cell(gates_f[t], h, c, w_hh_f)
        lstm_f[t] = h

    h, c = zeros, zeros
    for t in range(S - 1, -1, -1):          # backward direction
        h, c = cell(gates_b[t], h, c, w_hh_b)
        lstm_b[t] = h

    # dropoutlstm is identity at inference time.

    # ---- (3) attention: scores via MXU (lane-broadcast), no concat -----------
    Hf = lstm_f[...]                        # [S, BT, HP]
    Hb = lstm_b[...]
    sc = (jnp.dot(jnp.tanh(Hf).reshape(S * BT, HP), attw_f_ref[...],
                  preferred_element_type=jnp.float32)
          + jnp.dot(jnp.tanh(Hb).reshape(S * BT, HP), attw_b_ref[...],
                    preferred_element_type=jnp.float32))
    sc = sc.reshape(S, BT, HP)              # every lane holds the same score
    sc = sc - jnp.max(sc, axis=0, keepdims=True)   # softmax over the sequence axis
    e = jnp.exp(sc)
    a = e / jnp.sum(e, axis=0, keepdims=True)      # [S, BT, HP] (lane-broadcast attn)

    att_f = jnp.tanh(jnp.sum(a * Hf, axis=0))      # [BT, HP]
    att_b = jnp.tanh(jnp.sum(a * Hb, axis=0))      # [BT, HP]

    # ---- (4) relation projection: lane-dense [BT, RP] store -------------------
    out = (jnp.dot(att_f, relemb_f_ref[...], preferred_element_type=jnp.float32)
           + jnp.dot(att_b, relemb_b_ref[...], preferred_element_type=jnp.float32)
           + relbias_ref[...])
    out_ref[...] = out


def bert_bilstm_attn_pallas(embeds_bsd, params):
    """embeds_bsd: [B, S, Din] f32. Returns [B, relation_num] f32."""
    B, S, Din = embeds_bsd.shape
    H = params["whh_f"].shape[0]
    R = params["relemb_t"].shape[1]

    HP = _round_up(H, LANE)          # lane-align each gate / hidden slice
    DinP = _round_up(Din, LANE)      # lane-dense x_t rows / matmul K dim
    RP = _round_up(R, LANE)          # lane-dense output store
    G4 = 4 * HP
    BT = SUBLANE                     # batch tile (grid "parallel" axis)
    BP = _round_up(max(B, BT), BT)
    nb = BP // BT

    # ---- zero-pad / re-layout parameters (exact: padded units stay 0) --------
    def pad_ih(w):                   # [Din, 4H] -> [DinP, 4HP]
        out = jnp.zeros((DinP, G4), jnp.float32)
        for k in range(4):
            out = out.at[:Din, k * HP:k * HP + H].set(w[:, k * H:(k + 1) * H])
        return out

    def pad_hh(w):                   # [H, 4H] -> [HP, 4HP]
        out = jnp.zeros((HP, G4), jnp.float32)
        for k in range(4):
            out = out.at[:H, k * HP:k * HP + H].set(w[:, k * H:(k + 1) * H])
        return out

    def pad_b(b):                    # [1, 4H] -> [1, 4HP]
        out = jnp.zeros((1, G4), jnp.float32)
        for k in range(4):
            out = out.at[:, k * HP:k * HP + H].set(b[:, k * H:(k + 1) * H])
        return out

    w_in = jnp.concatenate([pad_ih(params["wih_f"]), pad_ih(params["wih_b"])], axis=1)
    b_in = jnp.concatenate([pad_b(params["b_f"]), pad_b(params["b_b"])], axis=1)
    whh_f = pad_hh(params["whh_f"])
    whh_b = pad_hh(params["whh_b"])

    att_w = params["att_w"]          # [1, 2H]
    attw_f = jnp.zeros((HP,), jnp.float32).at[:H].set(att_w[0, :H])
    attw_b = jnp.zeros((HP,), jnp.float32).at[:H].set(att_w[0, H:])
    attw_f = jnp.tile(attw_f[:, None], (1, HP))   # replicate across lanes -> MXU score
    attw_b = jnp.tile(attw_b[:, None], (1, HP))

    relemb_t = params["relemb_t"]    # [2H, R]
    relemb_f = jnp.zeros((HP, RP), jnp.float32).at[:H, :R].set(relemb_t[:H])
    relemb_b = jnp.zeros((HP, RP), jnp.float32).at[:H, :R].set(relemb_t[H:])
    relbias = jnp.zeros((1, RP), jnp.float32).at[:, :R].set(params["rel_b"])

    # time-major, batch/feature padded embeddings
    embeds = jnp.zeros((S, BP, DinP), jnp.float32)
    embeds = embeds.at[:, :B, :Din].set(jnp.transpose(embeds_bsd, (1, 0, 2)))

    args = (embeds, w_in, b_in, whh_f, whh_b,
            attw_f, attw_b, relemb_f, relemb_b, relbias)

    rep2 = lambda shape: pl.BlockSpec(shape, lambda b: (0, 0))   # replicated weights
    in_specs = [pl.BlockSpec((S, BT, DinP), lambda b: (0, b, 0))] + \
               [rep2(a.shape) for a in args[1:]]

    out_padded = pl.pallas_call(
        _bilstm_attn_kernel,
        out_shape=jax.ShapeDtypeStruct((BP, RP), jnp.float32),
        grid_spec=pltpu.PrefetchScalarGridSpec(
            num_scalar_prefetch=0,
            grid=(nb,),
            in_specs=in_specs,
            out_specs=pl.BlockSpec((BT, RP), lambda b: (b, 0)),
            scratch_shapes=[
                pltpu.VMEM((S, BT, G4), jnp.float32),   # gates_f
                pltpu.VMEM((S, BT, G4), jnp.float32),   # gates_b
                pltpu.VMEM((S, BT, HP), jnp.float32),   # lstm_f
                pltpu.VMEM((S, BT, HP), jnp.float32),   # lstm_b
            ]),
        compiler_params=pltpu.CompilerParams(
            dimension_semantics=("parallel",)),
    )(*args)
    return out_padded[:B, :R]


def init_params(key, *, vocab, bert_dim, pos_size, pos_dim, rnn_dim, relation_num):
    ks = jax.random.split(key, 12)
    din = bert_dim + 2 * pos_dim
    H = rnn_dim
    s = 0.1
    return dict(
        tok_emb=jax.random.normal(ks[0], (vocab, bert_dim), jnp.float32) * s,
        pos1_emb=jax.random.normal(ks[1], (pos_size, pos_dim), jnp.float32) * s,
        pos2_emb=jax.random.normal(ks[2], (pos_size, pos_dim), jnp.float32) * s,
        wih_f=jax.random.normal(ks[3], (din, 4 * H), jnp.float32) * s,
        whh_f=jax.random.normal(ks[4], (H, 4 * H), jnp.float32) * s,
        b_f=jax.random.normal(ks[5], (1, 4 * H), jnp.float32) * s,
        wih_b=jax.random.normal(ks[6], (din, 4 * H), jnp.float32) * s,
        whh_b=jax.random.normal(ks[7], (H, 4 * H), jnp.float32) * s,
        b_b=jax.random.normal(ks[8], (1, 4 * H), jnp.float32) * s,
        att_w=jax.random.normal(ks[9], (1, 2 * H), jnp.float32),
        relemb_t=jax.random.normal(ks[10], (2 * H, relation_num), jnp.float32),
        rel_b=jax.random.normal(ks[11], (1, relation_num), jnp.float32),
    )


def forward(params, input_ids, pos1, pos2):
    # TODO(synk): pretrained BertModel encoder has no clean in-script Pallas
    # equivalent; bert_output[0] is replaced by a deterministic token-embedding
    # lookup producing [B, S, bert_dim].
    bert_seq = jnp.take(params["tok_emb"], input_ids, axis=0)      # [B, S, bert_dim]
    p1 = jnp.take(params["pos1_emb"], pos1, axis=0)                # [B, S, pos_dim]
    p2 = jnp.take(params["pos2_emb"], pos2, axis=0)                # [B, S, pos_dim]
    embeds = jnp.concatenate([bert_seq, p1, p2], axis=-1)          # [B, S, Din]
    return bert_bilstm_attn_pallas(embeds, params)


def reference(params, input_ids, pos1, pos2):
    hp = lax.Precision.HIGHEST
    bert_seq = jnp.take(params["tok_emb"], input_ids, axis=0)
    p1 = jnp.take(params["pos1_emb"], pos1, axis=0)
    p2 = jnp.take(params["pos2_emb"], pos2, axis=0)
    embeds = jnp.concatenate([bert_seq, p1, p2], axis=-1)
    x = jnp.transpose(embeds, (1, 0, 2))                           # [S, B, Din]
    H = params["whh_f"].shape[0]

    def run(xs, wih, whh, b):
        B = xs.shape[1]

        def step(carry, x_t):
            h, c = carry
            gates = (jnp.dot(x_t, wih, precision=hp)
                     + jnp.dot(h, whh, precision=hp) + b)
            i = jax.nn.sigmoid(gates[:, :H])
            f = jax.nn.sigmoid(gates[:, H:2 * H])
            g = jnp.tanh(gates[:, 2 * H:3 * H])
            o = jax.nn.sigmoid(gates[:, 3 * H:])
            c = f * c + i * g
            h = o * jnp.tanh(c)
            return (h, c), h

        init = (jnp.zeros((B, H), jnp.float32), jnp.zeros((B, H), jnp.float32))
        _, hs = lax.scan(step, init, xs)
        return hs

    hs_f = run(x, params["wih_f"], params["whh_f"], params["b_f"])
    hs_b = run(x[::-1], params["wih_b"], params["whh_b"], params["b_b"])[::-1]
    lstm_out = jnp.transpose(jnp.concatenate([hs_f, hs_b], axis=-1), (1, 0, 2))  # [B,S,2H]

    M = jnp.tanh(lstm_out)
    scores = jnp.einsum('bsh,h->bs', M, params["att_w"][0], precision=hp)
    a = jax.nn.softmax(scores, axis=1)
    att = jnp.einsum('bs,bsh->bh', a, lstm_out, precision=hp)
    att = jnp.tanh(att)
    return jnp.dot(att, params["relemb_t"], precision=hp) + params["rel_b"]


if __name__ == "__main__":
    B, S = 2, 8
    bert_dim, pos_dim, rnn_dim, relation_num = 32, 4, 16, 5
    position_num = 10
    pos_size = (position_num + 1) * 2 + 1
    vocab = 50

    key = jax.random.PRNGKey(0)
    kp, ki, k1, k2 = jax.random.split(key, 4)
    params = init_params(kp, vocab=vocab, bert_dim=bert_dim, pos_size=pos_size,
                         pos_dim=pos_dim, rnn_dim=rnn_dim,
                         relation_num=relation_num)
    input_ids = jax.random.randint(ki, (B, S), 0, vocab, dtype=jnp.int32)
    pos1 = jax.random.randint(k1, (B, S), 0, pos_size, dtype=jnp.int32)
    pos2 = jax.random.randint(k2, (B, S), 0, pos_size, dtype=jnp.int32)

    out = jax.block_until_ready(forward(params, input_ids, pos1, pos2))
    ref = jax.block_until_ready(reference(params, input_ids, pos1, pos2))

    assert out.shape == (B, relation_num), out.shape
    if not np.allclose(np.asarray(out), np.asarray(ref), rtol=1e-2, atol=1e-2):
        raise AssertionError(
            "mismatch, max abs diff = "
            f"{np.max(np.abs(np.asarray(out) - np.asarray(ref)))}")
    print("KERNEL_OK")
</pallas_src>

<mosaic_0001>
module attributes {stable_mosaic.version = 11 : i64} {
  func.func @_bilstm_attn_kernel(%arg0: i32, %arg1: memref<8x8x128xf32, #tpu.memory_space<vmem>>, %arg2: memref<128x1024xf32, #tpu.memory_space<vmem>>, %arg3: memref<1x1024xf32, #tpu.memory_space<vmem>>, %arg4: memref<128x512xf32, #tpu.memory_space<vmem>>, %arg5: memref<128x512xf32, #tpu.memory_space<vmem>>, %arg6: memref<128x128xf32, #tpu.memory_space<vmem>>, %arg7: memref<128x128xf32, #tpu.memory_space<vmem>>, %arg8: memref<128x128xf32, #tpu.memory_space<vmem>>, %arg9: memref<128x128xf32, #tpu.memory_space<vmem>>, %arg10: memref<1x128xf32, #tpu.memory_space<vmem>>, %arg11: memref<8x128xf32, #tpu.memory_space<vmem>>, %arg12: memref<8x8x512xf32, #tpu.memory_space<vmem>>, %arg13: memref<8x8x512xf32, #tpu.memory_space<vmem>>, %arg14: memref<8x8x128xf32, #tpu.memory_space<vmem>>, %arg15: memref<8x8x128xf32, #tpu.memory_space<vmem>>) attributes {dimension_semantics = [#tpu.dimension_semantics<parallel>], iteration_bounds = array<i64: 1>, scalar_prefetch = 0 : i64, scratch_operands = 4 : i64, tpu.core_type = #tpu.core_type<tc>, window_params = [{transform_indices = @transform_0, window_bounds = array<i64: 8, 8, 128>}, {pipeline_mode = #tpu.pipeline_mode<synchronous>, transform_indices = @transform_1, window_bounds = array<i64: 128, 1024>}, {pipeline_mode = #tpu.pipeline_mode<synchronous>, transform_indices = @transform_2, window_bounds = array<i64: 1, 1024>}, {pipeline_mode = #tpu.pipeline_mode<synchronous>, transform_indices = @transform_3, window_bounds = array<i64: 128, 512>}, {pipeline_mode = #tpu.pipeline_mode<synchronous>, transform_indices = @transform_4, window_bounds = array<i64: 128, 512>}, {pipeline_mode = #tpu.pipeline_mode<synchronous>, transform_indices = @transform_5, window_bounds = array<i64: 128, 128>}, {pipeline_mode = #tpu.pipeline_mode<synchronous>, transform_indices = @transform_6, window_bounds = array<i64: 128, 128>}, {pipeline_mode = #tpu.pipeline_mode<synchronous>, transform_indices = @transform_7, window_bounds = array<i64: 128, 128>}, {pipeline_mode = #tpu.pipeline_mode<synchronous>, transform_indices = @transform_8, window_bounds = array<i64: 128, 128>}, {pipeline_mode = #tpu.pipeline_mode<synchronous>, transform_indices = @transform_9, window_bounds = array<i64: 1, 128>}, {transform_indices = @transform_10, window_bounds = array<i64: 8, 128>}]} {
    %c0 = arith.constant 0 : index
    %c0_0 = arith.constant 0 : index
    %c0_1 = arith.constant 0 : index
    %0 = vector.load %arg1[%c0, %c0_0, %c0_1] : memref<8x8x128xf32, #tpu.memory_space<vmem>>, vector<8x8x128xf32>
    %1 = vector.shape_cast %0 : vector<8x8x128xf32> to vector<64x128xf32>
    %c0_2 = arith.constant 0 : index
    %c0_3 = arith.constant 0 : index
    %2 = vector.load %arg2[%c0_2, %c0_3] : memref<128x1024xf32, #tpu.memory_space<vmem>>, vector<128x1024xf32>
    %cst = arith.constant dense<0.000000e+00> : vector<64x1024xf32>
    %3 = tpu.matmul %1, %2, %cst {dimension_numbers = #tpu.dot_dimension_numbers<[1], [0], [0], [1], [0, 0, 1, 1], [], []>} : vector<64x128xf32>, vector<128x1024xf32>, vector<64x1024xf32> -> vector<64x1024xf32>
    %c0_4 = arith.constant 0 : index
    %c0_5 = arith.constant 0 : index
    %4 = vector.load %arg3[%c0_4, %c0_5] : memref<1x1024xf32, #tpu.memory_space<vmem>>, vector<1x1024xf32>
    %5 = vector.broadcast %4 : vector<1x1024xf32> to vector<64x1024xf32>
    %6 = arith.addf %3, %5 : vector<64x1024xf32>
    %7 = vector.extract_strided_slice %6 {offsets = [0, 0], sizes = [64, 512], strides = [1, 1]} : vector<64x1024xf32> to vector<64x512xf32>
    %8 = vector.shape_cast %7 : vector<64x512xf32> to vector<8x8x512xf32>
    %c0_6 = arith.constant 0 : index
    %c0_7 = arith.constant 0 : index
    %c0_8 = arith.constant 0 : index
    %9 = vector.load %arg12[%c0_6, %c0_7, %c0_8] : memref<8x8x512xf32, #tpu.memory_space<vmem>>, vector<8x8x512xf32>
    tpu.vector_store %arg12[%c0_6, %c0_7, %c0_8], %8 {strides = array<i32>} : memref<8x8x512xf32, #tpu.memory_space<vmem>>, vector<8x8x512xf32>,
    %10 = vector.extract_strided_slice %6 {offsets = [0, 512], sizes = [64, 512], strides = [1, 1]} : vector<64x1024xf32> to vector<64x512xf32>
    %11 = vector.shape_cast %10 : vector<64x512xf32> to vector<8x8x512xf32>
    %c0_9 = arith.constant 0 : index
    %c0_10 = arith.constant 0 : index
    %c0_11 = arith.constant 0 : index
    %12 = vector.load %arg13[%c0_9, %c0_10, %c0_11] : memref<8x8x512xf32, #tpu.memory_space<vmem>>, vector<8x8x512xf32>
    tpu.vector_store %arg13[%c0_9, %c0_10, %c0_11], %11 {strides = array<i32>} : memref<8x8x512xf32, #tpu.memory_space<vmem>>, vector<8x8x512xf32>,
    %c0_12 = arith.constant 0 : index
    %c0_13 = arith.constant 0 : index
    %13 = vector.load %arg4[%c0_12, %c0_13] : memref<128x512xf32, #tpu.memory_space<vmem>>, vector<128x512xf32>
    %c0_14 = arith.constant 0 : index
    %c0_15 = arith.constant 0 : index
    %14 = vector.load %arg5[%c0_14, %c0_15] : memref<128x512xf32, #tpu.memory_space<vmem>>, vector<128x512xf32>
    %cst_16 = arith.constant 0.000000e+00 : f32
    %15 = vector.broadcast %cst_16 : f32 to vector<8x128xf32>
    %c0_17 = arith.constant 0 : index
    %c0_18 = arith.constant 0 : index
    %c0_19 = arith.constant 0 : index
    %16 = vector.load %arg12[%c0_17, %c0_18, %c0_19] : memref<8x8x512xf32, #tpu.memory_space<vmem>>, vector<1x8x512xf32>
    %17 = vector.shape_cast %16 : vector<1x8x512xf32> to vector<8x512xf32>
    %cst_20 = arith.constant dense<0.000000e+00> : vector<8x512xf32>
    %18 = tpu.matmul %15, %13, %cst_20 {dimension_numbers = #tpu.dot_dimension_numbers<[1], [0], [0], [1], [0, 0, 1, 1], [], []>} : vector<8x128xf32>, vector<128x512xf32>, vector<8x512xf32> -> vector<8x512xf32>
    %19 = arith.addf %17, %18 : vector<8x512xf32>
    %20 = vector.extract_strided_slice %19 {offsets = [0, 0], sizes = [8, 128], strides = [1, 1]} : vector<8x512xf32> to vector<8x128xf32>
    %21 = arith.negf %20 : vector<8x128xf32>
    %22 = math.exp %21 : vector<8x128xf32>
    %cst_21 = arith.constant 1.000000e+00 : f32
    %23 = vector.broadcast %cst_21 : f32 to vector<8x128xf32>
    %24 = arith.addf %23, %22 : vector<8x128xf32>
    %25 = arith.divf %23, %24 : vector<8x128xf32>
    %26 = vector.extract_strided_slice %19 {offsets = [0, 128], sizes = [8, 128], strides = [1, 1]} : vector<8x512xf32> to vector<8x128xf32>
    %27 = arith.negf %26 : vector<8x128xf32>
    %28 = math.exp %27 : vector<8x128xf32>
    %cst_22 = arith.constant 1.000000e+00 : f32
    %29 = vector.broadcast %cst_22 : f32 to vector<8x128xf32>
    %30 = arith.addf %29, %28 : vector<8x128xf32>
    %31 = arith.divf %29, %30 : vector<8x128xf32>
    %32 = vector.extract_strided_slice %19 {offsets = [0, 256], sizes = [8, 128], strides = [1, 1]} : vector<8x512xf32> to vector<8x128xf32>
    %33 = math.tanh %32 : vector<8x128xf32>
    %34 = vector.extract_strided_slice %19 {offsets = [0, 384], sizes = [8, 128], strides = [1, 1]} : vector<8x512xf32> to vector<8x128xf32>
    %35 = arith.negf %34 : vector<8x128xf32>
    %36 = math.exp %35 : vector<8x128xf32>
    %cst_23 = arith.constant 1.000000e+00 : f32
    %37 = vector.broadcast %cst_23 : f32 to vector<8x128xf32>
    %38 = arith.addf %37, %36 : vector<8x128xf32>
    %39 = arith.divf %37, %38 : vector<8x128xf32>
    %40 = arith.mulf %31, %15 : vector<8x128xf32>
    %41 = arith.mulf %25, %33 : vector<8x128xf32>
    %42 = arith.addf %40, %41 : vector<8x128xf32>
    %43 = math.tanh %42 : vector<8x128xf32>
    %44 = arith.mulf %39, %43 : vector<8x128xf32>
    %c0_24 = arith.constant 0 : index
    %c0_25 = arith.constant 0 : index
    %c0_26 = arith.constant 0 : index
    %45 = vector.load %arg14[%c0_24, %c0_25, %c0_26] : memref<8x8x128xf32, #tpu.memory_space<vmem>>, vector<1x8x128xf32>
    %46 = vector.shape_cast %45 : vector<1x8x128xf32> to vector<8x128xf32>
    %47 = vector.shape_cast %44 : vector<8x128xf32> to vector<1x8x128xf32>
    tpu.vector_store %arg14[%c0_24, %c0_25, %c0_26], %47 {strides = array<i32>} : memref<8x8x128xf32, #tpu.memory_space<vmem>>, vector<1x8x128xf32>,
    %c1 = arith.constant 1 : index
    %c0_27 = arith.constant 0 : index
    %c0_28 = arith.constant 0 : index
    %48 = vector.load %arg12[%c1, %c0_27, %c0_28] : memref<8x8x512xf32, #tpu.memory_space<vmem>>, vector<1x8x512xf32>
    %49 = vector.shape_cast %48 : vector<1x8x512xf32> to vector<8x512xf32>
    %cst_29 = arith.constant dense<0.000000e+00> : vector<8x512xf32>
    %50 = tpu.matmul %44, %13, %cst_29 {dimension_numbers = #tpu.dot_dimension_numbers<[1], [0], [0], [1], [0, 0, 1, 1], [], []>} : vector<8x128xf32>, vector<128x512xf32>, vector<8x512xf32> -> vector<8x512xf32>
    %51 = arith.addf %49, %50 : vector<8x512xf32>
    %52 = vector.extract_strided_slice %51 {offsets = [0, 0], sizes = [8, 128], strides = [1, 1]} : vector<8x512xf32> to vector<8x128xf32>
    %53 = arith.negf %52 : vector<8x128xf32>
    %54 = math.exp %53 : vector<8x128xf32>
    %cst_30 = arith.constant 1.000000e+00 : f32
    %55 = vector.broadcast %cst_30 : f32 to vector<8x128xf32>
    %56 = arith.addf %55, %54 : vector<8x128xf32>
    %57 = arith.divf %55, %56 : vector<8x128xf32>
    %58 = vector.extract_strided_slice %51 {offsets = [0, 128], sizes = [8, 128], strides = [1, 1]} : vector<8x512xf32> to vector<8x128xf32>
    %59 = arith.negf %58 : vector<8x128xf32>
    %60 = math.exp %59 : vector<8x128xf32>
    %cst_31 = arith.constant 1.000000e+00 : f32
    %61 = vector.broadcast %cst_31 : f32 to vector<8x128xf32>
    %62 = arith.addf %61, %60 : vector<8x128xf32>
    %63 = arith.divf %61, %62 : vector<8x128xf32>
    %64 = vector.extract_strided_slice %51 {offsets = [0, 256], sizes = [8, 128], strides = [1, 1]} : vector<8x512xf32> to vector<8x128xf32>
    %65 = math.tanh %64 : vector<8x128xf32>
    %66 = vector.extract_strided_slice %51 {offsets = [0, 384], sizes = [8, 128], strides = [1, 1]} : vector<8x512xf32> to vector<8x128xf32>
    %67 = arith.negf %66 : vector<8x128xf32>
    %68 = math.exp %67 : vector<8x128xf32>
    %cst_32 = arith.constant 1.000000e+00 : f32
    %69 = vector.broadcast %cst_32 : f32 to vector<8x128xf32>
    %70 = arith.addf %69, %68 : vector<8x128xf32>
    %71 = arith.divf %69, %70 : vector<8x128xf32>
    %72 = arith.mulf %63, %42 : vector<8x128xf32>
    %73 = arith.mulf %57, %65 : vector<8x128xf32>
    %74 = arith.addf %72, %73 : vector<8x128xf32>
    %75 = math.tanh %74 : vector<8x128xf32>
    %76 = arith.mulf %71, %75 : vector<8x128xf32>
    %c1_33 = arith.constant 1 : index
    %c0_34 = arith.constant 0 : index
    %c0_35 = arith.constant 0 : index
    %77 = vector.load %arg14[%c1_33, %c0_34, %c0_35] : memref<8x8x128xf32, #tpu.memory_space<vmem>>, vector<1x8x128xf32>
    %78 = vector.shape_cast %77 : vector<1x8x128xf32> to vector<8x128xf32>
    %79 = vector.shape_cast %76 : vector<8x128xf32> to vector<1x8x128xf32>
    tpu.vector_store %arg14[%c1_33, %c0_34, %c0_35], %79 {strides = array<i32>} : memref<8x8x128xf32, #tpu.memory_space<vmem>>, vector<1x8x128xf32>,
    %c2 = arith.constant 2 : index
    %c0_36 = arith.constant 0 : index
    %c0_37 = arith.constant 0 : index
    %80 = vector.load %arg12[%c2, %c0_36, %c0_37] : memref<8x8x512xf32, #tpu.memory_space<vmem>>, vector<1x8x512xf32>
    %81 = vector.shape_cast %80 : vector<1x8x512xf32> to vector<8x512xf32>
    %cst_38 = arith.constant dense<0.000000e+00> : vector<8x512xf32>
    %82 = tpu.matmul %76, %13, %cst_38 {dimension_numbers = #tpu.dot_dimension_numbers<[1], [0], [0], [1], [0, 0, 1, 1], [], []>} : vector<8x128xf32>, vector<128x512xf32>, vector<8x512xf32> -> vector<8x512xf32>
    %83 = arith.addf %81, %82 : vector<8x512xf32>
    %84 = vector.extract_strided_slice %83 {offsets = [0, 0], sizes = [8, 128], strides = [1, 1]} : vector<8x512xf32> to vector<8x128xf32>
    %85 = arith.negf %84 : vector<8x128xf32>
    %86 = math.exp %85 : vector<8x128xf32>
    %cst_39 = arith.constant 1.000000e+00 : f32
    %87 = vector.broadcast %cst_39 : f32 to vector<8x128xf32>
    %88 = arith.addf %87, %86 : vector<8x128xf32>
    %89 = arith.divf %87, %88 : vector<8x128xf32>
    %90 = vector.extract_strided_slice %83 {offsets = [0, 128], sizes = [8, 128], strides = [1, 1]} : vector<8x512xf32> to vector<8x128xf32>
    %91 = arith.negf %90 : vector<8x128xf32>
    %92 = math.exp %91 : vector<8x128xf32>
    %cst_40 = arith.constant 1.000000e+00 : f32
    %93 = vector.broadcast %cst_40 : f32 to vector<8x128xf32>
    %94 = arith.addf %93, %92 : vector<8x128xf32>
    %95 = arith.divf %93, %94 : vector<8x128xf32>
    %96 = vector.extract_strided_slice %83 {offsets = [0, 256], sizes = [8, 128], strides = [1, 1]} : vector<8x512xf32> to vector<8x128xf32>
    %97 = math.tanh %96 : vector<8x128xf32>
    %98 = vector.extract_strided_slice %83 {offsets = [0, 384], sizes = [8, 128], strides = [1, 1]} : vector<8x512xf32> to vector<8x128xf32>
    %99 = arith.negf %98 : vector<8x128xf32>
    %100 = math.exp %99 : vector<8x128xf32>
    %cst_41 = arith.constant 1.000000e+00 : f32
    %101 = vector.broadcast %cst_41 : f32 to vector<8x128xf32>
    %102 = arith.addf %101, %100 : vector<8x128xf32>
    %103 = arith.divf %101, %102 : vector<8x128xf32>
    %104 = arith.mulf %95, %74 : vector<8x128xf32>
    %105 = arith.mulf %89, %97 : vector<8x128xf32>
    %106 = arith.addf %104, %105 : vector<8x128xf32>
    %107 = math.tanh %106 : vector<8x128xf32>
    %108 = arith.mulf %103, %107 : vector<8x128xf32>
    %c2_42 = arith.constant 2 : index
    %c0_43 = arith.constant 0 : index
    %c0_44 = arith.constant 0 : index
    %109 = vector.load %arg14[%c2_42, %c0_43, %c0_44] : memref<8x8x128xf32, #tpu.memory_space<vmem>>, vector<1x8x128xf32>
    %110 = vector.shape_cast %109 : vector<1x8x128xf32> to vector<8x128xf32>
    %111 = vector.shape_cast %108 : vector<8x128xf32> to vector<1x8x128xf32>
    tpu.vector_store %arg14[%c2_42, %c0_43, %c0_44], %111 {strides = array<i32>} : memref<8x8x128xf32, #tpu.memory_space<vmem>>, vector<1x8x128xf32>,
    %c3 = arith.constant 3 : index
    %c0_45 = arith.constant 0 : index
    %c0_46 = arith.constant 0 : index
    %112 = vector.load %arg12[%c3, %c0_45, %c0_46] : memref<8x8x512xf32, #tpu.memory_space<vmem>>, vector<1x8x512xf32>
    %113 = vector.shape_cast %112 : vector<1x8x512xf32> to vector<8x512xf32>
    %cst_47 = arith.constant dense<0.000000e+00> : vector<8x512xf32>
    %114 = tpu.matmul %108, %13, %cst_47 {dimension_numbers = #tpu.dot_dimension_numbers<[1], [0], [0], [1], [0, 0, 1, 1], [], []>} : vector<8x128xf32>, vector<128x512xf32>, vector<8x512xf32> -> vector<8x512xf32>
    %115 = arith.addf %113, %114 : vector<8x512xf32>
    %116 = vector.extract_strided_slice %115 {offsets = [0, 0], sizes = [8, 128], strides = [1, 1]} : vector<8x512xf32> to vector<8x128xf32>
    %117 = arith.negf %116 : vector<8x128xf32>
    %118 = math.exp %117 : vector<8x128xf32>
    %cst_48 = arith.constant 1.000000e+00 : f32
    %119 = vector.broadcast %cst_48 : f32 to vector<8x128xf32>
    %120 = arith.addf %119, %118 : vector<8x128xf32>
    %121 = arith.divf %119, %120 : vector<8x128xf32>
    %122 = vector.extract_strided_slice %115 {offsets = [0, 128], sizes = [8, 128], strides = [1, 1]} : vector<8x512xf32> to vector<8x128xf32>
    %123 = arith.negf %122 : vector<8x128xf32>
    %124 = math.exp %123 : vector<8x128xf32>
    %cst_49 = arith.constant 1.000000e+00 : f32
    %125 = vector.broadcast %cst_49 : f32 to vector<8x128xf32>
    %126 = arith.addf %125, %124 : vector<8x128xf32>
    %127 = arith.divf %125, %126 : vector<8x128xf32>
    %128 = vector.extract_strided_slice %115 {offsets = [0, 256], sizes = [8, 128], strides = [1, 1]} : vector<8x512xf32> to vector<8x128xf32>
    %129 = math.tanh %128 : vector<8x128xf32>
    %130 = vector.extract_strided_slice %115 {offsets = [0, 384], sizes = [8, 128], strides = [1, 1]} : vector<8x512xf32> to vector<8x128xf32>
    %131 = arith.negf %130 : vector<8x128xf32>
    %132 = math.exp %131 : vector<8x128xf32>
    %cst_50 = arith.constant 1.000000e+00 : f32
    %133 = vector.broadcast %cst_50 : f32 to vector<8x128xf32>
    %134 = arith.addf %133, %132 : vector<8x128xf32>
    %135 = arith.divf %133, %134 : vector<8x128xf32>
    %136 = arith.mulf %127, %106 : vector<8x128xf32>
    %137 = arith.mulf %121, %129 : vector<8x128xf32>
    %138 = arith.addf %136, %137 : vector<8x128xf32>
    %139 = math.tanh %138 : vector<8x128xf32>
    %140 = arith.mulf %135, %139 : vector<8x128xf32>
    %c3_51 = arith.constant 3 : index
    %c0_52 = arith.constant 0 : index
    %c0_53 = arith.constant 0 : index
    %141 = vector.load %arg14[%c3_51, %c0_52, %c0_53] : memref<8x8x128xf32, #tpu.memory_space<vmem>>, vector<1x8x128xf32>
    %142 = vector.shape_cast %141 : vector<1x8x128xf32> to vector<8x128xf32>
    %143 = vector.shape_cast %140 : vector<8x128xf32> to vector<1x8x128xf32>
    tpu.vector_store %arg14[%c3_51, %c0_52, %c0_53], %143 {strides = array<i32>} : memref<8x8x128xf32, #tpu.memory_space<vmem>>, vector<1x8x128xf32>,
    %c4 = arith.constant 4 : index
    %c0_54 = arith.constant 0 : index
    %c0_55 = arith.constant 0 : index
    %144 = vector.load %arg12[%c4, %c0_54, %c0_55] : memref<8x8x512xf32, #tpu.memory_space<vmem>>, vector<1x8x512xf32>
    %145 = vector.shape_cast %144 : vector<1x8x512xf32> to vector<8x512xf32>
    %cst_56 = arith.constant dense<0.000000e+00> : vector<8x512xf32>
    %146 = tpu.matmul %140, %13, %cst_56 {dimension_numbers = #tpu.dot_dimension_numbers<[1], [0], [0], [1], [0, 0, 1, 1], [], []>} : vector<8x128xf32>, vector<128x512xf32>, vector<8x512xf32> -> vector<8x512xf32>
    %147 = arith.addf %145, %146 : vector<8x512xf32>
    %148 = vector.extract_strided_slice %147 {offsets = [0, 0], sizes = [8, 128], strides = [1, 1]} : vector<8x512xf32> to vector<8x128xf32>
    %149 = arith.negf %148 : vector<8x128xf32>
    %150 = math.exp %149 : vector<8x128xf32>
    %cst_57 = arith.constant 1.000000e+00 : f32
    %151 = vector.broadcast %cst_57 : f32 to vector<8x128xf32>
    %152 = arith.addf %151, %150 : vector<8x128xf32>
    %153 = arith.divf %151, %152 : vector<8x128xf32>
    %154 = vector.extract_strided_slice %147 {offsets = [0, 128], sizes = [8, 128], strides = [1, 1]} : vector<8x512xf32> to vector<8x128xf32>
    %155 = arith.negf %154 : vector<8x128xf32>
    %156 = math.exp %155 : vector<8x128xf32>
    %cst_58 = arith.constant 1.000000e+00 : f32
    %157 = vector.broadcast %cst_58 : f32 to vector<8x128xf32>
    %158 = arith.addf %157, %156 : vector<8x128xf32>
    %159 = arith.divf %157, %158 : vector<8x128xf32>
    %160 = vector.extract_strided_slice %147 {offsets = [0, 256], sizes = [8, 128], strides = [1, 1]} : vector<8x512xf32> to vector<8x128xf32>
    %161 = math.tanh %160 : vector<8x128xf32>
    %162 = vector.extract_strided_slice %147 {offsets = [0, 384], sizes = [8, 128], strides = [1, 1]} : vector<8x512xf32> to vector<8x128xf32>
    %163 = arith.negf %162 : vector<8x128xf32>
    %164 = math.exp %163 : vector<8x128xf32>
    %cst_59 = arith.constant 1.000000e+00 : f32
    %165 = vector.broadcast %cst_59 : f32 to vector<8x128xf32>
    %166 = arith.addf %165, %164 : vector<8x128xf32>
    %167 = arith.divf %165, %166 : vector<8x128xf32>
    %168 = arith.mulf %159, %138 : vector<8x128xf32>
    %169 = arith.mulf %153, %161 : vector<8x128xf32>
    %170 = arith.addf %168, %169 : vector<8x128xf32>
    %171 = math.tanh %170 : vector<8x128xf32>
    %172 = arith.mulf %167, %171 : vector<8x128xf32>
    %c4_60 = arith.constant 4 : index
    %c0_61 = arith.constant 0 : index
    %c0_62 = arith.constant 0 : index
    %173 = vector.load %arg14[%c4_60, %c0_61, %c0_62] : memref<8x8x128xf32, #tpu.memory_space<vmem>>, vector<1x8x128xf32>
    %174 = vector.shape_cast %173 : vector<1x8x128xf32> to vector<8x128xf32>
    %175 = vector.shape_cast %172 : vector<8x128xf32> to vector<1x8x128xf32>
    tpu.vector_store %arg14[%c4_60, %c0_61, %c0_62], %175 {strides = array<i32>} : memref<8x8x128xf32, #tpu.memory_space<vmem>>, vector<1x8x128xf32>,
    %c5 = arith.constant 5 : index
    %c0_63 = arith.constant 0 : index
    %c0_64 = arith.constant 0 : index
    %176 = vector.load %arg12[%c5, %c0_63, %c0_64] : memref<8x8x512xf32, #tpu.memory_space<vmem>>, vector<1x8x512xf32>
    %177 = vector.shape_cast %176 : vector<1x8x512xf32> to vector<8x512xf32>
    %cst_65 = arith.constant dense<0.000000e+00> : vector<8x512xf32>
    %178 = tpu.matmul %172, %13, %cst_65 {dimension_numbers = #tpu.dot_dimension_numbers<[1], [0], [0], [1], [0, 0, 1, 1], [], []>} : vector<8x128xf32>, vector<128x512xf32>, vector<8x512xf32> -> vector<8x512xf32>
    %179 = arith.addf %177, %178 : vector<8x512xf32>
    %180 = vector.extract_strided_slice %179 {offsets = [0, 0], sizes = [8, 128], strides = [1, 1]} : vector<8x512xf32> to vector<8x128xf32>
    %181 = arith.negf %180 : vector<8x128xf32>
    %182 = math.exp %181 : vector<8x128xf32>
    %cst_66 = arith.constant 1.000000e+00 : f32
    %183 = vector.broadcast %cst_66 : f32 to vector<8x128xf32>
    %184 = arith.addf %183, %182 : vector<8x128xf32>
    %185 = arith.divf %183, %184 : vector<8x128xf32>
    %186 = vector.extract_strided_slice %179 {offsets = [0, 128], sizes = [8, 128], strides = [1, 1]} : vector<8x512xf32> to vector<8x128xf32>
    %187 = arith.negf %186 : vector<8x128xf32>
    %188 = math.exp %187 : vector<8x128xf32>
    %cst_67 = arith.constant 1.000000e+00 : f32
    %189 = vector.broadcast %cst_67 : f32 to vector<8x128xf32>
    %190 = arith.addf %189, %188 : vector<8x128xf32>
    %191 = arith.divf %189, %190 : vector<8x128xf32>
    %192 = vector.extract_strided_slice %179 {offsets = [0, 256], sizes = [8, 128], strides = [1, 1]} : vector<8x512xf32> to vector<8x128xf32>
    %193 = math.tanh %192 : vector<8x128xf32>
    %194 = vector.extract_strided_slice %179 {offsets = [0, 384], sizes = [8, 128], strides = [1, 1]} : vector<8x512xf32> to vector<8x128xf32>
    %195 = arith.negf %194 : vector<8x128xf32>
    %196 = math.exp %195 : vector<8x128xf32>
    %cst_68 = arith.constant 1.000000e+00 : f32
    %197 = vector.broadcast %cst_68 : f32 to vector<8x128xf32>
    %198 = arith.addf %197, %196 : vector<8x128xf32>
    %199 = arith.divf %197, %198 : vector<8x128xf32>
    %200 = arith.mulf %191, %170 : vector<8x128xf32>
    %201 = arith.mulf %185, %193 : vector<8x128xf32>
    %202 = arith.addf %200, %201 : vector<8x128xf32>
    %203 = math.tanh %202 : vector<8x128xf32>
    %204 = arith.mulf %199, %203 : vector<8x128xf32>
    %c5_69 = arith.constant 5 : index
    %c0_70 = arith.constant 0 : index
    %c0_71 = arith.constant 0 : index
    %205 = vector.load %arg14[%c5_69, %c0_70, %c0_71] : memref<8x8x128xf32, #tpu.memory_space<vmem>>, vector<1x8x128xf32>
    %206 = vector.shape_cast %205 : vector<1x8x128xf32> to vector<8x128xf32>
    %207 = vector.shape_cast %204 : vector<8x128xf32> to vector<1x8x128xf32>
    tpu.vector_store %arg14[%c5_69, %c0_70, %c0_71], %207 {strides = array<i32>} : memref<8x8x128xf32, #tpu.memory_space<vmem>>, vector<1x8x128xf32>,
    %c6 = arith.constant 6 : index
    %c0_72 = arith.constant 0 : index
    %c0_73 = arith.constant 0 : index
    %208 = vector.load %arg12[%c6, %c0_72, %c0_73] : memref<8x8x512xf32, #tpu.memory_space<vmem>>, vector<1x8x512xf32>
    %209 = vector.shape_cast %208 : vector<1x8x512xf32> to vector<8x512xf32>
    %cst_74 = arith.constant dense<0.000000e+00> : vector<8x512xf32>
    %210 = tpu.matmul %204, %13, %cst_74 {dimension_numbers = #tpu.dot_dimension_numbers<[1], [0], [0], [1], [0, 0, 1, 1], [], []>} : vector<8x128xf32>, vector<128x512xf32>, vector<8x512xf32> -> vector<8x512xf32>
    %211 = arith.addf %209, %210 : vector<8x512xf32>
    %212 = vector.extract_strided_slice %211 {offsets = [0, 0], sizes = [8, 128], strides = [1, 1]} : vector<8x512xf32> to vector<8x128xf32>
    %213 = arith.negf %212 : vector<8x128xf32>
    %214 = math.exp %213 : vector<8x128xf32>
    %cst_75 = arith.constant 1.000000e+00 : f32
    %215 = vector.broadcast %cst_75 : f32 to vector<8x128xf32>
    %216 = arith.addf %215, %214 : vector<8x128xf32>
    %217 = arith.divf %215, %216 : vector<8x128xf32>
    %218 = vector.extract_strided_slice %211 {offsets = [0, 128], sizes = [8, 128], strides = [1, 1]} : vector<8x512xf32> to vector<8x128xf32>
    %219 = arith.negf %218 : vector<8x128xf32>
    %220 = math.exp %219 : vector<8x128xf32>
    %cst_76 = arith.constant 1.000000e+00 : f32
    %221 = vector.broadcast %cst_76 : f32 to vector<8x128xf32>
    %222 = arith.addf %221, %220 : vector<8x128xf32>
    %223 = arith.divf %221, %222 : vector<8x128xf32>
    %224 = vector.extract_strided_slice %211 {offsets = [0, 256], sizes = [8, 128], strides = [1, 1]} : vector<8x512xf32> to vector<8x128xf32>
    %225 = math.tanh %224 : vector<8x128xf32>
    %226 = vector.extract_strided_slice %211 {offsets = [0, 384], sizes = [8, 128], strides = [1, 1]} : vector<8x512xf32> to vector<8x128xf32>
    %227 = arith.negf %226 : vector<8x128xf32>
    %228 = math.exp %227 : vector<8x128xf32>
    %cst_77 = arith.constant 1.000000e+00 : f32
    %229 = vector.broadcast %cst_77 : f32 to vector<8x128xf32>
    %230 = arith.addf %229, %228 : vector<8x128xf32>
    %231 = arith.divf %229, %230 : vector<8x128xf32>
    %232 = arith.mulf %223, %202 : vector<8x128xf32>
    %233 = arith.mulf %217, %225 : vector<8x128xf32>
    %234 = arith.addf %232, %233 : vector<8x128xf32>
    %235 = math.tanh %234 : vector<8x128xf32>
    %236 = arith.mulf %231, %235 : vector<8x128xf32>
    %c6_78 = arith.constant 6 : index
    %c0_79 = arith.constant 0 : index
    %c0_80 = arith.constant 0 : index
    %237 = vector.load %arg14[%c6_78, %c0_79, %c0_80] : memref<8x8x128xf32, #tpu.memory_space<vmem>>, vector<1x8x128xf32>
    %238 = vector.shape_cast %237 : vector<1x8x128xf32> to vector<8x128xf32>
    %239 = vector.shape_cast %236 : vector<8x128xf32> to vector<1x8x128xf32>
    tpu.vector_store %arg14[%c6_78, %c0_79, %c0_80], %239 {strides = array<i32>} : memref<8x8x128xf32, #tpu.memory_space<vmem>>, vector<1x8x128xf32>,
    %c7 = arith.constant 7 : index
    %c0_81 = arith.constant 0 : index
    %c0_82 = arith.constant 0 : index
    %240 = vector.load %arg12[%c7, %c0_81, %c0_82] : memref<8x8x512xf32, #tpu.memory_space<vmem>>, vector<1x8x512xf32>
    %241 = vector.shape_cast %240 : vector<1x8x512xf32> to vector<8x512xf32>
    %cst_83 = arith.constant dense<0.000000e+00> : vector<8x512xf32>
    %242 = tpu.matmul %236, %13, %cst_83 {dimension_numbers = #tpu.dot_dimension_numbers<[1], [0], [0], [1], [0, 0, 1, 1], [], []>} : vector<8x128xf32>, vector<128x512xf32>, vector<8x512xf32> -> vector<8x512xf32>
    %243 = arith.addf %241, %242 : vector<8x512xf32>
    %244 = vector.extract_strided_slice %243 {offsets = [0, 0], sizes = [8, 128], strides = [1, 1]} : vector<8x512xf32> to vector<8x128xf32>
    %245 = arith.negf %244 : vector<8x128xf32>
    %246 = math.exp %245 : vector<8x128xf32>
    %cst_84 = arith.constant 1.000000e+00 : f32
    %247 = vector.broadcast %cst_84 : f32 to vector<8x128xf32>
    %248 = arith.addf %247, %246 : vector<8x128xf32>
    %249 = arith.divf %247, %248 : vector<8x128xf32>
    %250 = vector.extract_strided_slice %243 {offsets = [0, 128], sizes = [8, 128], strides = [1, 1]} : vector<8x512xf32> to vector<8x128xf32>
    %251 = arith.negf %250 : vector<8x128xf32>
    %252 = math.exp %251 : vector<8x128xf32>
    %cst_85 = arith.constant 1.000000e+00 : f32
    %253 = vector.broadcast %cst_85 : f32 to vector<8x128xf32>
    %254 = arith.addf %253, %252 : vector<8x128xf32>
    %255 = arith.divf %253, %254 : vector<8x128xf32>
    %256 = vector.extract_strided_slice %243 {offsets = [0, 256], sizes = [8, 128], strides = [1, 1]} : vector<8x512xf32> to vector<8x128xf32>
    %257 = math.tanh %256 : vector<8x128xf32>
    %258 = vector.extract_strided_slice %243 {offsets = [0, 384], sizes = [8, 128], strides = [1, 1]} : vector<8x512xf32> to vector<8x128xf32>
    %259 = arith.negf %258 : vector<8x128xf32>
    %260 = math.exp %259 : vector<8x128xf32>
    %cst_86 = arith.constant 1.000000e+00 : f32
    %261 = vector.broadcast %cst_86 : f32 to vector<8x128xf32>
    %262 = arith.addf %261, %260 : vector<8x128xf32>
    %263 = arith.divf %261, %262 : vector<8x128xf32>
    %264 = arith.mulf %255, %234 : vector<8x128xf32>
    %265 = arith.mulf %249, %257 : vector<8x128xf32>
    %266 = arith.addf %264, %265 : vector<8x128xf32>
    %267 = math.tanh %266 : vector<8x128xf32>
    %268 = arith.mulf %263, %267 : vector<8x128xf32>
    %c7_87 = arith.constant 7 : index
    %c0_88 = arith.constant 0 : index
    %c0_89 = arith.constant 0 : index
    %269 = vector.load %arg14[%c7_87, %c0_88, %c0_89] : memref<8x8x128xf32, #tpu.memory_space<vmem>>, vector<1x8x128xf32>
    %270 = vector.shape_cast %269 : vector<1x8x128xf32> to vector<8x128xf32>
    %271 = vector.shape_cast %268 : vector<8x128xf32> to vector<1x8x128xf32>
    tpu.vector_store %arg14[%c7_87, %c0_88, %c0_89], %271 {strides = array<i32>} : memref<8x8x128xf32, #tpu.memory_space<vmem>>, vector<1x8x128xf32>,
    %c7_90 = arith.constant 7 : index
    %c0_91 = arith.constant 0 : index
    %c0_92 = arith.constant 0 : index
    %272 = vector.load %arg13[%c7_90, %c0_91, %c0_92] : memref<8x8x512xf32, #tpu.memory_space<vmem>>, vector<1x8x512xf32>
    %273 = vector.shape_cast %272 : vector<1x8x512xf32> to vector<8x512xf32>
    %cst_93 = arith.constant dense<0.000000e+00> : vector<8x512xf32>
    %274 = tpu.matmul %15, %14, %cst_93 {dimension_numbers = #tpu.dot_dimension_numbers<[1], [0], [0], [1], [0, 0, 1, 1], [], []>} : vector<8x128xf32>, vector<128x512xf32>, vector<8x512xf32> -> vector<8x512xf32>
    %275 = arith.addf %273, %274 : vector<8x512xf32>
    %276 = vector.extract_strided_slice %275 {offsets = [0, 0], sizes = [8, 128], strides = [1, 1]} : vector<8x512xf32> to vector<8x128xf32>
    %277 = arith.negf %276 : vector<8x128xf32>
    %278 = math.exp %277 : vector<8x128xf32>
    %cst_94 = arith.constant 1.000000e+00 : f32
    %279 = vector.broadcast %cst_94 : f32 to vector<8x128xf32>
    %280 = arith.addf %279, %278 : vector<8x128xf32>
    %281 = arith.divf %279, %280 : vector<8x128xf32>
    %282 = vector.extract_strided_slice %275 {offsets = [0, 128], sizes = [8, 128], strides = [1, 1]} : vector<8x512xf32> to vector<8x128xf32>
    %283 = arith.negf %282 : vector<8x128xf32>
    %284 = math.exp %283 : vector<8x128xf32>
    %cst_95 = arith.constant 1.000000e+00 : f32
    %285 = vector.broadcast %cst_95 : f32 to vector<8x128xf32>
    %286 = arith.addf %285, %284 : vector<8x128xf32>
    %287 = arith.divf %285, %286 : vector<8x128xf32>
    %288 = vector.extract_strided_slice %275 {offsets = [0, 256], sizes = [8, 128], strides = [1, 1]} : vector<8x512xf32> to vector<8x128xf32>
    %289 = math.tanh %288 : vector<8x128xf32>
    %290 = vector.extract_strided_slice %275 {offsets = [0, 384], sizes = [8, 128], strides = [1, 1]} : vector<8x512xf32> to vector<8x128xf32>
    %291 = arith.negf %290 : vector<8x128xf32>
    %292 = math.exp %291 : vector<8x128xf32>
    %cst_96 = arith.constant 1.000000e+00 : f32
    %293 = vector.broadcast %cst_96 : f32 to vector<8x128xf32>
    %294 = arith.addf %293, %292 : vector<8x128xf32>
    %295 = arith.divf %293, %294 : vector<8x128xf32>
    %296 = arith.mulf %287, %15 : vector<8x128xf32>
    %297 = arith.mulf %281, %289 : vector<8x128xf32>
    %298 = arith.addf %296, %297 : vector<8x128xf32>
    %299 = math.tanh %298 : vector<8x128xf32>
    %300 = arith.mulf %295, %299 : vector<8x128xf32>
    %c7_97 = arith.constant 7 : index
    %c0_98 = arith.constant 0 : index
    %c0_99 = arith.constant 0 : index
    %301 = vector.load %arg15[%c7_97, %c0_98, %c0_99] : memref<8x8x128xf32, #tpu.memory_space<vmem>>, vector<1x8x128xf32>
    %302 = vector.shape_cast %301 : vector<1x8x128xf32> to vector<8x128xf32>
    %303 = vector.shape_cast %300 : vector<8x128xf32> to vector<1x8x128xf32>
    tpu.vector_store %arg15[%c7_97, %c0_98, %c0_99], %303 {strides = array<i32>} : memref<8x8x128xf32, #tpu.memory_space<vmem>>, vector<1x8x128xf32>,
    %c6_100 = arith.constant 6 : index
    %c0_101 = arith.constant 0 : index
    %c0_102 = arith.constant 0 : index
    %304 = vector.load %arg13[%c6_100, %c0_101, %c0_102] : memref<8x8x512xf32, #tpu.memory_space<vmem>>, vector<1x8x512xf32>
    %305 = vector.shape_cast %304 : vector<1x8x512xf32> to vector<8x512xf32>
    %cst_103 = arith.constant dense<0.000000e+00> : vector<8x512xf32>
    %306 = tpu.matmul %300, %14, %cst_103 {dimension_numbers = #tpu.dot_dimension_numbers<[1], [0], [0], [1], [0, 0, 1, 1], [], []>} : vector<8x128xf32>, vector<128x512xf32>, vector<8x512xf32> -> vector<8x512xf32>
    %307 = arith.addf %305, %306 : vector<8x512xf32>
    %308 = vector.extract_strided_slice %307 {offsets = [0, 0], sizes = [8, 128], strides = [1, 1]} : vector<8x512xf32> to vector<8x128xf32>
    %309 = arith.negf %308 : vector<8x128xf32>
    %310 = math.exp %309 : vector<8x128xf32>
    %cst_104 = arith.constant 1.000000e+00 : f32
    %311 = vector.broadcast %cst_104 : f32 to vector<8x128xf32>
    %312 = arith.addf %311, %310 : vector<8x128xf32>
    %313 = arith.divf %311, %312 : vector<8x128xf32>
    %314 = vector.extract_strided_slice %307 {offsets = [0, 128], sizes = [8, 128], strides = [1, 1]} : vector<8x512xf32> to vector<8x128xf32>
    %315 = arith.negf %314 : vector<8x128xf32>
    %316 = math.exp %315 : vector<8x128xf32>
    %cst_105 = arith.constant 1.000000e+00 : f32
    %317 = vector.broadcast %cst_105 : f32 to vector<8x128xf32>
    %318 = arith.addf %317, %316 : vector<8x128xf32>
    %319 = arith.divf %317, %318 : vector<8x128xf32>
    %320 = vector.extract_strided_slice %307 {offsets = [0, 256], sizes = [8, 128], strides = [1, 1]} : vector<8x512xf32> to vector<8x128xf32>
    %321 = math.tanh %320 : vector<8x128xf32>
    %322 = vector.extract_strided_slice %307 {offsets = [0, 384], sizes = [8, 128], strides = [1, 1]} : vector<8x512xf32> to vector<8x128xf32>
    %323 = arith.negf %322 : vector<8x128xf32>
    %324 = math.exp %323 : vector<8x128xf32>
    %cst_106 = arith.constant 1.000000e+00 : f32
    %325 = vector.broadcast %cst_106 : f32 to vector<8x128xf32>
    %326 = arith.addf %325, %324 : vector<8x128xf32>
    %327 = arith.divf %325, %326 : vector<8x128xf32>
    %328 = arith.mulf %319, %298 : vector<8x128xf32>
    %329 = arith.mulf %313, %321 : vector<8x128xf32>
    %330 = arith.addf %328, %329 : vector<8x128xf32>
    %331 = math.tanh %330 : vector<8x128xf32>
    %332 = arith.mulf %327, %331 : vector<8x128xf32>
    %c6_107 = arith.constant 6 : index
    %c0_108 = arith.constant 0 : index
    %c0_109 = arith.constant 0 : index
    %333 = vector.load %arg15[%c6_107, %c0_108, %c0_109] : memref<8x8x128xf32, #tpu.memory_space<vmem>>, vector<1x8x128xf32>
    %334 = vector.shape_cast %333 : vector<1x8x128xf32> to vector<8x128xf32>
    %335 = vector.shape_cast %332 : vector<8x128xf32> to vector<1x8x128xf32>
    tpu.vector_store %arg15[%c6_107, %c0_108, %c0_109], %335 {strides = array<i32>} : memref<8x8x128xf32, #tpu.memory_space<vmem>>, vector<1x8x128xf32>,
    %c5_110 = arith.constant 5 : index
    %c0_111 = arith.constant 0 : index
    %c0_112 = arith.constant 0 : index
    %336 = vector.load %arg13[%c5_110, %c0_111, %c0_112] : memref<8x8x512xf32, #tpu.memory_space<vmem>>, vector<1x8x512xf32>
    %337 = vector.shape_cast %336 : vector<1x8x512xf32> to vector<8x512xf32>
    %cst_113 = arith.constant dense<0.000000e+00> : vector<8x512xf32>
    %338 = tpu.matmul %332, %14, %cst_113 {dimension_numbers = #tpu.dot_dimension_numbers<[1], [0], [0], [1], [0, 0, 1, 1], [], []>} : vector<8x128xf32>, vector<128x512xf32>, vector<8x512xf32> -> vector<8x512xf32>
    %339 = arith.addf %337, %338 : vector<8x512xf32>
    %340 = vector.extract_strided_slice %339 {offsets = [0, 0], sizes = [8, 128], strides = [1, 1]} : vector<8x512xf32> to vector<8x128xf32>
    %341 = arith.negf %340 : vector<8x128xf32>
    %342 = math.exp %341 : vector<8x128xf32>
    %cst_114 = arith.constant 1.000000e+00 : f32
    %343 = vector.broadcast %cst_114 : f32 to vector<8x128xf32>
    %344 = arith.addf %343, %342 : vector<8x128xf32>
    %345 = arith.divf %343, %344 : vector<8x128xf32>
    %346 = vector.extract_strided_slice %339 {offsets = [0, 128], sizes = [8, 128], strides = [1, 1]} : vector<8x512xf32> to vector<8x128xf32>
    %347 = arith.negf %346 : vector<8x128xf32>
    %348 = math.exp %347 : vector<8x128xf32>
    %cst_115 = arith.constant 1.000000e+00 : f32
    %349 = vector.broadcast %cst_115 : f32 to vector<8x128xf32>
    %350 = arith.addf %349, %348 : vector<8x128xf32>
    %351 = arith.divf %349, %350 : vector<8x128xf32>
    %352 = vector.extract_strided_slice %339 {offsets = [0, 256], sizes = [8, 128], strides = [1, 1]} : vector<8x512xf32> to vector<8x128xf32>
    %353 = math.tanh %352 : vector<8x128xf32>
    %354 = vector.extract_strided_slice %339 {offsets = [0, 384], sizes = [8, 128], strides = [1, 1]} : vector<8x512xf32> to vector<8x128xf32>
    %355 = arith.negf %354 : vector<8x128xf32>
    %356 = math.exp %355 : vector<8x128xf32>
    %cst_116 = arith.constant 1.000000e+00 : f32
    %357 = vector.broadcast %cst_116 : f32 to vector<8x128xf32>
    %358 = arith.addf %357, %356 : vector<8x128xf32>
    %359 = arith.divf %357, %358 : vector<8x128xf32>
    %360 = arith.mulf %351, %330 : vector<8x128xf32>
    %361 = arith.mulf %345, %353 : vector<8x128xf32>
    %362 = arith.addf %360, %361 : vector<8x128xf32>
    %363 = math.tanh %362 : vector<8x128xf32>
    %364 = arith.mulf %359, %363 : vector<8x128xf32>
    %c5_117 = arith.constant 5 : index
    %c0_118 = arith.constant 0 : index
    %c0_119 = arith.constant 0 : index
    %365 = vector.load %arg15[%c5_117, %c0_118, %c0_119] : memref<8x8x128xf32, #tpu.memory_space<vmem>>, vector<1x8x128xf32>
    %366 = vector.shape_cast %365 : vector<1x8x128xf32> to vector<8x128xf32>
    %367 = vector.shape_cast %364 : vector<8x128xf32> to vector<1x8x128xf32>
    tpu.vector_store %arg15[%c5_117, %c0_118, %c0_119], %367 {strides = array<i32>} : memref<8x8x128xf32, #tpu.memory_space<vmem>>, vector<1x8x128xf32>,
    %c4_120 = arith.constant 4 : index
    %c0_121 = arith.constant 0 : index
    %c0_122 = arith.constant 0 : index
    %368 = vector.load %arg13[%c4_120, %c0_121, %c0_122] : memref<8x8x512xf32, #tpu.memory_space<vmem>>, vector<1x8x512xf32>
    %369 = vector.shape_cast %368 : vector<1x8x512xf32> to vector<8x512xf32>
    %cst_123 = arith.constant dense<0.000000e+00> : vector<8x512xf32>
    %370 = tpu.matmul %364, %14, %cst_123 {dimension_numbers = #tpu.dot_dimension_numbers<[1], [0], [0], [1], [0, 0, 1, 1], [], []>} : vector<8x128xf32>, vector<128x512xf32>, vector<8x512xf32> -> vector<8x512xf32>
    %371 = arith.addf %369, %370 : vector<8x512xf32>
    %372 = vector.extract_strided_slice %371 {offsets = [0, 0], sizes = [8, 128], strides = [1, 1]} : vector<8x512xf32> to vector<8x128xf32>
    %373 = arith.negf %372 : vector<8x128xf32>
    %374 = math.exp %373 : vector<8x128xf32>
    %cst_124 = arith.constant 1.000000e+00 : f32
    %375 = vector.broadcast %cst_124 : f32 to vector<8x128xf32>
    %376 = arith.addf %375, %374 : vector<8x128xf32>
    %377 = arith.divf %375, %376 : vector<8x128xf32>
    %378 = vector.extract_strided_slice %371 {offsets = [0, 128], sizes = [8, 128], strides = [1, 1]} : vector<8x512xf32> to vector<8x128xf32>
    %379 = arith.negf %378 : vector<8x128xf32>
    %380 = math.exp %379 : vector<8x128xf32>
    %cst_125 = arith.constant 1.000000e+00 : f32
    %381 = vector.broadcast %cst_125 : f32 to vector<8x128xf32>
    %382 = arith.addf %381, %380 : vector<8x128xf32>
    %383 = arith.divf %381, %382 : vector<8x128xf32>
    %384 = vector.extract_strided_slice %371 {offsets = [0, 256], sizes = [8, 128], strides = [1, 1]} : vector<8x512xf32> to vector<8x128xf32>
    %385 = math.tanh %384 : vector<8x128xf32>
    %386 = vector.extract_strided_slice %371 {offsets = [0, 384], sizes = [8, 128], strides = [1, 1]} : vector<8x512xf32> to vector<8x128xf32>
    %387 = arith.negf %386 : vector<8x128xf32>
    %388 = math.exp %387 : vector<8x128xf32>
    %cst_126 = arith.constant 1.000000e+00 : f32
    %389 = vector.broadcast %cst_126 : f32 to vector<8x128xf32>
    %390 = arith.addf %389, %388 : vector<8x128xf32>
    %391 = arith.divf %389, %390 : vector<8x128xf32>
    %392 = arith.mulf %383, %362 : vector<8x128xf32>
    %393 = arith.mulf %377, %385 : vector<8x128xf32>
    %394 = arith.addf %392, %393 : vector<8x128xf32>
    %395 = math.tanh %394 : vector<8x128xf32>
    %396 = arith.mulf %391, %395 : vector<8x128xf32>
    %c4_127 = arith.constant 4 : index
    %c0_128 = arith.constant 0 : index
    %c0_129 = arith.constant 0 : index
    %397 = vector.load %arg15[%c4_127, %c0_128, %c0_129] : memref<8x8x128xf32, #tpu.memory_space<vmem>>, vector<1x8x128xf32>
    %398 = vector.shape_cast %397 : vector<1x8x128xf32> to vector<8x128xf32>
    %399 = vector.shape_cast %396 : vector<8x128xf32> to vector<1x8x128xf32>
    tpu.vector_store %arg15[%c4_127, %c0_128, %c0_129], %399 {strides = array<i32>} : memref<8x8x128xf32, #tpu.memory_space<vmem>>, vector<1x8x128xf32>,
    %c3_130 = arith.constant 3 : index
    %c0_131 = arith.constant 0 : index
    %c0_132 = arith.constant 0 : index
    %400 = vector.load %arg13[%c3_130, %c0_131, %c0_132] : memref<8x8x512xf32, #tpu.memory_space<vmem>>, vector<1x8x512xf32>
    %401 = vector.shape_cast %400 : vector<1x8x512xf32> to vector<8x512xf32>
    %cst_133 = arith.constant dense<0.000000e+00> : vector<8x512xf32>
    %402 = tpu.matmul %396, %14, %cst_133 {dimension_numbers = #tpu.dot_dimension_numbers<[1], [0], [0], [1], [0, 0, 1, 1], [], []>} : vector<8x128xf32>, vector<128x512xf32>, vector<8x512xf32> -> vector<8x512xf32>
    %403 = arith.addf %401, %402 : vector<8x512xf32>
    %404 = vector.extract_strided_slice %403 {offsets = [0, 0], sizes = [8, 128], strides = [1, 1]} : vector<8x512xf32> to vector<8x128xf32>
    %405 = arith.negf %404 : vector<8x128xf32>
    %406 = math.exp %405 : vector<8x128xf32>
    %cst_134 = arith.constant 1.000000e+00 : f32
    %407 = vector.broadcast %cst_134 : f32 to vector<8x128xf32>
    %408 = arith.addf %407, %406 : vector<8x128xf32>
    %409 = arith.divf %407, %408 : vector<8x128xf32>
    %410 = vector.extract_strided_slice %403 {offsets = [0, 128], sizes = [8, 128], strides = [1, 1]} : vector<8x512xf32> to vector<8x128xf32>
    %411 = arith.negf %410 : vector<8x128xf32>
    %412 = math.exp %411 : vector<8x128xf32>
    %cst_135 = arith.constant 1.000000e+00 : f32
    %413 = vector.broadcast %cst_135 : f32 to vector<8x128xf32>
    %414 = arith.addf %413, %412 : vector<8x128xf32>
    %415 = arith.divf %413, %414 : vector<8x128xf32>
    %416 = vector.extract_strided_slice %403 {offsets = [0, 256], sizes = [8, 128], strides = [1, 1]} : vector<8x512xf32> to vector<8x128xf32>
    %417 = math.tanh %416 : vector<8x128xf32>
    %418 = vector.extract_strided_slice %403 {offsets = [0, 384], sizes = [8, 128], strides = [1, 1]} : vector<8x512xf32> to vector<8x128xf32>
    %419 = arith.negf %418 : vector<8x128xf32>
    %420 = math.exp %419 : vector<8x128xf32>
    %cst_136 = arith.constant 1.000000e+00 : f32
    %421 = vector.broadcast %cst_136 : f32 to vector<8x128xf32>
    %422 = arith.addf %421, %420 : vector<8x128xf32>
    %423 = arith.divf %421, %422 : vector<8x128xf32>
    %424 = arith.mulf %415, %394 : vector<8x128xf32>
    %425 = arith.mulf %409, %417 : vector<8x128xf32>
    %426 = arith.addf %424, %425 : vector<8x128xf32>
    %427 = math.tanh %426 : vector<8x128xf32>
    %428 = arith.mulf %423, %427 : vector<8x128xf32>
    %c3_137 = arith.constant 3 : index
    %c0_138 = arith.constant 0 : index
    %c0_139 = arith.constant 0 : index
    %429 = vector.load %arg15[%c3_137, %c0_138, %c0_139] : memref<8x8x128xf32, #tpu.memory_space<vmem>>, vector<1x8x128xf32>
    %430 = vector.shape_cast %429 : vector<1x8x128xf32> to vector<8x128xf32>
    %431 = vector.shape_cast %428 : vector<8x128xf32> to vector<1x8x128xf32>
    tpu.vector_store %arg15[%c3_137, %c0_138, %c0_139], %431 {strides = array<i32>} : memref<8x8x128xf32, #tpu.memory_space<vmem>>, vector<1x8x128xf32>,
    %c2_140 = arith.constant 2 : index
    %c0_141 = arith.constant 0 : index
    %c0_142 = arith.constant 0 : index
    %432 = vector.load %arg13[%c2_140, %c0_141, %c0_142] : memref<8x8x512xf32, #tpu.memory_space<vmem>>, vector<1x8x512xf32>
    %433 = vector.shape_cast %432 : vector<1x8x512xf32> to vector<8x512xf32>
    %cst_143 = arith.constant dense<0.000000e+00> : vector<8x512xf32>
    %434 = tpu.matmul %428, %14, %cst_143 {dimension_numbers = #tpu.dot_dimension_numbers<[1], [0], [0], [1], [0, 0, 1, 1], [], []>} : vector<8x128xf32>, vector<128x512xf32>, vector<8x512xf32> -> vector<8x512xf32>
    %435 = arith.addf %433, %434 : vector<8x512xf32>
    %436 = vector.extract_strided_slice %435 {offsets = [0, 0], sizes = [8, 128], strides = [1, 1]} : vector<8x512xf32> to vector<8x128xf32>
    %437 = arith.negf %436 : vector<8x128xf32>
    %438 = math.exp %437 : vector<8x128xf32>
    %cst_144 = arith.constant 1.000000e+00 : f32
    %439 = vector.broadcast %cst_144 : f32 to vector<8x128xf32>
    %440 = arith.addf %439, %438 : vector<8x128xf32>
    %441 = arith.divf %439, %440 : vector<8x128xf32>
    %442 = vector.extract_strided_slice %435 {offsets = [0, 128], sizes = [8, 128], strides = [1, 1]} : vector<8x512xf32> to vector<8x128xf32>
    %443 = arith.negf %442 : vector<8x128xf32>
    %444 = math.exp %443 : vector<8x128xf32>
    %cst_145 = arith.constant 1.000000e+00 : f32
    %445 = vector.broadcast %cst_145 : f32 to vector<8x128xf32>
    %446 = arith.addf %445, %444 : vector<8x128xf32>
    %447 = arith.divf %445, %446 : vector<8x128xf32>
    %448 = vector.extract_strided_slice %435 {offsets = [0, 256], sizes = [8, 128], strides = [1, 1]} : vector<8x512xf32> to vector<8x128xf32>
    %449 = math.tanh %448 : vector<8x128xf32>
    %450 = vector.extract_strided_slice %435 {offsets = [0, 384], sizes = [8, 128], strides = [1, 1]} : vector<8x512xf32> to vector<8x128xf32>
    %451 = arith.negf %450 : vector<8x128xf32>
    %452 = math.exp %451 : vector<8x128xf32>
    %cst_146 = arith.constant 1.000000e+00 : f32
    %453 = vector.broadcast %cst_146 : f32 to vector<8x128xf32>
    %454 = arith.addf %453, %452 : vector<8x128xf32>
    %455 = arith.divf %453, %454 : vector<8x128xf32>
    %456 = arith.mulf %447, %426 : vector<8x128xf32>
    %457 = arith.mulf %441, %449 : vector<8x128xf32>
    %458 = arith.addf %456, %457 : vector<8x128xf32>
    %459 = math.tanh %458 : vector<8x128xf32>
    %460 = arith.mulf %455, %459 : vector<8x128xf32>
    %c2_147 = arith.constant 2 : index
    %c0_148 = arith.constant 0 : index
    %c0_149 = arith.constant 0 : index
    %461 = vector.load %arg15[%c2_147, %c0_148, %c0_149] : memref<8x8x128xf32, #tpu.memory_space<vmem>>, vector<1x8x128xf32>
    %462 = vector.shape_cast %461 : vector<1x8x128xf32> to vector<8x128xf32>
    %463 = vector.shape_cast %460 : vector<8x128xf32> to vector<1x8x128xf32>
    tpu.vector_store %arg15[%c2_147, %c0_148, %c0_149], %463 {strides = array<i32>} : memref<8x8x128xf32, #tpu.memory_space<vmem>>, vector<1x8x128xf32>,
    %c1_150 = arith.constant 1 : index
    %c0_151 = arith.constant 0 : index
    %c0_152 = arith.constant 0 : index
    %464 = vector.load %arg13[%c1_150, %c0_151, %c0_152] : memref<8x8x512xf32, #tpu.memory_space<vmem>>, vector<1x8x512xf32>
    %465 = vector.shape_cast %464 : vector<1x8x512xf32> to vector<8x512xf32>
    %cst_153 = arith.constant dense<0.000000e+00> : vector<8x512xf32>
    %466 = tpu.matmul %460, %14, %cst_153 {dimension_numbers = #tpu.dot_dimension_numbers<[1], [0], [0], [1], [0, 0, 1, 1], [], []>} : vector<8x128xf32>, vector<128x512xf32>, vector<8x512xf32> -> vector<8x512xf32>
    %467 = arith.addf %465, %466 : vector<8x512xf32>
    %468 = vector.extract_strided_slice %467 {offsets = [0, 0], sizes = [8, 128], strides = [1, 1]} : vector<8x512xf32> to vector<8x128xf32>
    %469 = arith.negf %468 : vector<8x128xf32>
    %470 = math.exp %469 : vector<8x128xf32>
    %cst_154 = arith.constant 1.000000e+00 : f32
    %471 = vector.broadcast %cst_154 : f32 to vector<8x128xf32>
    %472 = arith.addf %471, %470 : vector<8x128xf32>
    %473 = arith.divf %471, %472 : vector<8x128xf32>
    %474 = vector.extract_strided_slice %467 {offsets = [0, 128], sizes = [8, 128], strides = [1, 1]} : vector<8x512xf32> to vector<8x128xf32>
    %475 = arith.negf %474 : vector<8x128xf32>
    %476 = math.exp %475 : vector<8x128xf32>
    %cst_155 = arith.constant 1.000000e+00 : f32
    %477 = vector.broadcast %cst_155 : f32 to vector<8x128xf32>
    %478 = arith.addf %477, %476 : vector<8x128xf32>
    %479 = arith.divf %477, %478 : vector<8x128xf32>
    %480 = vector.extract_strided_slice %467 {offsets = [0, 256], sizes = [8, 128], strides = [1, 1]} : vector<8x512xf32> to vector<8x128xf32>
    %481 = math.tanh %480 : vector<8x128xf32>
    %482 = vector.extract_strided_slice %467 {offsets = [0, 384], sizes = [8, 128], strides = [1, 1]} : vector<8x512xf32> to vector<8x128xf32>
    %483 = arith.negf %482 : vector<8x128xf32>
    %484 = math.exp %483 : vector<8x128xf32>
    %cst_156 = arith.constant 1.000000e+00 : f32
    %485 = vector.broadcast %cst_156 : f32 to vector<8x128xf32>
    %486 = arith.addf %485, %484 : vector<8x128xf32>
    %487 = arith.divf %485, %486 : vector<8x128xf32>
    %488 = arith.mulf %479, %458 : vector<8x128xf32>
    %489 = arith.mulf %473, %481 : vector<8x128xf32>
    %490 = arith.addf %488, %489 : vector<8x128xf32>
    %491 = math.tanh %490 : vector<8x128xf32>
    %492 = arith.mulf %487, %491 : vector<8x128xf32>
    %c1_157 = arith.constant 1 : index
    %c0_158 = arith.constant 0 : index
    %c0_159 = arith.constant 0 : index
    %493 = vector.load %arg15[%c1_157, %c0_158, %c0_159] : memref<8x8x128xf32, #tpu.memory_space<vmem>>, vector<1x8x128xf32>
    %494 = vector.shape_cast %493 : vector<1x8x128xf32> to vector<8x128xf32>
    %495 = vector.shape_cast %492 : vector<8x128xf32> to vector<1x8x128xf32>
    tpu.vector_store %arg15[%c1_157, %c0_158, %c0_159], %495 {strides = array<i32>} : memref<8x8x128xf32, #tpu.memory_space<vmem>>, vector<1x8x128xf32>,
    %c0_160 = arith.constant 0 : index
    %c0_161 = arith.constant 0 : index
    %c0_162 = arith.constant 0 : index
    %496 = vector.load %arg13[%c0_160, %c0_161, %c0_162] : memref<8x8x512xf32, #tpu.memory_space<vmem>>, vector<1x8x512xf32>
    %497 = vector.shape_cast %496 : vector<1x8x512xf32> to vector<8x512xf32>
    %cst_163 = arith.constant dense<0.000000e+00> : vector<8x512xf32>
    %498 = tpu.matmul %492, %14, %cst_163 {dimension_numbers = #tpu.dot_dimension_numbers<[1], [0], [0], [1], [0, 0, 1, 1], [], []>} : vector<8x128xf32>, vector<128x512xf32>, vector<8x512xf32> -> vector<8x512xf32>
    %499 = arith.addf %497, %498 : vector<8x512xf32>
    %500 = vector.extract_strided_slice %499 {offsets = [0, 0], sizes = [8, 128], strides = [1, 1]} : vector<8x512xf32> to vector<8x128xf32>
    %501 = arith.negf %500 : vector<8x128xf32>
    %502 = math.exp %501 : vector<8x128xf32>
    %cst_164 = arith.constant 1.000000e+00 : f32
    %503 = vector.broadcast %cst_164 : f32 to vector<8x128xf32>
    %504 = arith.addf %503, %502 : vector<8x128xf32>
    %505 = arith.divf %503, %504 : vector<8x128xf32>
    %506 = vector.extract_strided_slice %499 {offsets = [0, 128], sizes = [8, 128], strides = [1, 1]} : vector<8x512xf32> to vector<8x128xf32>
    %507 = arith.negf %506 : vector<8x128xf32>
    %508 = math.exp %507 : vector<8x128xf32>
    %cst_165 = arith.constant 1.000000e+00 : f32
    %509 = vector.broadcast %cst_165 : f32 to vector<8x128xf32>
    %510 = arith.addf %509, %508 : vector<8x128xf32>
    %511 = arith.divf %509, %510 : vector<8x128xf32>
    %512 = vector.extract_strided_slice %499 {offsets = [0, 256], sizes = [8, 128], strides = [1, 1]} : vector<8x512xf32> to vector<8x128xf32>
    %513 = math.tanh %512 : vector<8x128xf32>
    %514 = vector.extract_strided_slice %499 {offsets = [0, 384], sizes = [8, 128], strides = [1, 1]} : vector<8x512xf32> to vector<8x128xf32>
    %515 = arith.negf %514 : vector<8x128xf32>
    %516 = math.exp %515 : vector<8x128xf32>
    %cst_166 = arith.constant 1.000000e+00 : f32
    %517 = vector.broadcast %cst_166 : f32 to vector<8x128xf32>
    %518 = arith.addf %517, %516 : vector<8x128xf32>
    %519 = arith.divf %517, %518 : vector<8x128xf32>
    %520 = arith.mulf %511, %490 : vector<8x128xf32>
    %521 = arith.mulf %505, %513 : vector<8x128xf32>
    %522 = arith.addf %520, %521 : vector<8x128xf32>
    %523 = math.tanh %522 : vector<8x128xf32>
    %524 = arith.mulf %519, %523 : vector<8x128xf32>
    %c0_167 = arith.constant 0 : index
    %c0_168 = arith.constant 0 : index
    %c0_169 = arith.constant 0 : index
    %525 = vector.load %arg15[%c0_167, %c0_168, %c0_169] : memref<8x8x128xf32, #tpu.memory_space<vmem>>, vector<1x8x128xf32>
    %526 = vector.shape_cast %525 : vector<1x8x128xf32> to vector<8x128xf32>
    %527 = vector.shape_cast %524 : vector<8x128xf32> to vector<1x8x128xf32>
    tpu.vector_store %arg15[%c0_167, %c0_168, %c0_169], %527 {strides = array<i32>} : memref<8x8x128xf32, #tpu.memory_space<vmem>>, vector<1x8x128xf32>,
    %c0_170 = arith.constant 0 : index
    %c0_171 = arith.constant 0 : index
    %c0_172 = arith.constant 0 : index
    %528 = vector.load %arg14[%c0_170, %c0_171, %c0_172] : memref<8x8x128xf32, #tpu.memory_space<vmem>>, vector<8x8x128xf32>
    %c0_173 = arith.constant 0 : index
    %c0_174 = arith.constant 0 : index
    %c0_175 = arith.constant 0 : index
    %529 = vector.load %arg15[%c0_173, %c0_174, %c0_175] : memref<8x8x128xf32, #tpu.memory_space<vmem>>, vector<8x8x128xf32>
    %530 = math.tanh %528 : vector<8x8x128xf32>
    %531 = vector.shape_cast %530 : vector<8x8x128xf32> to vector<64x128xf32>
    %c0_176 = arith.constant 0 : index
    %c0_177 = arith.constant 0 : index
    %532 = vector.load %arg6[%c0_176, %c0_177] : memref<128x128xf32, #tpu.memory_space<vmem>>, vector<128x128xf32>
    %cst_178 = arith.constant dense<0.000000e+00> : vector<64x128xf32>
    %533 = tpu.matmul %531, %532, %cst_178 {dimension_numbers = #tpu.dot_dimension_numbers<[1], [0], [0], [1], [0, 0, 1, 1], [], []>} : vector<64x128xf32>, vector<128x128xf32>, vector<64x128xf32> -> vector<64x128xf32>
    %534 = math.tanh %529 : vector<8x8x128xf32>
    %535 = vector.shape_cast %534 : vector<8x8x128xf32> to vector<64x128xf32>
    %c0_179 = arith.constant 0 : index
    %c0_180 = arith.constant 0 : index
    %536 = vector.load %arg7[%c0_179, %c0_180] : memref<128x128xf32, #tpu.memory_space<vmem>>, vector<128x128xf32>
    %cst_181 = arith.constant dense<0.000000e+00> : vector<64x128xf32>
    %537 = tpu.matmul %535, %536, %cst_181 {dimension_numbers = #tpu.dot_dimension_numbers<[1], [0], [0], [1], [0, 0, 1, 1], [], []>} : vector<64x128xf32>, vector<128x128xf32>, vector<64x128xf32> -> vector<64x128xf32>
    %538 = arith.addf %533, %537 : vector<64x128xf32>
    %539 = vector.shape_cast %538 : vector<64x128xf32> to vector<8x8x128xf32>
    %cst_182 = arith.constant dense<0xFF800000> : vector<8x128xf32>
    %540 = vector.multi_reduction <maximumf>, %539, %cst_182 [0] : vector<8x8x128xf32> to vector<8x128xf32>
    %541 = vector.shape_cast %540 : vector<8x128xf32> to vector<1x8x128xf32>
    %542 = vector.broadcast %541 : vector<1x8x128xf32> to vector<8x8x128xf32>
    %543 = arith.subf %539, %542 : vector<8x8x128xf32>
    %544 = math.exp %543 : vector<8x8x128xf32>
    %cst_183 = arith.constant dense<0.000000e+00> : vector<8x128xf32>
    %545 = vector.multi_reduction <add>, %544, %cst_183 [0] : vector<8x8x128xf32> to vector<8x128xf32>
    %546 = vector.shape_cast %545 : vector<8x128xf32> to vector<1x8x128xf32>
    %547 = vector.broadcast %546 : vector<1x8x128xf32> to vector<8x8x128xf32>
    %548 = arith.divf %544, %547 : vector<8x8x128xf32>
    %549 = arith.mulf %548, %528 : vector<8x8x128xf32>
    %cst_184 = arith.constant dense<0.000000e+00> : vector<8x128xf32>
    %550 = vector.multi_reduction <add>, %549, %cst_184 [0] : vector<8x8x128xf32> to vector<8x128xf32>
    %551 = math.tanh %550 : vector<8x128xf32>
    %552 = arith.mulf %548, %529 : vector<8x8x128xf32>
    %cst_185 = arith.constant dense<0.000000e+00> : vector<8x128xf32>
    %553 = vector.multi_reduction <add>, %552, %cst_185 [0] : vector<8x8x128xf32> to vector<8x128xf32>
    %554 = math.tanh %553 : vector<8x128xf32>
    %c0_186 = arith.constant 0 : index
    %c0_187 = arith.constant 0 : index
    %555 = vector.load %arg8[%c0_186, %c0_187] : memref<128x128xf32, #tpu.memory_space<vmem>>, vector<128x128xf32>
    %cst_188 = arith.constant dense<0.000000e+00> : vector<8x128xf32>
    %556 = tpu.matmul %551, %555, %cst_188 {dimension_numbers = #tpu.dot_dimension_numbers<[1], [0], [0], [1], [0, 0, 1, 1], [], []>} : vector<8x128xf32>, vector<128x128xf32>, vector<8x128xf32> -> vector<8x128xf32>
    %c0_189 = arith.constant 0 : index
    %c0_190 = arith.constant 0 : index
    %557 = vector.load %arg9[%c0_189, %c0_190] : memref<128x128xf32, #tpu.memory_space<vmem>>, vector<128x128xf32>
    %cst_191 = arith.constant dense<0.000000e+00> : vector<8x128xf32>
    %558 = tpu.matmul %554, %557, %cst_191 {dimension_numbers = #tpu.dot_dimension_numbers<[1], [0], [0], [1], [0, 0, 1, 1], [], []>} : vector<8x128xf32>, vector<128x128xf32>, vector<8x128xf32> -> vector<8x128xf32>
    %559 = arith.addf %556, %558 : vector<8x128xf32>
    %c0_192 = arith.constant 0 : index
    %c0_193 = arith.constant 0 : index
    %560 = vector.load %arg10[%c0_192, %c0_193] : memref<1x128xf32, #tpu.memory_space<vmem>>, vector<1x128xf32>
    %561 = vector.broadcast %560 : vector<1x128xf32> to vector<8x128xf32>
    %562 = arith.addf %559, %561 : vector<8x128xf32>
    %c0_194 = arith.constant 0 : index
    %c0_195 = arith.constant 0 : index
    %563 = vector.load %arg11[%c0_194, %c0_195] : memref<8x128xf32, #tpu.memory_space<vmem>>, vector<8x128xf32>
    tpu.vector_store %arg11[%c0_194, %c0_195], %562 {strides = array<i32>} : memref<8x128xf32, #tpu.memory_space<vmem>>, vector<8x128xf32>,
    return
  }
  func.func @transform_0(%arg0: i32) -> (i32, i32, i32) {
    %c0_i32 = arith.constant 0 : i32
    %c0_i32_0 = arith.constant 0 : i32
    %c0_i32_1 = arith.constant 0 : i32
    return %c0_i32, %arg0, %c0_i32_0 : i32, i32, i32
  }
  func.func @transform_1(%arg0: i32) -> (i32, i32) {
    %c0_i32 = arith.constant 0 : i32
    %c0_i32_0 = arith.constant 0 : i32
    %c0_i32_1 = arith.constant 0 : i32
    return %c0_i32, %c0_i32_0 : i32, i32
  }
  func.func @transform_2(%arg0: i32) -> (i32, i32) {
    %c0_i32 = arith.constant 0 : i32
    %c0_i32_0 = arith.constant 0 : i32
    %c0_i32_1 = arith.constant 0 : i32
    return %c0_i32, %c0_i32_0 : i32, i32
  }
  func.func @transform_3(%arg0: i32) -> (i32, i32) {
    %c0_i32 = arith.constant 0 : i32
    %c0_i32_0 = arith.constant 0 : i32
    %c0_i32_1 = arith.constant 0 : i32
    return %c0_i32, %c0_i32_0 : i32, i32
  }
  func.func @transform_4(%arg0: i32) -> (i32, i32) {
    %c0_i32 = arith.constant 0 : i32
    %c0_i32_0 = arith.constant 0 : i32
    %c0_i32_1 = arith.constant 0 : i32
    return %c0_i32, %c0_i32_0 : i32, i32
  }
  func.func @transform_5(%arg0: i32) -> (i32, i32) {
    %c0_i32 = arith.constant 0 : i32
    %c0_i32_0 = arith.constant 0 : i32
    %c0_i32_1 = arith.constant 0 : i32
    return %c0_i32, %c0_i32_0 : i32, i32
  }
  func.func @transform_6(%arg0: i32) -> (i32, i32) {
    %c0_i32 = arith.constant 0 : i32
    %c0_i32_0 = arith.constant 0 : i32
    %c0_i32_1 = arith.constant 0 : i32
    return %c0_i32, %c0_i32_0 : i32, i32
  }
  func.func @transform_7(%arg0: i32) -> (i32, i32) {
    %c0_i32 = arith.constant 0 : i32
    %c0_i32_0 = arith.constant 0 : i32
    %c0_i32_1 = arith.constant 0 : i32
    return %c0_i32, %c0_i32_0 : i32, i32
  }
  func.func @transform_8(%arg0: i32) -> (i32, i32) {
    %c0_i32 = arith.constant 0 : i32
    %c0_i32_0 = arith.constant 0 : i32
    %c0_i32_1 = arith.constant 0 : i32
    return %c0_i32, %c0_i32_0 : i32, i32
  }
  func.func @transform_9(%arg0: i32) -> (i32, i32) {
    %c0_i32 = arith.constant 0 : i32
    %c0_i32_0 = arith.constant 0 : i32
    %c0_i32_1 = arith.constant 0 : i32
    return %c0_i32, %c0_i32_0 : i32, i32
  }
  func.func @transform_10(%arg0: i32) -> (i32, i32) {
    %c0_i32 = arith.constant 0 : i32
    %c0_i32_0 = arith.constant 0 : i32
    return %arg0, %c0_i32 : i32, i32
  }
}

</mosaic_0001>

<llo_original>
// kernel: tpu_custom_call.1
$region0: #{tpu_custom_call.1}
  #allocation0 [shape = 'u32[]', space=smem, size = 0x4, offset = 0x4, fixed_abs, tag = 'smem constant byte address 0x4 - core index']
  #allocation1 [shape = 'u32[144,128]{1,0:T(1,128)}', space=vmem, size = 0x12000, scoped, tag = 'internal scratch']
  #allocation2 [shape = 'f32[8,8,512]{2,1,0:T(8,128)}', space=vmem, size = 0x20000, scoped, tag = 'scratch operand']
  #allocation3 [shape = 'f32[8,8,512]{2,1,0:T(8,128)}', space=vmem, size = 0x20000, scoped, tag = 'scratch operand']
  #allocation4 [shape = 'f32[8,8,128]{2,1,0:T(8,128)}', space=vmem, size = 0x8000, scoped, tag = 'scratch operand']
  #allocation5 [shape = 'f32[8,8,128]{2,1,0:T(8,128)}', space=vmem, size = 0x8000, scoped, tag = 'scratch operand']
  %s0 = inlined_call_operand.hbm [shape: f32[8,8,128], index: 0, kind: input, shape index: {}]
  %s1 = inlined_call_operand.hbm [shape: f32[128,1024], index: 1, kind: input, shape index: {}]
  %s2 = inlined_call_operand.hbm [shape: f32[1,1024], index: 2, kind: input, shape index: {}]
  %s3 = inlined_call_operand.hbm [shape: f32[128,512], index: 3, kind: input, shape index: {}]
  %s4 = inlined_call_operand.hbm [shape: f32[128,512], index: 4, kind: input, shape index: {}]
  %s5 = inlined_call_operand.hbm [shape: f32[128,128], index: 5, kind: input, shape index: {}]
  %s6 = inlined_call_operand.hbm [shape: f32[128,128], index: 6, kind: input, shape index: {}]
  %s7 = inlined_call_operand.hbm [shape: f32[128,128], index: 7, kind: input, shape index: {}]
  %s8 = inlined_call_operand.hbm [shape: f32[128,128], index: 8, kind: input, shape index: {}]
  %s9 = inlined_call_operand.vmem [shape: f32[1,128], index: 9, kind: input, shape index: {}]
  %s10 = inlined_call_operand.hbm [shape: f32[8,128], index: 10, kind: output, shape index: {}]
  %s11 = sld [smem:[#allocation0]]
  $region86: #{tpu_custom_call.1} parent=0
    _
  %s13 = ssub.s32 1, %s11
  %s14 = scalar_select 0, %s13, %s11
  $region1: #{tpu_custom_call.1} parent=0
    #allocation6 [shape = 'u8[32768]{0}', space=vmem, size = 0x8000, scoped, tag = 'input window, operand 0, single buffered']
    #allocation7 [shape = 's32[1]{0}', space=sflag, size = 0x4, scoped, tag = 'scoped memory for tpu_custom_call.1']
    #allocation8 [shape = 's32[1]{0}', space=sflag, size = 0x4, scoped, tag = 'scoped memory for tpu_custom_call.1']
    #allocation9 [shape = 'u8[524288]{0}', space=vmem, size = 0x80000, scoped, tag = 'input window, operand 1, single buffered']
    #allocation10 [shape = 's32[1]{0}', space=sflag, size = 0x4, scoped, tag = 'scoped memory for tpu_custom_call.1']
    #allocation11 [shape = 'u8[4096]{0}', space=vmem, size = 0x1000, scoped, tag = 'input window, operand 2, single buffered']
    #allocation12 [shape = 'u8[262144]{0}', space=vmem, size = 0x40000, scoped, tag = 'input window, operand 3, single buffered']
    #allocation13 [shape = 's32[1]{0}', space=sflag, size = 0x4, scoped, tag = 'scoped memory for tpu_custom_call.1']
    #allocation14 [shape = 'u8[262144]{0}', space=vmem, size = 0x40000, scoped, tag = 'input window, operand 4, single buffered']
    #allocation15 [shape = 'u8[65536]{0}', space=vmem, size = 0x10000, scoped, tag = 'input window, operand 5, single buffered']
    #allocation16 [shape = 's32[1]{0}', space=sflag, size = 0x4, scoped, tag = 'scoped memory for tpu_custom_call.1']
    #allocation17 [shape = 'u8[65536]{0}', space=vmem, size = 0x10000, scoped, tag = 'input window, operand 6, single buffered']
    #allocation18 [shape = 'u8[65536]{0}', space=vmem, size = 0x10000, scoped, tag = 'input window, operand 7, single buffered']
    #allocation19 [shape = 's32[1]{0}', space=sflag, size = 0x4, scoped, tag = 'scoped memory for tpu_custom_call.1']
    #allocation20 [shape = 'u8[65536]{0}', space=vmem, size = 0x10000, scoped, tag = 'input window, operand 8, single buffered']
    #allocation21 [shape = 'u8[4096]{0}', space=vmem, size = 0x1000, scoped, tag = 'output window, operand 0, single buffered']
    %15 = vsyncpa [#allocation7], 0
    %16 = vsyncpa [#allocation10], 0
    %17 = vsyncpa [#allocation13], 0
    %18 = vsyncpa [#allocation16], 0
    %19 = vsyncpa [#allocation19], 0
    %20 = vsyncpa [#allocation8], 0
    // Predicated region
    $region2: #{tpu_custom_call.1} parent=1 // pred_check
      _
    $region3: #{tpu_custom_call.1} parent=1 // pred_check_branch
      %22 = sbr.rel (0) target = $region5
    $region4: #{tpu_custom_call.1} parent=1 // pred_region
      %s24 = ssub.s32 1024, 1024
      %25 = vsyncadd [#allocation7], %s24
      %s26 = sshll.u32 [#allocation6], 4
      %s27 = int_to_ptr.vmem [resolvable:$true] %s26
      %32 = dma.hbm_to_vmem [thread:$0]  %s0, 1024, %s27, [#allocation7], 128, 128, 8
    $region5: #{tpu_custom_call.1} parent=1 // pred_fallthru
      _
    // Predicated region
    $region6: #{tpu_custom_call.1} parent=1 // pred_check
      _
    $region7: #{tpu_custom_call.1} parent=1 // pred_check_branch
      %34 = sbr.rel (0) target = $region9
    $region8: #{tpu_custom_call.1} parent=1 // pred_region
      %s36 = ssub.s32 16384, 16384
      %37 = vsyncadd [#allocation10], %s36
      %s38 = sshll.u32 [#allocation9], 4
      %s39 = int_to_ptr.vmem [resolvable:$true] %s38
      %44 = dma.hbm_to_vmem [thread:$0]  %s1, 16384, %s39, [#allocation10], 1024, 1024, 64
    $region9: #{tpu_custom_call.1} parent=1 // pred_fallthru
      _
    // Predicated region
    $region10: #{tpu_custom_call.1} parent=1 // pred_check
      _
    $region11: #{tpu_custom_call.1} parent=1 // pred_check_branch
      %46 = sbr.rel (0) target = $region13
    $region12: #{tpu_custom_call.1} parent=1 // pred_region
      %s48 = ssub.s32 128, 128
      %49 = vsyncadd [#allocation10], %s48
      %s51 = sshll.u32 [#allocation11], 4
      %s52 = int_to_ptr.vmem [resolvable:$true] %s51
      %54 = dma.hbm_to_vmem [thread:$0]  %s2, 128, %s52, [#allocation10]
    $region13: #{tpu_custom_call.1} parent=1 // pred_fallthru
      _
    // Predicated region
    $region14: #{tpu_custom_call.1} parent=1 // pred_check
      _
    $region15: #{tpu_custom_call.1} parent=1 // pred_check_branch
      %56 = sbr.rel (0) target = $region17
    $region16: #{tpu_custom_call.1} parent=1 // pred_region
      %s58 = ssub.s32 8192, 8192
      %59 = vsyncadd [#allocation13], %s58
      %s60 = sshll.u32 [#allocation12], 4
      %s61 = int_to_ptr.vmem [resolvable:$true] %s60
      %66 = dma.hbm_to_vmem [thread:$0]  %s3, 8192, %s61, [#allocation13], 512, 512, 32
    $region17: #{tpu_custom_call.1} parent=1 // pred_fallthru
      _
    // Predicated region
    $region18: #{tpu_custom_call.1} parent=1 // pred_check
      _
    $region19: #{tpu_custom_call.1} parent=1 // pred_check_branch
      %68 = sbr.rel (0) target = $region21
    $region20: #{tpu_custom_call.1} parent=1 // pred_region
      %s70 = ssub.s32 8192, 8192
      %71 = vsyncadd [#allocation13], %s70
      %s72 = sshll.u32 [#allocation14], 4
      %s73 = int_to_ptr.vmem [resolvable:$true] %s72
      %78 = dma.hbm_to_vmem [thread:$0]  %s4, 8192, %s73, [#allocation13], 512, 512, 32
    $region21: #{tpu_custom_call.1} parent=1 // pred_fallthru
      _
    // Predicated region
    $region22: #{tpu_custom_call.1} parent=1 // pred_check
      _
    $region23: #{tpu_custom_call.1} parent=1 // pred_check_branch
      %80 = sbr.rel (0) target = $region25
    $region24: #{tpu_custom_call.1} parent=1 // pred_region
      %s82 = ssub.s32 2048, 2048
      %83 = vsyncadd [#allocation16], %s82
      %s84 = sshll.u32 [#allocation15], 4
      %s85 = int_to_ptr.vmem [resolvable:$true] %s84
      %90 = dma.hbm_to_vmem [thread:$0]  %s5, 2048, %s85, [#allocation16], 128, 128, 8
    $region25: #{tpu_custom_call.1} parent=1 // pred_fallthru
      _
    // Predicated region
    $region26: #{tpu_custom_call.1} parent=1 // pred_check
      _
    $region27: #{tpu_custom_call.1} parent=1 // pred_check_branch
      %92 = sbr.rel (0) target = $region29
    $region28: #{tpu_custom_call.1} parent=1 // pred_region
      %s94 = ssub.s32 2048, 2048
      %95 = vsyncadd [#allocation16], %s94
      %s96 = sshll.u32 [#allocation17], 4
      %s97 = int_to_ptr.vmem [resolvable:$true] %s96
      %102 = dma.hbm_to_vmem [thread:$0]  %s6, 2048, %s97, [#allocation16], 128, 128, 8
    $region29: #{tpu_custom_call.1} parent=1 // pred_fallthru
      _
    // Predicated region
    $region30: #{tpu_custom_call.1} parent=1 // pred_check
      _
    $region31: #{tpu_custom_call.1} parent=1 // pred_check_branch
      %104 = sbr.rel (0) target = $region33
    $region32: #{tpu_custom_call.1} parent=1 // pred_region
      %s106 = ssub.s32 2048, 2048
      %107 = vsyncadd [#allocation19], %s106
      %s108 = sshll.u32 [#allocation18], 4
      %s109 = int_to_ptr.vmem [resolvable:$true] %s108
      %114 = dma.hbm_to_vmem [thread:$0]  %s7, 2048, %s109, [#allocation19], 128, 128, 8
    $region33: #{tpu_custom_call.1} parent=1 // pred_fallthru
      _
    // Predicated region
    $region34: #{tpu_custom_call.1} parent=1 // pred_check
      _
    $region35: #{tpu_custom_call.1} parent=1 // pred_check_branch
      %116 = sbr.rel (0) target = $region37
    $region36: #{tpu_custom_call.1} parent=1 // pred_region
      %s118 = ssub.s32 2048, 2048
      %119 = vsyncadd [#allocation19], %s118
      %s120 = sshll.u32 [#allocation20], 4
      %s121 = int_to_ptr.vmem [resolvable:$true] %s120
      %126 = dma.hbm_to_vmem [thread:$0]  %s8, 2048, %s121, [#allocation19], 128, 128, 8
    $region37: #{tpu_custom_call.1} parent=1 // pred_fallthru
      _
    // Predicated region
    $region38: #{tpu_custom_call.1} parent=1 // pred_check
      _
    $region39: #{tpu_custom_call.1} parent=1 // pred_check_branch
      %128 = sbr.rel (0) target = $region41
    $region40: #{tpu_custom_call.1} parent=1 // pred_region
      _
    $region41: #{tpu_custom_call.1} parent=1 // pred_fallthru
      _
    // Predicated region
    $region42: #{tpu_custom_call.1} parent=1 // pred_check
      _
    $region43: #{tpu_custom_call.1} parent=1 // pred_check_branch
      %130 = sbr.rel (0) target = $region45
    $region44: #{tpu_custom_call.1} parent=1 // pred_region
      %131 = dma.done [#allocation7], 1024
    $region45: #{tpu_custom_call.1} parent=1 // pred_fallthru
      _
    // Predicated region
    $region46: #{tpu_custom_call.1} parent=1 // pred_check
      _
    $region47: #{tpu_custom_call.1} parent=1 // pred_check_branch
      %133 = sbr.rel (0) target = $region49
    $region48: #{tpu_custom_call.1} parent=1 // pred_region
      %134 = dma.done [#allocation10], 16384
    $region49: #{tpu_custom_call.1} parent=1 // pred_fallthru
      _
    // Predicated region
    $region50: #{tpu_custom_call.1} parent=1 // pred_check
      _
    $region51: #{tpu_custom_call.1} parent=1 // pred_check_branch
      %136 = sbr.rel (0) target = $region53
    $region52: #{tpu_custom_call.1} parent=1 // pred_region
      %137 = dma.done [#allocation10], 128
    $region53: #{tpu_custom_call.1} parent=1 // pred_fallthru
      _
    // Predicated region
    $region54: #{tpu_custom_call.1} parent=1 // pred_check
      _
    $region55: #{tpu_custom_call.1} parent=1 // pred_check_branch
      %139 = sbr.rel (0) target = $region57
    $region56: #{tpu_custom_call.1} parent=1 // pred_region
      %140 = dma.done [#allocation13], 8192
    $region57: #{tpu_custom_call.1} parent=1 // pred_fallthru
      _
    // Predicated region
    $region58: #{tpu_custom_call.1} parent=1 // pred_check
      _
    $region59: #{tpu_custom_call.1} parent=1 // pred_check_branch
      %142 = sbr.rel (0) target = $region61
    $region60: #{tpu_custom_call.1} parent=1 // pred_region
      %143 = dma.done [#allocation13], 8192
    $region61: #{tpu_custom_call.1} parent=1 // pred_fallthru
      _
    // Predicated region
    $region62: #{tpu_custom_call.1} parent=1 // pred_check
      _
    $region63: #{tpu_custom_call.1} parent=1 // pred_check_branch
      %145 = sbr.rel (0) target = $region65
    $region64: #{tpu_custom_call.1} parent=1 // pred_region
      %146 = dma.done [#allocation16], 2048
    $region65: #{tpu_custom_call.1} parent=1 // pred_fallthru
      _
    // Predicated region
    $region66: #{tpu_custom_call.1} parent=1 // pred_check
      _
    $region67: #{tpu_custom_call.1} parent=1 // pred_check_branch
      %148 = sbr.rel (0) target = $region69
    $region68: #{tpu_custom_call.1} parent=1 // pred_region
      %149 = dma.done [#allocation16], 2048
    $region69: #{tpu_custom_call.1} parent=1 // pred_fallthru
      _
    // Predicated region
    $region70: #{tpu_custom_call.1} parent=1 // pred_check
      _
    $region71: #{tpu_custom_call.1} parent=1 // pred_check_branch
      %151 = sbr.rel (0) target = $region73
    $region72: #{tpu_custom_call.1} parent=1 // pred_region
      %152 = dma.done [#allocation19], 2048
    $region73: #{tpu_custom_call.1} parent=1 // pred_fallthru
      _
    // Predicated region
    $region74: #{tpu_custom_call.1} parent=1 // pred_check
      _
    $region75: #{tpu_custom_call.1} parent=1 // pred_check_branch
      %154 = sbr.rel (0) target = $region77
    $region76: #{tpu_custom_call.1} parent=1 // pred_region
      %155 = dma.done [#allocation19], 2048
    $region77: #{tpu_custom_call.1} parent=1 // pred_fallthru
      _
    %v156 = vld [vmem:[#allocation6] sm:$0xff]
    %v157 = vld [vmem:[#allocation6 + $0x8] sm:$0xff]
    %v158 = vld [vmem:[#allocation6 + $0x10] sm:$0xff]
    %v159 = vld [vmem:[#allocation6 + $0x18] sm:$0xff]
    %v160 = vld [vmem:[#allocation6 + $0x20] sm:$0xff]
    %v161 = vld [vmem:[#allocation6 + $0x28] sm:$0xff]
    %v162 = vld [vmem:[#allocation6 + $0x30] sm:$0xff]
    %v163 = vld [vmem:[#allocation6 + $0x38] sm:$0xff]
    %v164 = vld [vmem:[#allocation9] sm:$0xff]
    %v165 = vld [vmem:[#allocation9 + $0x8] sm:$0xff]
    %v166 = vld [vmem:[#allocation9 + $0x10] sm:$0xff]
    %v167 = vld [vmem:[#allocation9 + $0x18] sm:$0xff]
    %v168 = vld [vmem:[#allocation9 + $0x20] sm:$0xff]
    %v169 = vld [vmem:[#allocation9 + $0x28] sm:$0xff]
    %v170 = vld [vmem:[#allocation9 + $0x30] sm:$0xff]
    %v171 = vld [vmem:[#allocation9 + $0x38] sm:$0xff]
    %v172 = vld [vmem:[#allocation9 + $0x40] sm:$0xff]
    %v173 = vld [vmem:[#allocation9 + $0x48] sm:$0xff]
    %v174 = vld [vmem:[#allocation9 + $0x50] sm:$0xff]
    %v175 = vld [vmem:[#allocation9 + $0x58] sm:$0xff]
    %v176 = vld [vmem:[#allocation9 + $0x60] sm:$0xff]
    %v177 = vld [vmem:[#allocation9 + $0x68] sm:$0xff]
    %v178 = vld [vmem:[#allocation9 + $0x70] sm:$0xff]
    %v179 = vld [vmem:[#allocation9 + $0x78] sm:$0xff]
    %v180 = vld [vmem:[#allocation9 + $0x80] sm:$0xff]
    %v181 = vld [vmem:[#allocation9 + $0x88] sm:$0xff]
    %v182 = vld [vmem:[#allocation9 + $0x90] sm:$0xff]
    %v183 = vld [vmem:[#allocation9 + $0x98] sm:$0xff]
    %v184 = vld [vmem:[#allocation9 + $0xa0] sm:$0xff]
    %v185 = vld [vmem:[#allocation9 + $0xa8] sm:$0xff]
    %v186 = vld [vmem:[#allocation9 + $0xb0] sm:$0xff]
    %v187 = vld [vmem:[#allocation9 + $0xb8] sm:$0xff]
    %v188 = vld [vmem:[#allocation9 + $0xc0] sm:$0xff]
    %v189 = vld [vmem:[#allocation9 + $0xc8] sm:$0xff]
    %v190 = vld [vmem:[#allocation9 + $0xd0] sm:$0xff]
    %v191 = vld [vmem:[#allocation9 + $0xd8] sm:$0xff]
    %v192 = vld [vmem:[#allocation9 + $0xe0] sm:$0xff]
    %v193 = vld [vmem:[#allocation9 + $0xe8] sm:$0xff]
    %v194 = vld [vmem:[#allocation9 + $0xf0] sm:$0xff]
    %v195 = vld [vmem:[#allocation9 + $0xf8] sm:$0xff]
    %v196 = vld [vmem:[#allocation9 + $0x100] sm:$0xff]
    %v197 = vld [vmem:[#allocation9 + $0x108] sm:$0xff]
    %v198 = vld [vmem:[#allocation9 + $0x110] sm:$0xff]
    %v199 = vld [vmem:[#allocation9 + $0x118] sm:$0xff]
    %v200 = vld [vmem:[#allocation9 + $0x120] sm:$0xff]
    %v201 = vld [vmem:[#allocation9 + $0x128] sm:$0xff]
    %v202 = vld [vmem:[#allocation9 + $0x130] sm:$0xff]
    %v203 = vld [vmem:[#allocation9 + $0x138] sm:$0xff]
    %v204 = vld [vmem:[#allocation9 + $0x140] sm:$0xff]
    %v205 = vld [vmem:[#allocation9 + $0x148] sm:$0xff]
    %v206 = vld [vmem:[#allocation9 + $0x150] sm:$0xff]
    %v207 = vld [vmem:[#allocation9 + $0x158] sm:$0xff]
    %v208 = vld [vmem:[#allocation9 + $0x160] sm:$0xff]
    %v209 = vld [vmem:[#allocation9 + $0x168] sm:$0xff]
    %v210 = vld [vmem:[#allocation9 + $0x170] sm:$0xff]
    %v211 = vld [vmem:[#allocation9 + $0x178] sm:$0xff]
    %v212 = vld [vmem:[#allocation9 + $0x180] sm:$0xff]
    %v213 = vld [vmem:[#allocation9 + $0x188] sm:$0xff]
    %v214 = vld [vmem:[#allocation9 + $0x190] sm:$0xff]
    %v215 = vld [vmem:[#allocation9 + $0x198] sm:$0xff]
    %v216 = vld [vmem:[#allocation9 + $0x1a0] sm:$0xff]
    %v217 = vld [vmem:[#allocation9 + $0x1a8] sm:$0xff]
    %v218 = vld [vmem:[#allocation9 + $0x1b0] sm:$0xff]
    %v219 = vld [vmem:[#allocation9 + $0x1b8] sm:$0xff]
    %v220 = vld [vmem:[#allocation9 + $0x1c0] sm:$0xff]
    %v221 = vld [vmem:[#allocation9 + $0x1c8] sm:$0xff]
    %v222 = vld [vmem:[#allocation9 + $0x1d0] sm:$0xff]
    %v223 = vld [vmem:[#allocation9 + $0x1d8] sm:$0xff]
    %v224 = vld [vmem:[#allocation9 + $0x1e0] sm:$0xff]
    %v225 = vld [vmem:[#allocation9 + $0x1e8] sm:$0xff]
    %v226 = vld [vmem:[#allocation9 + $0x1f0] sm:$0xff]
    %v227 = vld [vmem:[#allocation9 + $0x1f8] sm:$0xff]
    %v228 = vld [vmem:[#allocation9 + $0x200] sm:$0xff]
    %v229 = vld [vmem:[#allocation9 + $0x208] sm:$0xff]
    %v230 = vld [vmem:[#allocation9 + $0x210] sm:$0xff]
    %v231 = vld [vmem:[#allocation9 + $0x218] sm:$0xff]
    %v232 = vld [vmem:[#allocation9 + $0x220] sm:$0xff]
    %v233 = vld [vmem:[#allocation9 + $0x228] sm:$0xff]
    %v234 = vld [vmem:[#allocation9 + $0x230] sm:$0xff]
    %v235 = vld [vmem:[#allocation9 + $0x238] sm:$0xff]
    %v236 = vld [vmem:[#allocation9 + $0x240] sm:$0xff]
    %v237 = vld [vmem:[#allocation9 + $0x248] sm:$0xff]
    %v238 = vld [vmem:[#allocation9 + $0x250] sm:$0xff]
    %v239 = vld [vmem:[#allocation9 + $0x258] sm:$0xff]
    %v240 = vld [vmem:[#allocation9 + $0x260] sm:$0xff]
    %v241 = vld [vmem:[#allocation9 + $0x268] sm:$0xff]
    %v242 = vld [vmem:[#allocation9 + $0x270] sm:$0xff]
    %v243 = vld [vmem:[#allocation9 + $0x278] sm:$0xff]
    %v244 = vld [vmem:[#allocation9 + $0x280] sm:$0xff]
    %v245 = vld [vmem:[#allocation9 + $0x288] sm:$0xff]
    %v246 = vld [vmem:[#allocation9 + $0x290] sm:$0xff]
    %v247 = vld [vmem:[#allocation9 + $0x298] sm:$0xff]
    %v248 = vld [vmem:[#allocation9 + $0x2a0] sm:$0xff]
    %v249 = vld [vmem:[#allocation9 + $0x2a8] sm:$0xff]
    %v250 = vld [vmem:[#allocation9 + $0x2b0] sm:$0xff]
    %v251 = vld [vmem:[#allocation9 + $0x2b8] sm:$0xff]
    %v252 = vld [vmem:[#allocation9 + $0x2c0] sm:$0xff]
    %v253 = vld [vmem:[#allocation9 + $0x2c8] sm:$0xff]
    %v254 = vld [vmem:[#allocation9 + $0x2d0] sm:$0xff]
    %v255 = vld [vmem:[#allocation9 + $0x2d8] sm:$0xff]
    %v256 = vld [vmem:[#allocation9 + $0x2e0] sm:$0xff]
    %v257 = vld [vmem:[#allocation9 + $0x2e8] sm:$0xff]
    %v258 = vld [vmem:[#allocation9 + $0x2f0] sm:$0xff]
    %v259 = vld [vmem:[#allocation9 + $0x2f8] sm:$0xff]
    %v260 = vld [vmem:[#allocation9 + $0x300] sm:$0xff]
    %v261 = vld [vmem:[#allocation9 + $0x308] sm:$0xff]
    %v262 = vld [vmem:[#allocation9 + $0x310] sm:$0xff]
    %v263 = vld [vmem:[#allocation9 + $0x318] sm:$0xff]
    %v264 = vld [vmem:[#allocation9 + $0x320] sm:$0xff]
    %v265 = vld [vmem:[#allocation9 + $0x328] sm:$0xff]
    %v266 = vld [vmem:[#allocation9 + $0x330] sm:$0xff]
    %v267 = vld [vmem:[#allocation9 + $0x338] sm:$0xff]
    %v268 = vld [vmem:[#allocation9 + $0x340] sm:$0xff]
    %v269 = vld [vmem:[#allocation9 + $0x348] sm:$0xff]
    %v270 = vld [vmem:[#allocation9 + $0x350] sm:$0xff]
    %v271 = vld [vmem:[#allocation9 + $0x358] sm:$0xff]
    %v272 = vld [vmem:[#allocation9 + $0x360] sm:$0xff]
    %v273 = vld [vmem:[#allocation9 + $0x368] sm:$0xff]
    %v274 = vld [vmem:[#allocation9 + $0x370] sm:$0xff]
    %v275 = vld [vmem:[#allocation9 + $0x378] sm:$0xff]
    %v276 = vld [vmem:[#allocation9 + $0x380] sm:$0xff]
    %v277 = vld [vmem:[#allocation9 + $0x388] sm:$0xff]
    %v278 = vld [vmem:[#allocation9 + $0x390] sm:$0xff]
    %v279 = vld [vmem:[#allocation9 + $0x398] sm:$0xff]
    %v280 = vld [vmem:[#allocation9 + $0x3a0] sm:$0xff]
    %v281 = vld [vmem:[#allocation9 + $0x3a8] sm:$0xff]
    %v282 = vld [vmem:[#allocation9 + $0x3b0] sm:$0xff]
    %v283 = vld [vmem:[#allocation9 + $0x3b8] sm:$0xff]
    %v284 = vld [vmem:[#allocation9 + $0x3c0] sm:$0xff]
    %v285 = vld [vmem:[#allocation9 + $0x3c8] sm:$0xff]
    %v286 = vld [vmem:[#allocation9 + $0x3d0] sm:$0xff]
    %v287 = vld [vmem:[#allocation9 + $0x3d8] sm:$0xff]
    %v288 = vld [vmem:[#allocation9 + $0x3e0] sm:$0xff]
    %v289 = vld [vmem:[#allocation9 + $0x3e8] sm:$0xff]
    %v290 = vld [vmem:[#allocation9 + $0x3f0] sm:$0xff]
    %v291 = vld [vmem:[#allocation9 + $0x3f8] sm:$0xff]
    %v292 = vld [vmem:[#allocation11] sm:$0xff]
    %v294 = vlaneseq
    %v295 = vshrl.u32 %v294, 7
    %v296 = vsub.s32 0, %v295
    %v297 = vrot.slane %v292, %v296
    %v298 = vlaneseq
    %v299 = vshrl.u32 %v298, 7
    %v300 = vsub.s32 1, %v299
    %v301 = vrot.slane %v292, %v300
    %v302 = vlaneseq
    %v303 = vshrl.u32 %v302, 7
    %v304 = vsub.s32 2, %v303
    %v305 = vrot.slane %v292, %v304
    %v306 = vlaneseq
    %v307 = vshrl.u32 %v306, 7
    %v308 = vsub.s32 3, %v307
    %v309 = vrot.slane %v292, %v308
    %v310 = vlaneseq
    %v311 = vshrl.u32 %v310, 7
    %v312 = vsub.s32 4, %v311
    %v313 = vrot.slane %v292, %v312
    %v314 = vlaneseq
    %v315 = vshrl.u32 %v314, 7
    %v316 = vsub.s32 5, %v315
    %v317 = vrot.slane %v292, %v316
    %v318 = vlaneseq
    %v319 = vshrl.u32 %v318, 7
    %v320 = vsub.s32 6, %v319
    %v321 = vrot.slane %v292, %v320
    %v322 = vlaneseq
    %v323 = vshrl.u32 %v322, 7
    %v324 = vsub.s32 7, %v323
    %v325 = vrot.slane %v292, %v324
    %334 = vmatprep.subr.mxu0 %v165
    %335 = vmatpush1.msra.mxu0 %v164
    %336 = vmatprep.subr.mxu0 %v173
    %337 = vmatpush1.msra.mxu0 %v172
    %338 = vmatprep.subr.mxu0 %v181
    %339 = vmatpush1.msra.mxu0 %v180
    %340 = vmatprep.subr.mxu0 %v189
    %341 = vmatpush1.msra.mxu0 %v188
    %342 = vmatprep.subr.mxu0 %v197
    %343 = vmatpush1.msra.mxu0 %v196
    %344 = vmatprep.subr.mxu0 %v205
    %345 = vmatpush1.msra.mxu0 %v204
    %346 = vmatprep.subr.mxu0 %v213
    %347 = vmatpush1.msra.mxu0 %v212
    %348 = vmatprep.subr.mxu0 %v221
    %349 = vmatpush1.msra.mxu0 %v220
    %350 = vmatprep.subr.mxu0 %v229
    %351 = vmatpush1.msra.mxu0 %v228
    %352 = vmatprep.subr.mxu0 %v237
    %353 = vmatpush1.msra.mxu0 %v236
    %354 = vmatprep.subr.mxu0 %v245
    %355 = vmatpush1.msra.mxu0 %v244
    %356 = vmatprep.subr.mxu0 %v253
    %357 = vmatpush1.msra.mxu0 %v252
    %358 = vmatprep.subr.mxu0 %v261
    %359 = vmatpush1.msra.mxu0 %v260
    %360 = vmatprep.subr.mxu0 %v269
    %361 = vmatpush1.msra.mxu0 %v268
    %362 = vmatprep.subr.mxu0 %v277
    %363 = vmatpush1.msra.mxu0 %v276
    %364 = vmatprep.subr.mxu0 %v285
    %365 = vmatpush1.msra.mxu0 %v284
    %366 = vmatprep.subr.mxu0 0.0
    %367 = vmatpush1.msra.mxu0 0.0
    %368 = vmatprep.subr.mxu0 0.0
    %369 = vmatpush1.msra.mxu0 0.0
    %370 = vmatprep.subr.mxu0 0.0
    %371 = vmatpush1.msra.mxu0 0.0
    %372 = vmatprep.subr.mxu0 0.0
    %373 = vmatpush1.msra.mxu0 0.0
    %374 = vmatprep.subr.mxu0 0.0
    %375 = vmatpush1.msra.mxu0 0.0
    %376 = vmatprep.subr.mxu0 0.0
    %377 = vmatpush1.msra.mxu0 0.0
    %378 = vmatprep.subr.mxu0 0.0
    %379 = vmatpush1.msra.mxu0 0.0
    %380 = vmatprep.subr.mxu0 0.0
    %381 = vmatpush1.msra.mxu0 0.0
    %382 = vmatprep.subr.mxu0 0.0
    %383 = vmatpush1.msra.mxu0 0.0
    %384 = vmatprep.subr.mxu0 0.0
    %385 = vmatpush1.msra.mxu0 0.0
    %386 = vmatprep.subr.mxu0 0.0
    %387 = vmatpush1.msra.mxu0 0.0
    %388 = vmatprep.subr.mxu0 0.0
    %389 = vmatpush1.msra.mxu0 0.0
    %390 = vmatprep.subr.mxu0 0.0
    %391 = vmatpush1.msra.mxu0 0.0
    %392 = vmatprep.subr.mxu0 0.0
    %393 = vmatpush1.msra.mxu0 0.0
    %394 = vmatprep.subr.mxu0 0.0
    %395 = vmatpush1.msra.mxu0 0.0
    %396 = vmatprep.subr.mxu0 0.0
    %397 = vmatpush1.msra.mxu0 0.0
    %398 = vmatprep.mubr.f32.mxu0 0.0
    %399 = vmatmul.mubr.f32.gmra.mrb[0].mxu0 %v156
    %v400 = vpop.f32.mrb[0].mxu0
    %v401 = vadd.f32 %v297, %v400
    %v402 = vpop.f32.mrb[0].mxu0
    %v403 = vadd.f32 %v301, %v402
    %404 = vmatprep.mubr.f32.mxu0 0.0
    %405 = vmatmul.mubr.f32.gmra.mrb[0].mxu0 %v157
    %v406 = vpop.f32.mrb[0].mxu0
    %v407 = vadd.f32 %v297, %v406
    %v408 = vpop.f32.mrb[0].mxu0
    %v409 = vadd.f32 %v301, %v408
    %410 = vmatprep.mubr.f32.mxu0 0.0
    %411 = vmatmul.mubr.f32.gmra.mrb[0].mxu0 %v158
    %v412 = vpop.f32.mrb[0].mxu0
    %v413 = vadd.f32 %v297, %v412
    %v414 = vpop.f32.mrb[0].mxu0
    %v415 = vadd.f32 %v301, %v414
    %416 = vmatprep.mubr.f32.mxu0 0.0
    %417 = vmatmul.mubr.f32.gmra.mrb[0].mxu0 %v159
    %v418 = vpop.f32.mrb[0].mxu0
    %v419 = vadd.f32 %v297, %v418
    %v420 = vpop.f32.mrb[0].mxu0
    %v421 = vadd.f32 %v301, %v420
    %422 = vmatprep.mubr.f32.mxu0 0.0
    %423 = vmatmul.mubr.f32.gmra.mrb[0].mxu0 %v160
    %v424 = vpop.f32.mrb[0].mxu0
    %v425 = vadd.f32 %v297, %v424
    %v426 = vpop.f32.mrb[0].mxu0
    %v427 = vadd.f32 %v301, %v426
    %428 = vmatprep.mubr.f32.mxu0 0.0
    %429 = vmatmul.mubr.f32.gmra.mrb[0].mxu0 %v161
    %v430 = vpop.f32.mrb[0].mxu0
    %v431 = vadd.f32 %v297, %v430
    %v432 = vpop.f32.mrb[0].mxu0
    %v433 = vadd.f32 %v301, %v432
    %434 = vmatprep.mubr.f32.mxu0 0.0
    %435 = vmatmul.mubr.f32.gmra.mrb[0].mxu0 %v162
    %v436 = vpop.f32.mrb[0].mxu0
    %v437 = vadd.f32 %v297, %v436
    %v438 = vpop.f32.mrb[0].mxu0
    %v439 = vadd.f32 %v301, %v438
    %440 = vmatprep.mubr.f32.mxu0 0.0
    %441 = vmatmul.mubr.f32.gmra.mrb[0].mxu0 %v163
    %v442 = vpop.f32.mrb[0].mxu0
    %v443 = vadd.f32 %v297, %v442
    %v444 = vpop.f32.mrb[0].mxu0
    %v445 = vadd.f32 %v301, %v444
    %446 = vdwg.mxu0
    %447 = vmatprep.subr.mxu0 %v167
    %448 = vmatpush1.msra.mxu0 %v166
    %449 = vmatprep.subr.mxu0 %v175
    %450 = vmatpush1.msra.mxu0 %v174
    %451 = vmatprep.subr.mxu0 %v183
    %452 = vmatpush1.msra.mxu0 %v182
    %453 = vmatprep.subr.mxu0 %v191
    %454 = vmatpush1.msra.mxu0 %v190
    %455 = vmatprep.subr.mxu0 %v199
    %456 = vmatpush1.msra.mxu0 %v198
    %457 = vmatprep.subr.mxu0 %v207
    %458 = vmatpush1.msra.mxu0 %v206
    %459 = vmatprep.subr.mxu0 %v215
    %460 = vmatpush1.msra.mxu0 %v214
    %461 = vmatprep.subr.mxu0 %v223
    %462 = vmatpush1.msra.mxu0 %v222
    %463 = vmatprep.subr.mxu0 %v231
    %464 = vmatpush1.msra.mxu0 %v230
    %465 = vmatprep.subr.mxu0 %v239
    %466 = vmatpush1.msra.mxu0 %v238
    %467 = vmatprep.subr.mxu0 %v247
    %468 = vmatpush1.msra.mxu0 %v246
    %469 = vmatprep.subr.mxu0 %v255
    %470 = vmatpush1.msra.mxu0 %v254
    %471 = vmatprep.subr.mxu0 %v263
    %472 = vmatpush1.msra.mxu0 %v262
    %473 = vmatprep.subr.mxu0 %v271
    %474 = vmatpush1.msra.mxu0 %v270
    %475 = vmatprep.subr.mxu0 %v279
    %476 = vmatpush1.msra.mxu0 %v278
    %477 = vmatprep.subr.mxu0 %v287
    %478 = vmatpush1.msra.mxu0 %v286
    %479 = vmatprep.subr.mxu0 0.0
    %480 = vmatpush1.msra.mxu0 0.0
    %481 = vmatprep.subr.mxu0 0.0
    %482 = vmatpush1.msra.mxu0 0.0
    %483 = vmatprep.subr.mxu0 0.0
    %484 = vmatpush1.msra.mxu0 0.0
    %485 = vmatprep.subr.mxu0 0.0
    %486 = vmatpush1.msra.mxu0 0.0
    %487 = vmatprep.subr.mxu0 0.0
    %488 = vmatpush1.msra.mxu0 0.0
    %489 = vmatprep.subr.mxu0 0.0
    %490 = vmatpush1.msra.mxu0 0.0
    %491 = vmatprep.subr.mxu0 0.0
    %492 = vmatpush1.msra.mxu0 0.0
    %493 = vmatprep.subr.mxu0 0.0
    %494 = vmatpush1.msra.mxu0 0.0
    %495 = vmatprep.subr.mxu0 0.0
    %496 = vmatpush1.msra.mxu0 0.0
    %497 = vmatprep.subr.mxu0 0.0
    %498 = vmatpush1.msra.mxu0 0.0
    %499 = vmatprep.subr.mxu0 0.0
    %500 = vmatpush1.msra.mxu0 0.0
    %501 = vmatprep.subr.mxu0 0.0
    %502 = vmatpush1.msra.mxu0 0.0
    %503 = vmatprep.subr.mxu0 0.0
    %504 = vmatpush1.msra.mxu0 0.0
    %505 = vmatprep.subr.mxu0 0.0
    %506 = vmatpush1.msra.mxu0 0.0
    %507 = vmatprep.subr.mxu0 0.0
    %508 = vmatpush1.msra.mxu0 0.0
    %509 = vmatprep.subr.mxu0 0.0
    %510 = vmatpush1.msra.mxu0 0.0
    %511 = vmatprep.mubr.f32.mxu0 0.0
    %512 = vmatmul.mubr.f32.gmra.mrb[0].mxu0 %v156
    %v513 = vpop.f32.mrb[0].mxu0
    %v514 = vadd.f32 %v305, %v513
    %v515 = vpop.f32.mrb[0].mxu0
    %v516 = vadd.f32 %v309, %v515
    %517 = vmatprep.mubr.f32.mxu0 0.0
    %518 = vmatmul.mubr.f32.gmra.mrb[0].mxu0 %v157
    %v519 = vpop.f32.mrb[0].mxu0
    %v520 = vadd.f32 %v305, %v519
    %v521 = vpop.f32.mrb[0].mxu0
    %v522 = vadd.f32 %v309, %v521
    %523 = vmatprep.mubr.f32.mxu0 0.0
    %524 = vmatmul.mubr.f32.gmra.mrb[0].mxu0 %v158
    %v525 = vpop.f32.mrb[0].mxu0
    %v526 = vadd.f32 %v305, %v525
    %v527 = vpop.f32.mrb[0].mxu0
    %v528 = vadd.f32 %v309, %v527
    %529 = vmatprep.mubr.f32.mxu0 0.0
    %530 = vmatmul.mubr.f32.gmra.mrb[0].mxu0 %v159
    %v531 = vpop.f32.mrb[0].mxu0
    %v532 = vadd.f32 %v305, %v531
    %v533 = vpop.f32.mrb[0].mxu0
    %v534 = vadd.f32 %v309, %v533
    %535 = vmatprep.mubr.f32.mxu0 0.0
    %536 = vmatmul.mubr.f32.gmra.mrb[0].mxu0 %v160
    %v537 = vpop.f32.mrb[0].mxu0
    %v538 = vadd.f32 %v305, %v537
    %v539 = vpop.f32.mrb[0].mxu0
    %v540 = vadd.f32 %v309, %v539
    %541 = vmatprep.mubr.f32.mxu0 0.0
    %542 = vmatmul.mubr.f32.gmra.mrb[0].mxu0 %v161
    %v543 = vpop.f32.mrb[0].mxu0
    %v544 = vadd.f32 %v305, %v543
    %v545 = vpop.f32.mrb[0].mxu0
    %v546 = vadd.f32 %v309, %v545
    %547 = vmatprep.mubr.f32.mxu0 0.0
    %548 = vmatmul.mubr.f32.gmra.mrb[0].mxu0 %v162
    %v549 = vpop.f32.mrb[0].mxu0
    %v550 = vadd.f32 %v305, %v549
    %v551 = vpop.f32.mrb[0].mxu0
    %v552 = vadd.f32 %v309, %v551
    %553 = vmatprep.mubr.f32.mxu0 0.0
    %554 = vmatmul.mubr.f32.gmra.mrb[0].mxu0 %v163
    %v555 = vpop.f32.mrb[0].mxu0
    %v556 = vadd.f32 %v305, %v555
    %v557 = vpop.f32.mrb[0].mxu0
    %v558 = vadd.f32 %v309, %v557
    %559 = vdwg.mxu0
    %560 = vmatprep.subr.mxu0 %v169
    %561 = vmatpush1.msra.mxu0 %v168
    %562 = vmatprep.subr.mxu0 %v177
    %563 = vmatpush1.msra.mxu0 %v176
    %564 = vmatprep.subr.mxu0 %v185
    %565 = vmatpush1.msra.mxu0 %v184
    %566 = vmatprep.subr.mxu0 %v193
    %567 = vmatpush1.msra.mxu0 %v192
    %568 = vmatprep.subr.mxu0 %v201
    %569 = vmatpush1.msra.mxu0 %v200
    %570 = vmatprep.subr.mxu0 %v209
    %571 = vmatpush1.msra.mxu0 %v208
    %572 = vmatprep.subr.mxu0 %v217
    %573 = vmatpush1.msra.mxu0 %v216
    %574 = vmatprep.subr.mxu0 %v225
    %575 = vmatpush1.msra.mxu0 %v224
    %576 = vmatprep.subr.mxu0 %v233
    %577 = vmatpush1.msra.mxu0 %v232
    %578 = vmatprep.subr.mxu0 %v241
    %579 = vmatpush1.msra.mxu0 %v240
    %580 = vmatprep.subr.mxu0 %v249
    %581 = vmatpush1.msra.mxu0 %v248
    %582 = vmatprep.subr.mxu0 %v257
    %583 = vmatpush1.msra.mxu0 %v256
    %584 = vmatprep.subr.mxu0 %v265
    %585 = vmatpush1.msra.mxu0 %v264
    %586 = vmatprep.subr.mxu0 %v273
    %587 = vmatpush1.msra.mxu0 %v272
    %588 = vmatprep.subr.mxu0 %v281
    %589 = vmatpush1.msra.mxu0 %v280
    %590 = vmatprep.subr.mxu0 %v289
    %591 = vmatpush1.msra.mxu0 %v288
    %592 = vmatprep.subr.mxu0 0.0
    %593 = vmatpush1.msra.mxu0 0.0
    %594 = vmatprep.subr.mxu0 0.0
    %595 = vmatpush1.msra.mxu0 0.0
    %596 = vmatprep.subr.mxu0 0.0
    %597 = vmatpush1.msra.mxu0 0.0
    %598 = vmatprep.subr.mxu0 0.0
    %599 = vmatpush1.msra.mxu0 0.0
    %600 = vmatprep.subr.mxu0 0.0
    %601 = vmatpush1.msra.mxu0 0.0
    %602 = vmatprep.subr.mxu0 0.0
    %603 = vmatpush1.msra.mxu0 0.0
    %604 = vmatprep.subr.mxu0 0.0
    %605 = vmatpush1.msra.mxu0 0.0
    %606 = vmatprep.subr.mxu0 0.0
    %607 = vmatpush1.msra.mxu0 0.0
    %608 = vmatprep.subr.mxu0 0.0
    %609 = vmatpush1.msra.mxu0 0.0
    %610 = vmatprep.subr.mxu0 0.0
    %611 = vmatpush1.msra.mxu0 0.0
    %612 = vmatprep.subr.mxu0 0.0
    %613 = vmatpush1.msra.mxu0 0.0
    %614 = vmatprep.subr.mxu0 0.0
    %615 = vmatpush1.msra.mxu0 0.0
    %616 = vmatprep.subr.mxu0 0.0
    %617 = vmatpush1.msra.mxu0 0.0
    %618 = vmatprep.subr.mxu0 0.0
    %619 = vmatpush1.msra.mxu0 0.0
    %620 = vmatprep.subr.mxu0 0.0
    %621 = vmatpush1.msra.mxu0 0.0
    %622 = vmatprep.subr.mxu0 0.0
    %623 = vmatpush1.msra.mxu0 0.0
    %624 = vmatprep.mubr.f32.mxu0 0.0
    %625 = vmatmul.mubr.f32.gmra.mrb[0].mxu0 %v156
    %v626 = vpop.f32.mrb[0].mxu0
    %v627 = vadd.f32 %v313, %v626
    %v628 = vpop.f32.mrb[0].mxu0
    %v629 = vadd.f32 %v317, %v628
    %630 = vmatprep.mubr.f32.mxu0 0.0
    %631 = vmatmul.mubr.f32.gmra.mrb[0].mxu0 %v157
    %v632 = vpop.f32.mrb[0].mxu0
    %v633 = vadd.f32 %v313, %v632
    %v634 = vpop.f32.mrb[0].mxu0
    %v635 = vadd.f32 %v317, %v634
    %636 = vmatprep.mubr.f32.mxu0 0.0
    %637 = vmatmul.mubr.f32.gmra.mrb[0].mxu0 %v158
    %v638 = vpop.f32.mrb[0].mxu0
    %v639 = vadd.f32 %v313, %v638
    %v640 = vpop.f32.mrb[0].mxu0
    %v641 = vadd.f32 %v317, %v640
    %642 = vmatprep.mubr.f32.mxu0 0.0
    %643 = vmatmul.mubr.f32.gmra.mrb[0].mxu0 %v159
    %v644 = vpop.f32.mrb[0].mxu0
    %v645 = vadd.f32 %v313, %v644
    %v646 = vpop.f32.mrb[0].mxu0
    %v647 = vadd.f32 %v317, %v646
    %648 = vmatprep.mubr.f32.mxu0 0.0
    %649 = vmatmul.mubr.f32.gmra.mrb[0].mxu0 %v160
    %v650 = vpop.f32.mrb[0].mxu0
    %v651 = vadd.f32 %v313, %v650
    %v652 = vpop.f32.mrb[0].mxu0
    %v653 = vadd.f32 %v317, %v652
    %654 = vmatprep.mubr.f32.mxu0 0.0
    %655 = vmatmul.mubr.f32.gmra.mrb[0].mxu0 %v161
    %v656 = vpop.f32.mrb[0].mxu0
    %v657 = vadd.f32 %v313, %v656
    %v658 = vpop.f32.mrb[0].mxu0
    %v659 = vadd.f32 %v317, %v658
    %660 = vmatprep.mubr.f32.mxu0 0.0
    %661 = vmatmul.mubr.f32.gmra.mrb[0].mxu0 %v162
    %v662 = vpop.f32.mrb[0].mxu0
    %v663 = vadd.f32 %v313, %v662
    %v664 = vpop.f32.mrb[0].mxu0
    %v665 = vadd.f32 %v317, %v664
    %666 = vmatprep.mubr.f32.mxu0 0.0
    %667 = vmatmul.mubr.f32.gmra.mrb[0].mxu0 %v163
    %v668 = vpop.f32.mrb[0].mxu0
    %v669 = vadd.f32 %v313, %v668
    %v670 = vpop.f32.mrb[0].mxu0
    %v671 = vadd.f32 %v317, %v670
    %672 = vdwg.mxu0
    %673 = vmatprep.subr.mxu0 %v171
    %674 = vmatpush1.msra.mxu0 %v170
    %675 = vmatprep.subr.mxu0 %v179
    %676 = vmatpush1.msra.mxu0 %v178
    %677 = vmatprep.subr.mxu0 %v187
    %678 = vmatpush1.msra.mxu0 %v186
    %679 = vmatprep.subr.mxu0 %v195
    %680 = vmatpush1.msra.mxu0 %v194
    %681 = vmatprep.subr.mxu0 %v203
    %682 = vmatpush1.msra.mxu0 %v202
    %683 = vmatprep.subr.mxu0 %v211
    %684 = vmatpush1.msra.mxu0 %v210
    %685 = vmatprep.subr.mxu0 %v219
    %686 = vmatpush1.msra.mxu0 %v218
    %687 = vmatprep.subr.mxu0 %v227
    %688 = vmatpush1.msra.mxu0 %v226
    %689 = vmatprep.subr.mxu0 %v235
    %690 = vmatpush1.msra.mxu0 %v234
    %691 = vmatprep.subr.mxu0 %v243
    %692 = vmatpush1.msra.mxu0 %v242
    %693 = vmatprep.subr.mxu0 %v251
    %694 = vmatpush1.msra.mxu0 %v250
    %695 = vmatprep.subr.mxu0 %v259
    %696 = vmatpush1.msra.mxu0 %v258
    %697 = vmatprep.subr.mxu0 %v267
    %698 = vmatpush1.msra.mxu0 %v266
    %699 = vmatprep.subr.mxu0 %v275
    %700 = vmatpush1.msra.mxu0 %v274
    %701 = vmatprep.subr.mxu0 %v283
    %702 = vmatpush1.msra.mxu0 %v282
    %703 = vmatprep.subr.mxu0 %v291
    %704 = vmatpush1.msra.mxu0 %v290
    %705 = vmatprep.subr.mxu0 0.0
    %706 = vmatpush1.msra.mxu0 0.0
    %707 = vmatprep.subr.mxu0 0.0
    %708 = vmatpush1.msra.mxu0 0.0
    %709 = vmatprep.subr.mxu0 0.0
    %710 = vmatpush1.msra.mxu0 0.0
    %711 = vmatprep.subr.mxu0 0.0
    %712 = vmatpush1.msra.mxu0 0.0
    %713 = vmatprep.subr.mxu0 0.0
    %714 = vmatpush1.msra.mxu0 0.0
    %715 = vmatprep.subr.mxu0 0.0
    %716 = vmatpush1.msra.mxu0 0.0
    %717 = vmatprep.subr.mxu0 0.0
    %718 = vmatpush1.msra.mxu0 0.0
    %719 = vmatprep.subr.mxu0 0.0
    %720 = vmatpush1.msra.mxu0 0.0
    %721 = vmatprep.subr.mxu0 0.0
    %722 = vmatpush1.msra.mxu0 0.0
    %723 = vmatprep.subr.mxu0 0.0
    %724 = vmatpush1.msra.mxu0 0.0
    %725 = vmatprep.subr.mxu0 0.0
    %726 = vmatpush1.msra.mxu0 0.0
    %727 = vmatprep.subr.mxu0 0.0
    %728 = vmatpush1.msra.mxu0 0.0
    %729 = vmatprep.subr.mxu0 0.0
    %730 = vmatpush1.msra.mxu0 0.0
    %731 = vmatprep.subr.mxu0 0.0
    %732 = vmatpush1.msra.mxu0 0.0
    %733 = vmatprep.subr.mxu0 0.0
    %734 = vmatpush1.msra.mxu0 0.0
    %735 = vmatprep.subr.mxu0 0.0
    %736 = vmatpush1.msra.mxu0 0.0
    %737 = vmatprep.mubr.f32.mxu0 0.0
    %738 = vmatmul.mubr.f32.gmra.mrb[0].mxu0 %v156
    %v739 = vpop.f32.mrb[0].mxu0
    %v740 = vadd.f32 %v321, %v739
    %v741 = vpop.f32.mrb[0].mxu0
    %v742 = vadd.f32 %v325, %v741
    %743 = vmatprep.mubr.f32.mxu0 0.0
    %744 = vmatmul.mubr.f32.gmra.mrb[0].mxu0 %v157
    %v745 = vpop.f32.mrb[0].mxu0
    %v746 = vadd.f32 %v321, %v745
    %v747 = vpop.f32.mrb[0].mxu0
    %v748 = vadd.f32 %v325, %v747
    %749 = vmatprep.mubr.f32.mxu0 0.0
    %750 = vmatmul.mubr.f32.gmra.mrb[0].mxu0 %v158
    %v751 = vpop.f32.mrb[0].mxu0
    %v752 = vadd.f32 %v321, %v751
    %v753 = vpop.f32.mrb[0].mxu0
    %v754 = vadd.f32 %v325, %v753
    %755 = vmatprep.mubr.f32.mxu0 0.0
    %756 = vmatmul.mubr.f32.gmra.mrb[0].mxu0 %v159
    %v757 = vpop.f32.mrb[0].mxu0
    %v758 = vadd.f32 %v321, %v757
    %v759 = vpop.f32.mrb[0].mxu0
    %v760 = vadd.f32 %v325, %v759
    %761 = vmatprep.mubr.f32.mxu0 0.0
    %762 = vmatmul.mubr.f32.gmra.mrb[0].mxu0 %v160
    %v763 = vpop.f32.mrb[0].mxu0
    %v764 = vadd.f32 %v321, %v763
    %v765 = vpop.f32.mrb[0].mxu0
    %v766 = vadd.f32 %v325, %v765
    %767 = vmatprep.mubr.f32.mxu0 0.0
    %768 = vmatmul.mubr.f32.gmra.mrb[0].mxu0 %v161
    %v769 = vpop.f32.mrb[0].mxu0
    %v770 = vadd.f32 %v321, %v769
    %v771 = vpop.f32.mrb[0].mxu0
    %v772 = vadd.f32 %v325, %v771
    %773 = vmatprep.mubr.f32.mxu0 0.0
    %774 = vmatmul.mubr.f32.gmra.mrb[0].mxu0 %v162
    %v775 = vpop.f32.mrb[0].mxu0
    %v776 = vadd.f32 %v321, %v775
    %v777 = vpop.f32.mrb[0].mxu0
    %v778 = vadd.f32 %v325, %v777
    %779 = vmatprep.mubr.f32.mxu0 0.0
    %780 = vmatmul.mubr.f32.gmra.mrb[0].mxu0 %v163
    %v781 = vpop.f32.mrb[0].mxu0
    %v782 = vadd.f32 %v321, %v781
    %v783 = vpop.f32.mrb[0].mxu0
    %v784 = vadd.f32 %v325, %v783
    %785 = vdwg.mxu0
    %786 = vst [vmem:[#allocation2] sm:$0xff] %v401
    %787 = vst [vmem:[#allocation2 + $0x8] sm:$0xff] %v403
    %788 = vst [vmem:[#allocation2 + $0x10] sm:$0xff] %v514
    %789 = vst [vmem:[#allocation2 + $0x18] sm:$0xff] %v516
    %790 = vst [vmem:[#allocation2 + $0x20] sm:$0xff] %v407
    %791 = vst [vmem:[#allocation2 + $0x28] sm:$0xff] %v409
    %792 = vst [vmem:[#allocation2 + $0x30] sm:$0xff] %v520
    %793 = vst [vmem:[#allocation2 + $0x38] sm:$0xff] %v522
    %794 = vst [vmem:[#allocation2 + $0x40] sm:$0xff] %v413
    %795 = vst [vmem:[#allocation2 + $0x48] sm:$0xff] %v415
    %796 = vst [vmem:[#allocation2 + $0x50] sm:$0xff] %v526
    %797 = vst [vmem:[#allocation2 + $0x58] sm:$0xff] %v528
    %798 = vst [vmem:[#allocation2 + $0x60] sm:$0xff] %v419
    %799 = vst [vmem:[#allocation2 + $0x68] sm:$0xff] %v421
    %800 = vst [vmem:[#allocation2 + $0x70] sm:$0xff] %v532
    %801 = vst [vmem:[#allocation2 + $0x78] sm:$0xff] %v534
    %802 = vst [vmem:[#allocation2 + $0x80] sm:$0xff] %v425
    %803 = vst [vmem:[#allocation2 + $0x88] sm:$0xff] %v427
    %804 = vst [vmem:[#allocation2 + $0x90] sm:$0xff] %v538
    %805 = vst [vmem:[#allocation2 + $0x98] sm:$0xff] %v540
    %806 = vst [vmem:[#allocation2 + $0xa0] sm:$0xff] %v431
    %807 = vst [vmem:[#allocation2 + $0xa8] sm:$0xff] %v433
    %808 = vst [vmem:[#allocation2 + $0xb0] sm:$0xff] %v544
    %809 = vst [vmem:[#allocation2 + $0xb8] sm:$0xff] %v546
    %810 = vst [vmem:[#allocation2 + $0xc0] sm:$0xff] %v437
    %811 = vst [vmem:[#allocation2 + $0xc8] sm:$0xff] %v439
    %812 = vst [vmem:[#allocation2 + $0xd0] sm:$0xff] %v550
    %813 = vst [vmem:[#allocation2 + $0xd8] sm:$0xff] %v552
    %814 = vst [vmem:[#allocation2 + $0xe0] sm:$0xff] %v443
    %815 = vst [vmem:[#allocation2 + $0xe8] sm:$0xff] %v445
    %816 = vst [vmem:[#allocation2 + $0xf0] sm:$0xff] %v556
    %817 = vst [vmem:[#allocation2 + $0xf8] sm:$0xff] %v558
    %818 = vst [vmem:[#allocation3] sm:$0xff] %v627
    %819 = vst [vmem:[#allocation3 + $0x8] sm:$0xff] %v629
    %820 = vst [vmem:[#allocation3 + $0x10] sm:$0xff] %v740
    %821 = vst [vmem:[#allocation3 + $0x18] sm:$0xff] %v742
    %822 = vst [vmem:[#allocation3 + $0x20] sm:$0xff] %v633
    %823 = vst [vmem:[#allocation3 + $0x28] sm:$0xff] %v635
    %824 = vst [vmem:[#allocation3 + $0x30] sm:$0xff] %v746
    %825 = vst [vmem:[#allocation3 + $0x38] sm:$0xff] %v748
    %826 = vst [vmem:[#allocation3 + $0x40] sm:$0xff] %v639
    %827 = vst [vmem:[#allocation3 + $0x48] sm:$0xff] %v641
    %828 = vst [vmem:[#allocation3 + $0x50] sm:$0xff] %v752
    %829 = vst [vmem:[#allocation3 + $0x58] sm:$0xff] %v754
    %830 = vst [vmem:[#allocation3 + $0x60] sm:$0xff] %v645
    %831 = vst [vmem:[#allocation3 + $0x68] sm:$0xff] %v647
    %832 = vst [vmem:[#allocation3 + $0x70] sm:$0xff] %v758
    %833 = vst [vmem:[#allocation3 + $0x78] sm:$0xff] %v760
    %834 = vst [vmem:[#allocation3 + $0x80] sm:$0xff] %v651
    %835 = vst [vmem:[#allocation3 + $0x88] sm:$0xff] %v653
    %836 = vst [vmem:[#allocation3 + $0x90] sm:$0xff] %v764
    %837 = vst [vmem:[#allocation3 + $0x98] sm:$0xff] %v766
    %838 = vst [vmem:[#allocation3 + $0xa0] sm:$0xff] %v657
    %839 = vst [vmem:[#allocation3 + $0xa8] sm:$0xff] %v659
    %840 = vst [vmem:[#allocation3 + $0xb0] sm:$0xff] %v770
    %841 = vst [vmem:[#allocation3 + $0xb8] sm:$0xff] %v772
    %842 = vst [vmem:[#allocation3 + $0xc0] sm:$0xff] %v663
    %843 = vst [vmem:[#allocation3 + $0xc8] sm:$0xff] %v665
    %844 = vst [vmem:[#allocation3 + $0xd0] sm:$0xff] %v776
    %845 = vst [vmem:[#allocation3 + $0xd8] sm:$0xff] %v778
    %846 = vst [vmem:[#allocation3 + $0xe0] sm:$0xff] %v669
    %847 = vst [vmem:[#allocation3 + $0xe8] sm:$0xff] %v671
    %848 = vst [vmem:[#allocation3 + $0xf0] sm:$0xff] %v782
    %849 = vst [vmem:[#allocation3 + $0xf8] sm:$0xff] %v784
    %v850 = vld [vmem:[#allocation12] sm:$0xff]
    %v851 = vld [vmem:[#allocation12 + $0x8] sm:$0xff]
    %v852 = vld [vmem:[#allocation12 + $0x10] sm:$0xff]
    %v853 = vld [vmem:[#allocation12 + $0x18] sm:$0xff]
    %v854 = vld [vmem:[#allocation12 + $0x20] sm:$0xff]
    %v855 = vld [vmem:[#allocation12 + $0x28] sm:$0xff]
    %v856 = vld [vmem:[#allocation12 + $0x30] sm:$0xff]
    %v857 = vld [vmem:[#allocation12 + $0x38] sm:$0xff]
    %v858 = vld [vmem:[#allocation12 + $0x40] sm:$0xff]
    %v859 = vld [vmem:[#allocation12 + $0x48] sm:$0xff]
    %v860 = vld [vmem:[#allocation12 + $0x50] sm:$0xff]
    %v861 = vld [vmem:[#allocation12 + $0x58] sm:$0xff]
    %v862 = vld [vmem:[#allocation12 + $0x60] sm:$0xff]
    %v863 = vld [vmem:[#allocation12 + $0x68] sm:$0xff]
    %v864 = vld [vmem:[#allocation12 + $0x70] sm:$0xff]
    %v865 = vld [vmem:[#allocation12 + $0x78] sm:$0xff]
    %v866 = vld [vmem:[#allocation12 + $0x80] sm:$0xff]
    %v867 = vld [vmem:[#allocation12 + $0x88] sm:$0xff]
    %v868 = vld [vmem:[#allocation12 + $0x90] sm:$0xff]
    %v869 = vld [vmem:[#allocation12 + $0x98] sm:$0xff]
    %v870 = vld [vmem:[#allocation12 + $0xa0] sm:$0xff]
    %v871 = vld [vmem:[#allocation12 + $0xa8] sm:$0xff]
    %v872 = vld [vmem:[#allocation12 + $0xb0] sm:$0xff]
    %v873 = vld [vmem:[#allocation12 + $0xb8] sm:$0xff]
    %v874 = vld [vmem:[#allocation12 + $0xc0] sm:$0xff]
    %v875 = vld [vmem:[#allocation12 + $0xc8] sm:$0xff]
    %v876 = vld [vmem:[#allocation12 + $0xd0] sm:$0xff]
    %v877 = vld [vmem:[#allocation12 + $0xd8] sm:$0xff]
    %v878 = vld [vmem:[#allocation12 + $0xe0] sm:$0xff]
    %v879 = vld [vmem:[#allocation12 + $0xe8] sm:$0xff]
    %v880 = vld [vmem:[#allocation12 + $0xf0] sm:$0xff]
    %v881 = vld [vmem:[#allocation12 + $0xf8] sm:$0xff]
    %v882 = vld [vmem:[#allocation12 + $0x100] sm:$0xff]
    %v883 = vld [vmem:[#allocation12 + $0x108] sm:$0xff]
    %v884 = vld [vmem:[#allocation12 + $0x110] sm:$0xff]
    %v885 = vld [vmem:[#allocation12 + $0x118] sm:$0xff]
    %v886 = vld [vmem:[#allocation12 + $0x120] sm:$0xff]
    %v887 = vld [vmem:[#allocation12 + $0x128] sm:$0xff]
    %v888 = vld [vmem:[#allocation12 + $0x130] sm:$0xff]
    %v889 = vld [vmem:[#allocation12 + $0x138] sm:$0xff]
    %v890 = vld [vmem:[#allocation12 + $0x140] sm:$0xff]
    %v891 = vld [vmem:[#allocation12 + $0x148] sm:$0xff]
    %v892 = vld [vmem:[#allocation12 + $0x150] sm:$0xff]
    %v893 = vld [vmem:[#allocation12 + $0x158] sm:$0xff]
    %v894 = vld [vmem:[#allocation12 + $0x160] sm:$0xff]
    %v895 = vld [vmem:[#allocation12 + $0x168] sm:$0xff]
    %v896 = vld [vmem:[#allocation12 + $0x170] sm:$0xff]
    %v897 = vld [vmem:[#allocation12 + $0x178] sm:$0xff]
    %v898 = vld [vmem:[#allocation12 + $0x180] sm:$0xff]
    %v899 = vld [vmem:[#allocation12 + $0x188] sm:$0xff]
    %v900 = vld [vmem:[#allocation12 + $0x190] sm:$0xff]
    %v901 = vld [vmem:[#allocation12 + $0x198] sm:$0xff]
    %v902 = vld [vmem:[#allocation12 + $0x1a0] sm:$0xff]
    %v903 = vld [vmem:[#allocation12 + $0x1a8] sm:$0xff]
    %v904 = vld [vmem:[#allocation12 + $0x1b0] sm:$0xff]
    %v905 = vld [vmem:[#allocation12 + $0x1b8] sm:$0xff]
    %v906 = vld [vmem:[#allocation12 + $0x1c0] sm:$0xff]
    %v907 = vld [vmem:[#allocation12 + $0x1c8] sm:$0xff]
    %v908 = vld [vmem:[#allocation12 + $0x1d0] sm:$0xff]
    %v909 = vld [vmem:[#allocation12 + $0x1d8] sm:$0xff]
    %v910 = vld [vmem:[#allocation12 + $0x1e0] sm:$0xff]
    %v911 = vld [vmem:[#allocation12 + $0x1e8] sm:$0xff]
    %v912 = vld [vmem:[#allocation12 + $0x1f0] sm:$0xff]
    %v913 = vld [vmem:[#allocation12 + $0x1f8] sm:$0xff]
    %v914 = vld [vmem:[#allocation14] sm:$0xff]
    %v915 = vld [vmem:[#allocation14 + $0x8] sm:$0xff]
    %v916 = vld [vmem:[#allocation14 + $0x10] sm:$0xff]
    %v917 = vld [vmem:[#allocation14 + $0x18] sm:$0xff]
    %v918 = vld [vmem:[#allocation14 + $0x20] sm:$0xff]
    %v919 = vld [vmem:[#allocation14 + $0x28] sm:$0xff]
    %v920 = vld [vmem:[#allocation14 + $0x30] sm:$0xff]
    %v921 = vld [vmem:[#allocation14 + $0x38] sm:$0xff]
    %v922 = vld [vmem:[#allocation14 + $0x40] sm:$0xff]
    %v923 = vld [vmem:[#allocation14 + $0x48] sm:$0xff]
    %v924 = vld [vmem:[#allocation14 + $0x50] sm:$0xff]
    %v925 = vld [vmem:[#allocation14 + $0x58] sm:$0xff]
    %v926 = vld [vmem:[#allocation14 + $0x60] sm:$0xff]
    %v927 = vld [vmem:[#allocation14 + $0x68] sm:$0xff]
    %v928 = vld [vmem:[#allocation14 + $0x70] sm:$0xff]
    %v929 = vld [vmem:[#allocation14 + $0x78] sm:$0xff]
    %v930 = vld [vmem:[#allocation14 + $0x80] sm:$0xff]
    %v931 = vld [vmem:[#allocation14 + $0x88] sm:$0xff]
    %v932 = vld [vmem:[#allocation14 + $0x90] sm:$0xff]
    %v933 = vld [vmem:[#allocation14 + $0x98] sm:$0xff]
    %v934 = vld [vmem:[#allocation14 + $0xa0] sm:$0xff]
    %v935 = vld [vmem:[#allocation14 + $0xa8] sm:$0xff]
    %v936 = vld [vmem:[#allocation14 + $0xb0] sm:$0xff]
    %v937 = vld [vmem:[#allocation14 + $0xb8] sm:$0xff]
    %v938 = vld [vmem:[#allocation14 + $0xc0] sm:$0xff]
    %v939 = vld [vmem:[#allocation14 + $0xc8] sm:$0xff]
    %v940 = vld [vmem:[#allocation14 + $0xd0] sm:$0xff]
    %v941 = vld [vmem:[#allocation14 + $0xd8] sm:$0xff]
    %v942 = vld [vmem:[#allocation14 + $0xe0] sm:$0xff]
    %v943 = vld [vmem:[#allocation14 + $0xe8] sm:$0xff]
    %v944 = vld [vmem:[#allocation14 + $0xf0] sm:$0xff]
    %v945 = vld [vmem:[#allocation14 + $0xf8] sm:$0xff]
    %v946 = vld [vmem:[#allocation14 + $0x100] sm:$0xff]
    %v947 = vld [vmem:[#allocation14 + $0x108] sm:$0xff]
    %v948 = vld [vmem:[#allocation14 + $0x110] sm:$0xff]
    %v949 = vld [vmem:[#allocation14 + $0x118] sm:$0xff]
    %v950 = vld [vmem:[#allocation14 + $0x120] sm:$0xff]
    %v951 = vld [vmem:[#allocation14 + $0x128] sm:$0xff]
    %v952 = vld [vmem:[#allocation14 + $0x130] sm:$0xff]
    %v953 = vld [vmem:[#allocation14 + $0x138] sm:$0xff]
    %v954 = vld [vmem:[#allocation14 + $0x140] sm:$0xff]
    %v955 = vld [vmem:[#allocation14 + $0x148] sm:$0xff]
    %v956 = vld [vmem:[#allocation14 + $0x150] sm:$0xff]
    %v957 = vld [vmem:[#allocation14 + $0x158] sm:$0xff]
    %v958 = vld [vmem:[#allocation14 + $0x160] sm:$0xff]
    %v959 = vld [vmem:[#allocation14 + $0x168] sm:$0xff]
    %v960 = vld [vmem:[#allocation14 + $0x170] sm:$0xff]
    %v961 = vld [vmem:[#allocation14 + $0x178] sm:$0xff]
    %v962 = vld [vmem:[#allocation14 + $0x180] sm:$0xff]
    %v963 = vld [vmem:[#allocation14 + $0x188] sm:$0xff]
    %v964 = vld [vmem:[#allocation14 + $0x190] sm:$0xff]
    %v965 = vld [vmem:[#allocation14 + $0x198] sm:$0xff]
    %v966 = vld [vmem:[#allocation14 + $0x1a0] sm:$0xff]
    %v967 = vld [vmem:[#allocation14 + $0x1a8] sm:$0xff]
    %v968 = vld [vmem:[#allocation14 + $0x1b0] sm:$0xff]
    %v969 = vld [vmem:[#allocation14 + $0x1b8] sm:$0xff]
    %v970 = vld [vmem:[#allocation14 + $0x1c0] sm:$0xff]
    %v971 = vld [vmem:[#allocation14 + $0x1c8] sm:$0xff]
    %v972 = vld [vmem:[#allocation14 + $0x1d0] sm:$0xff]
    %v973 = vld [vmem:[#allocation14 + $0x1d8] sm:$0xff]
    %v974 = vld [vmem:[#allocation14 + $0x1e0] sm:$0xff]
    %v975 = vld [vmem:[#allocation14 + $0x1e8] sm:$0xff]
    %v976 = vld [vmem:[#allocation14 + $0x1f0] sm:$0xff]
    %v977 = vld [vmem:[#allocation14 + $0x1f8] sm:$0xff]
    %v978 = vld [vmem:[#allocation2] sm:$0xff]
    %v979 = vld [vmem:[#allocation2 + $0x8] sm:$0xff]
    %v980 = vld [vmem:[#allocation2 + $0x10] sm:$0xff]
    %v981 = vld [vmem:[#allocation2 + $0x18] sm:$0xff]
    %982 = vmatprep.subr.mxu0 %v851
    %983 = vmatpush1.msra.mxu0 %v850
    %984 = vmatprep.subr.mxu0 %v855
    %985 = vmatpush1.msra.mxu0 %v854
    %986 = vmatprep.subr.mxu0 %v859
    %987 = vmatpush1.msra.mxu0 %v858
    %988 = vmatprep.subr.mxu0 %v863
    %989 = vmatpush1.msra.mxu0 %v862
    %990 = vmatprep.subr.mxu0 %v867
    %991 = vmatpush1.msra.mxu0 %v866
    %992 = vmatprep.subr.mxu0 %v871
    %993 = vmatpush1.msra.mxu0 %v870
    %994 = vmatprep.subr.mxu0 %v875
    %995 = vmatpush1.msra.mxu0 %v874
    %996 = vmatprep.subr.mxu0 %v879
    %997 = vmatpush1.msra.mxu0 %v878
    %998 = vmatprep.subr.mxu0 %v883
    %999 = vmatpush1.msra.mxu0 %v882
    %1000 = vmatprep.subr.mxu0 %v887
    %1001 = vmatpush1.msra.mxu0 %v886
    %1002 = vmatprep.subr.mxu0 %v891
    %1003 = vmatpush1.msra.mxu0 %v890
    %1004 = vmatprep.subr.mxu0 %v895
    %1005 = vmatpush1.msra.mxu0 %v894
    %1006 = vmatprep.subr.mxu0 %v899
    %1007 = vmatpush1.msra.mxu0 %v898
    %1008 = vmatprep.subr.mxu0 %v903
    %1009 = vmatpush1.msra.mxu0 %v902
    %1010 = vmatprep.subr.mxu0 %v907
    %1011 = vmatpush1.msra.mxu0 %v906
    %1012 = vmatprep.subr.mxu0 %v911
    %1013 = vmatpush1.msra.mxu0 %v910
    %1014 = vmatprep.subr.mxu0 0.0
    %1015 = vmatpush1.msra.mxu0 0.0
    %1016 = vmatprep.subr.mxu0 0.0
    %1017 = vmatpush1.msra.mxu0 0.0
    %1018 = vmatprep.subr.mxu0 0.0
    %1019 = vmatpush1.msra.mxu0 0.0
    %1020 = vmatprep.subr.mxu0 0.0
    %1021 = vmatpush1.msra.mxu0 0.0
    %1022 = vmatprep.subr.mxu0 0.0
    %1023 = vmatpush1.msra.mxu0 0.0
    %1024 = vmatprep.subr.mxu0 0.0
    %1025 = vmatpush1.msra.mxu0 0.0
    %1026 = vmatprep.subr.mxu0 0.0
    %1027 = vmatpush1.msra.mxu0 0.0
    %1028 = vmatprep.subr.mxu0 0.0
    %1029 = vmatpush1.msra.mxu0 0.0
    %1030 = vmatprep.subr.mxu0 0.0
    %1031 = vmatpush1.msra.mxu0 0.0
    %1032 = vmatprep.subr.mxu0 0.0
    %1033 = vmatpush1.msra.mxu0 0.0
    %1034 = vmatprep.subr.mxu0 0.0
    %1035 = vmatpush1.msra.mxu0 0.0
    %1036 = vmatprep.subr.mxu0 0.0
    %1037 = vmatpush1.msra.mxu0 0.0
    %1038 = vmatprep.subr.mxu0 0.0
    %1039 = vmatpush1.msra.mxu0 0.0
    %1040 = vmatprep.subr.mxu0 0.0
    %1041 = vmatpush1.msra.mxu0 0.0
    %1042 = vmatprep.subr.mxu0 0.0
    %1043 = vmatpush1.msra.mxu0 0.0
    %1044 = vmatprep.subr.mxu0 0.0
    %1045 = vmatpush1.msra.mxu0 0.0
    %1046 = vmatprep.mubr.f32.mxu0 0.0
    %1047 = vmatmul.mubr.f32.gmra.mrb[0].mxu0 0.0
    %v1048 = vpop.f32.mrb[0].mxu0
    %v1049 = vadd.f32 0.0, %v1048
    %v1050 = vpop.f32.mrb[0].mxu0
    %v1051 = vadd.f32 0.0, %v1050
    %1052 = vdwg.mxu0
    %1053 = vmatprep.subr.mxu0 %v853
    %1054 = vmatpush1.msra.mxu0 %v852
    %1055 = vmatprep.subr.mxu0 %v857
    %1056 = vmatpush1.msra.mxu0 %v856
    %1057 = vmatprep.subr.mxu0 %v861
    %1058 = vmatpush1.msra.mxu0 %v860
    %1059 = vmatprep.subr.mxu0 %v865
    %1060 = vmatpush1.msra.mxu0 %v864
    %1061 = vmatprep.subr.mxu0 %v869
    %1062 = vmatpush1.msra.mxu0 %v868
    %1063 = vmatprep.subr.mxu0 %v873
    %1064 = vmatpush1.msra.mxu0 %v872
    %1065 = vmatprep.subr.mxu0 %v877
    %1066 = vmatpush1.msra.mxu0 %v876
    %1067 = vmatprep.subr.mxu0 %v881
    %1068 = vmatpush1.msra.mxu0 %v880
    %1069 = vmatprep.subr.mxu0 %v885
    %1070 = vmatpush1.msra.mxu0 %v884
    %1071 = vmatprep.subr.mxu0 %v889
    %1072 = vmatpush1.msra.mxu0 %v888
    %1073 = vmatprep.subr.mxu0 %v893
    %1074 = vmatpush1.msra.mxu0 %v892
    %1075 = vmatprep.subr.mxu0 %v897
    %1076 = vmatpush1.msra.mxu0 %v896
    %1077 = vmatprep.subr.mxu0 %v901
    %1078 = vmatpush1.msra.mxu0 %v900
    %1079 = vmatprep.subr.mxu0 %v905
    %1080 = vmatpush1.msra.mxu0 %v904
    %1081 = vmatprep.subr.mxu0 %v909
    %1082 = vmatpush1.msra.mxu0 %v908
    %1083 = vmatprep.subr.mxu0 %v913
    %1084 = vmatpush1.msra.mxu0 %v912
    %1085 = vmatprep.subr.mxu0 0.0
    %1086 = vmatpush1.msra.mxu0 0.0
    %1087 = vmatprep.subr.mxu0 0.0
    %1088 = vmatpush1.msra.mxu0 0.0
    %1089 = vmatprep.subr.mxu0 0.0
    %1090 = vmatpush1.msra.mxu0 0.0
    %1091 = vmatprep.subr.mxu0 0.0
    %1092 = vmatpush1.msra.mxu0 0.0
    %1093 = vmatprep.subr.mxu0 0.0
    %1094 = vmatpush1.msra.mxu0 0.0
    %1095 = vmatprep.subr.mxu0 0.0
    %1096 = vmatpush1.msra.mxu0 0.0
    %1097 = vmatprep.subr.mxu0 0.0
    %1098 = vmatpush1.msra.mxu0 0.0
    %1099 = vmatprep.subr.mxu0 0.0
    %1100 = vmatpush1.msra.mxu0 0.0
    %1101 = vmatprep.subr.mxu0 0.0
    %1102 = vmatpush1.msra.mxu0 0.0
    %1103 = vmatprep.subr.mxu0 0.0
    %1104 = vmatpush1.msra.mxu0 0.0
    %1105 = vmatprep.subr.mxu0 0.0
    %1106 = vmatpush1.msra.mxu0 0.0
    %1107 = vmatprep.subr.mxu0 0.0
    %1108 = vmatpush1.msra.mxu0 0.0
    %1109 = vmatprep.subr.mxu0 0.0
    %1110 = vmatpush1.msra.mxu0 0.0
    %1111 = vmatprep.subr.mxu0 0.0
    %1112 = vmatpush1.msra.mxu0 0.0
    %1113 = vmatprep.subr.mxu0 0.0
    %1114 = vmatpush1.msra.mxu0 0.0
    %1115 = vmatprep.subr.mxu0 0.0
    %1116 = vmatpush1.msra.mxu0 0.0
    %1117 = vmatprep.mubr.f32.mxu0 0.0
    %1118 = vmatmul.mubr.f32.gmra.mrb[0].mxu0 0.0
    %v1119 = vpop.f32.mrb[0].mxu0
    %v1120 = vadd.f32 0.0, %v1119
    %v1121 = vpop.f32.mrb[0].mxu0
    %v1122 = vadd.f32 0.0, %v1121
    %1123 = vdwg.mxu0
    %v1124 = vadd.f32 %v978, %v1049
    %v1125 = vadd.f32 %v979, %v1051
    %v1126 = vadd.f32 %v980, %v1120
    %v1127 = vadd.f32 %v981, %v1122
    %v1128 = vxor.u32 %v1124, 2147483648
    %v1129 = vmul.f32 %v1128, 1.442695
    %v1130 = vpow.pop %v1129
    %v1131 = vadd.f32 %v1130, 1.0
    %v1132 = vrcp.pop %v1131
    %v1133 = vmul.f32 1.0, %v1132
    %v1134 = vxor.u32 %v1125, 2147483648
    %v1135 = vmul.f32 %v1134, 1.442695
    %v1136 = vpow.pop %v1135
    %v1137 = vadd.f32 %v1136, 1.0
    %v1138 = vrcp.pop %v1137
    %v1139 = vmul.f32 1.0, %v1138
    %v1140 = vtanh.pop %v1126
    %v1141 = vxor.u32 %v1127, 2147483648
    %v1142 = vmul.f32 %v1141, 1.442695
    %v1143 = vpow.pop %v1142
    %v1144 = vadd.f32 %v1143, 1.0
    %v1145 = vrcp.pop %v1144
    %v1146 = vmul.f32 1.0, %v1145
    %v1147 = vmul.f32 %v1139, 0.0
    %v1148 = vmul.f32 %v1133, %v1140
    %v1149 = vadd.f32 %v1147, %v1148
    %v1150 = vtanh.pop %v1149
    %v1151 = vmul.f32 %v1146, %v1150
    %1152 = vst [vmem:[#allocation4] sm:$0xff] %v1151
    %s1153 = scalar_lea.vmem [#allocation2], 32
    %v1154 = vld [vmem:[%s1153] sm:$0xff]
    %v1155 = vld [vmem:[%s1153 + $0x8] sm:$0xff]
    %v1156 = vld [vmem:[%s1153 + $0x10] sm:$0xff]
    %v1157 = vld [vmem:[%s1153 + $0x18] sm:$0xff]
    %1158 = vmatprep.subr.mxu0 %v851
    %1159 = vmatpush1.msra.mxu0 %v850
    %1160 = vmatprep.subr.mxu0 %v855
    %1161 = vmatpush1.msra.mxu0 %v854
    %1162 = vmatprep.subr.mxu0 %v859
    %1163 = vmatpush1.msra.mxu0 %v858
    %1164 = vmatprep.subr.mxu0 %v863
    %1165 = vmatpush1.msra.mxu0 %v862
    %1166 = vmatprep.subr.mxu0 %v867
    %1167 = vmatpush1.msra.mxu0 %v866
    %1168 = vmatprep.subr.mxu0 %v871
    %1169 = vmatpush1.msra.mxu0 %v870
    %1170 = vmatprep.subr.mxu0 %v875
    %1171 = vmatpush1.msra.mxu0 %v874
    %1172 = vmatprep.subr.mxu0 %v879
    %1173 = vmatpush1.msra.mxu0 %v878
    %1174 = vmatprep.subr.mxu0 %v883
    %1175 = vmatpush1.msra.mxu0 %v882
    %1176 = vmatprep.subr.mxu0 %v887
    %1177 = vmatpush1.msra.mxu0 %v886
    %1178 = vmatprep.subr.mxu0 %v891
    %1179 = vmatpush1.msra.mxu0 %v890
    %1180 = vmatprep.subr.mxu0 %v895
    %1181 = vmatpush1.msra.mxu0 %v894
    %1182 = vmatprep.subr.mxu0 %v899
    %1183 = vmatpush1.msra.mxu0 %v898
    %1184 = vmatprep.subr.mxu0 %v903
    %1185 = vmatpush1.msra.mxu0 %v902
    %1186 = vmatprep.subr.mxu0 %v907
    %1187 = vmatpush1.msra.mxu0 %v906
    %1188 = vmatprep.subr.mxu0 %v911
    %1189 = vmatpush1.msra.mxu0 %v910
    %1190 = vmatprep.subr.mxu0 0.0
    %1191 = vmatpush1.msra.mxu0 0.0
    %1192 = vmatprep.subr.mxu0 0.0
    %1193 = vmatpush1.msra.mxu0 0.0
    %1194 = vmatprep.subr.mxu0 0.0
    %1195 = vmatpush1.msra.mxu0 0.0
    %1196 = vmatprep.subr.mxu0 0.0
    %1197 = vmatpush1.msra.mxu0 0.0
    %1198 = vmatprep.subr.mxu0 0.0
    %1199 = vmatpush1.msra.mxu0 0.0
    %1200 = vmatprep.subr.mxu0 0.0
    %1201 = vmatpush1.msra.mxu0 0.0
    %1202 = vmatprep.subr.mxu0 0.0
    %1203 = vmatpush1.msra.mxu0 0.0
    %1204 = vmatprep.subr.mxu0 0.0
    %1205 = vmatpush1.msra.mxu0 0.0
    %1206 = vmatprep.subr.mxu0 0.0
    %1207 = vmatpush1.msra.mxu0 0.0
    %1208 = vmatprep.subr.mxu0 0.0
    %1209 = vmatpush1.msra.mxu0 0.0
    %1210 = vmatprep.subr.mxu0 0.0
    %1211 = vmatpush1.msra.mxu0 0.0
    %1212 = vmatprep.subr.mxu0 0.0
    %1213 = vmatpush1.msra.mxu0 0.0
    %1214 = vmatprep.subr.mxu0 0.0
    %1215 = vmatpush1.msra.mxu0 0.0
    %1216 = vmatprep.subr.mxu0 0.0
    %1217 = vmatpush1.msra.mxu0 0.0
    %1218 = vmatprep.subr.mxu0 0.0
    %1219 = vmatpush1.msra.mxu0 0.0
    %1220 = vmatprep.subr.mxu0 0.0
    %1221 = vmatpush1.msra.mxu0 0.0
    %1222 = vmatprep.mubr.f32.mxu0 0.0
    %1223 = vmatmul.mubr.f32.gmra.mrb[0].mxu0 %v1151
    %v1224 = vpop.f32.mrb[0].mxu0
    %v1225 = vadd.f32 0.0, %v1224
    %v1226 = vpop.f32.mrb[0].mxu0
    %v1227 = vadd.f32 0.0, %v1226
    %1228 = vdwg.mxu0
    %1229 = vmatprep.subr.mxu0 %v853
    %1230 = vmatpush1.msra.mxu0 %v852
    %1231 = vmatprep.subr.mxu0 %v857
    %1232 = vmatpush1.msra.mxu0 %v856
    %1233 = vmatprep.subr.mxu0 %v861
    %1234 = vmatpush1.msra.mxu0 %v860
    %1235 = vmatprep.subr.mxu0 %v865
    %1236 = vmatpush1.msra.mxu0 %v864
    %1237 = vmatprep.subr.mxu0 %v869
    %1238 = vmatpush1.msra.mxu0 %v868
    %1239 = vmatprep.subr.mxu0 %v873
    %1240 = vmatpush1.msra.mxu0 %v872
    %1241 = vmatprep.subr.mxu0 %v877
    %1242 = vmatpush1.msra.mxu0 %v876
    %1243 = vmatprep.subr.mxu0 %v881
    %1244 = vmatpush1.msra.mxu0 %v880
    %1245 = vmatprep.subr.mxu0 %v885
    %1246 = vmatpush1.msra.mxu0 %v884
    %1247 = vmatprep.subr.mxu0 %v889
    %1248 = vmatpush1.msra.mxu0 %v888
    %1249 = vmatprep.subr.mxu0 %v893
    %1250 = vmatpush1.msra.mxu0 %v892
    %1251 = vmatprep.subr.mxu0 %v897
    %1252 = vmatpush1.msra.mxu0 %v896
    %1253 = vmatprep.subr.mxu0 %v901
    %1254 = vmatpush1.msra.mxu0 %v900
    %1255 = vmatprep.subr.mxu0 %v905
    %1256 = vmatpush1.msra.mxu0 %v904
    %1257 = vmatprep.subr.mxu0 %v909
    %1258 = vmatpush1.msra.mxu0 %v908
    %1259 = vmatprep.subr.mxu0 %v913
    %1260 = vmatpush1.msra.mxu0 %v912
    %1261 = vmatprep.subr.mxu0 0.0
    %1262 = vmatpush1.msra.mxu0 0.0
    %1263 = vmatprep.subr.mxu0 0.0
    %1264 = vmatpush1.msra.mxu0 0.0
    %1265 = vmatprep.subr.mxu0 0.0
    %1266 = vmatpush1.msra.mxu0 0.0
    %1267 = vmatprep.subr.mxu0 0.0
    %1268 = vmatpush1.msra.mxu0 0.0
    %1269 = vmatprep.subr.mxu0 0.0
    %1270 = vmatpush1.msra.mxu0 0.0
    %1271 = vmatprep.subr.mxu0 0.0
    %1272 = vmatpush1.msra.mxu0 0.0
    %1273 = vmatprep.subr.mxu0 0.0
    %1274 = vmatpush1.msra.mxu0 0.0
    %1275 = vmatprep.subr.mxu0 0.0
    %1276 = vmatpush1.msra.mxu0 0.0
    %1277 = vmatprep.subr.mxu0 0.0
    %1278 = vmatpush1.msra.mxu0 0.0
    %1279 = vmatprep.subr.mxu0 0.0
    %1280 = vmatpush1.msra.mxu0 0.0
    %1281 = vmatprep.subr.mxu0 0.0
    %1282 = vmatpush1.msra.mxu0 0.0
    %1283 = vmatprep.subr.mxu0 0.0
    %1284 = vmatpush1.msra.mxu0 0.0
    %1285 = vmatprep.subr.mxu0 0.0
    %1286 = vmatpush1.msra.mxu0 0.0
    %1287 = vmatprep.subr.mxu0 0.0
    %1288 = vmatpush1.msra.mxu0 0.0
    %1289 = vmatprep.subr.mxu0 0.0
    %1290 = vmatpush1.msra.mxu0 0.0
    %1291 = vmatprep.subr.mxu0 0.0
    %1292 = vmatpush1.msra.mxu0 0.0
    %1293 = vmatprep.mubr.f32.mxu0 0.0
    %1294 = vmatmul.mubr.f32.gmra.mrb[0].mxu0 %v1151
    %v1295 = vpop.f32.mrb[0].mxu0
    %v1296 = vadd.f32 0.0, %v1295
    %v1297 = vpop.f32.mrb[0].mxu0
    %v1298 = vadd.f32 0.0, %v1297
    %1299 = vdwg.mxu0
    %v1300 = vadd.f32 %v1154, %v1225
    %v1301 = vadd.f32 %v1155, %v1227
    %v1302 = vadd.f32 %v1156, %v1296
    %v1303 = vadd.f32 %v1157, %v1298
    %v1304 = vxor.u32 %v1300, 2147483648
    %v1305 = vmul.f32 %v1304, 1.442695
    %v1306 = vpow.pop %v1305
    %v1307 = vadd.f32 %v1306, 1.0
    %v1308 = vrcp.pop %v1307
    %v1309 = vmul.f32 1.0, %v1308
    %v1310 = vxor.u32 %v1301, 2147483648
    %v1311 = vmul.f32 %v1310, 1.442695
    %v1312 = vpow.pop %v1311
    %v1313 = vadd.f32 %v1312, 1.0
    %v1314 = vrcp.pop %v1313
    %v1315 = vmul.f32 1.0, %v1314
    %v1316 = vtanh.pop %v1302
    %v1317 = vxor.u32 %v1303, 2147483648
    %v1318 = vmul.f32 %v1317, 1.442695
    %v1319 = vpow.pop %v1318
    %v1320 = vadd.f32 %v1319, 1.0
    %v1321 = vrcp.pop %v1320
    %v1322 = vmul.f32 1.0, %v1321
    %v1323 = vmul.f32 %v1315, %v1149
    %v1324 = vmul.f32 %v1309, %v1316
    %v1325 = vadd.f32 %v1323, %v1324
    %v1326 = vtanh.pop %v1325
    %v1327 = vmul.f32 %v1322, %v1326
    %s1328 = scalar_lea.vmem [#allocation4], 8
    %1329 = vst [vmem:[%s1328] sm:$0xff] %v1327
    %s1330 = scalar_lea.vmem [#allocation2], 64
    %v1331 = vld [vmem:[%s1330] sm:$0xff]
    %v1332 = vld [vmem:[%s1330 + $0x8] sm:$0xff]
    %v1333 = vld [vmem:[%s1330 + $0x10] sm:$0xff]
    %v1334 = vld [vmem:[%s1330 + $0x18] sm:$0xff]
    %1335 = vmatprep.subr.mxu0 %v851
    %1336 = vmatpush1.msra.mxu0 %v850
    %1337 = vmatprep.subr.mxu0 %v855
    %1338 = vmatpush1.msra.mxu0 %v854
    %1339 = vmatprep.subr.mxu0 %v859
    %1340 = vmatpush1.msra.mxu0 %v858
    %1341 = vmatprep.subr.mxu0 %v863
    %1342 = vmatpush1.msra.mxu0 %v862
    %1343 = vmatprep.subr.mxu0 %v867
    %1344 = vmatpush1.msra.mxu0 %v866
    %1345 = vmatprep.subr.mxu0 %v871
    %1346 = vmatpush1.msra.mxu0 %v870
    %1347 = vmatprep.subr.mxu0 %v875
    %1348 = vmatpush1.msra.mxu0 %v874
    %1349 = vmatprep.subr.mxu0 %v879
    %1350 = vmatpush1.msra.mxu0 %v878
    %1351 = vmatprep.subr.mxu0 %v883
    %1352 = vmatpush1.msra.mxu0 %v882
    %1353 = vmatprep.subr.mxu0 %v887
    %1354 = vmatpush1.msra.mxu0 %v886
    %1355 = vmatprep.subr.mxu0 %v891
    %1356 = vmatpush1.msra.mxu0 %v890
    %1357 = vmatprep.subr.mxu0 %v895
    %1358 = vmatpush1.msra.mxu0 %v894
    %1359 = vmatprep.subr.mxu0 %v899
    %1360 = vmatpush1.msra.mxu0 %v898
    %1361 = vmatprep.subr.mxu0 %v903
    %1362 = vmatpush1.msra.mxu0 %v902
    %1363 = vmatprep.subr.mxu0 %v907
    %1364 = vmatpush1.msra.mxu0 %v906
    %1365 = vmatprep.subr.mxu0 %v911
    %1366 = vmatpush1.msra.mxu0 %v910
    %1367 = vmatprep.subr.mxu0 0.0
    %1368 = vmatpush1.msra.mxu0 0.0
    %1369 = vmatprep.subr.mxu0 0.0
    %1370 = vmatpush1.msra.mxu0 0.0
    %1371 = vmatprep.subr.mxu0 0.0
    %1372 = vmatpush1.msra.mxu0 0.0
    %1373 = vmatprep.subr.mxu0 0.0
    %1374 = vmatpush1.msra.mxu0 0.0
    %1375 = vmatprep.subr.mxu0 0.0
    %1376 = vmatpush1.msra.mxu0 0.0
    %1377 = vmatprep.subr.mxu0 0.0
    %1378 = vmatpush1.msra.mxu0 0.0
    %1379 = vmatprep.subr.mxu0 0.0
    %1380 = vmatpush1.msra.mxu0 0.0
    %1381 = vmatprep.subr.mxu0 0.0
    %1382 = vmatpush1.msra.mxu0 0.0
    %1383 = vmatprep.subr.mxu0 0.0
    %1384 = vmatpush1.msra.mxu0 0.0
    %1385 = vmatprep.subr.mxu0 0.0
    %1386 = vmatpush1.msra.mxu0 0.0
    %1387 = vmatprep.subr.mxu0 0.0
    %1388 = vmatpush1.msra.mxu0 0.0
    %1389 = vmatprep.subr.mxu0 0.0
    %1390 = vmatpush1.msra.mxu0 0.0
    %1391 = vmatprep.subr.mxu0 0.0
    %1392 = vmatpush1.msra.mxu0 0.0
    %1393 = vmatprep.subr.mxu0 0.0
    %1394 = vmatpush1.msra.mxu0 0.0
    %1395 = vmatprep.subr.mxu0 0.0
    %1396 = vmatpush1.msra.mxu0 0.0
    %1397 = vmatprep.subr.mxu0 0.0
    %1398 = vmatpush1.msra.mxu0 0.0
    %1399 = vmatprep.mubr.f32.mxu0 0.0
    %1400 = vmatmul.mubr.f32.gmra.mrb[0].mxu0 %v1327
    %v1401 = vpop.f32.mrb[0].mxu0
    %v1402 = vadd.f32 0.0, %v1401
    %v1403 = vpop.f32.mrb[0].mxu0
    %v1404 = vadd.f32 0.0, %v1403
    %1405 = vdwg.mxu0
    %1406 = vmatprep.subr.mxu0 %v853
    %1407 = vmatpush1.msra.mxu0 %v852
    %1408 = vmatprep.subr.mxu0 %v857
    %1409 = vmatpush1.msra.mxu0 %v856
    %1410 = vmatprep.subr.mxu0 %v861
    %1411 = vmatpush1.msra.mxu0 %v860
    %1412 = vmatprep.subr.mxu0 %v865
    %1413 = vmatpush1.msra.mxu0 %v864
    %1414 = vmatprep.subr.mxu0 %v869
    %1415 = vmatpush1.msra.mxu0 %v868
    %1416 = vmatprep.subr.mxu0 %v873
    %1417 = vmatpush1.msra.mxu0 %v872
    %1418 = vmatprep.subr.mxu0 %v877
    %1419 = vmatpush1.msra.mxu0 %v876
    %1420 = vmatprep.subr.mxu0 %v881
    %1421 = vmatpush1.msra.mxu0 %v880
    %1422 = vmatprep.subr.mxu0 %v885
    %1423 = vmatpush1.msra.mxu0 %v884
    %1424 = vmatprep.subr.mxu0 %v889
    %1425 = vmatpush1.msra.mxu0 %v888
    %1426 = vmatprep.subr.mxu0 %v893
    %1427 = vmatpush1.msra.mxu0 %v892
    %1428 = vmatprep.subr.mxu0 %v897
    %1429 = vmatpush1.msra.mxu0 %v896
    %1430 = vmatprep.subr.mxu0 %v901
    %1431 = vmatpush1.msra.mxu0 %v900
    %1432 = vmatprep.subr.mxu0 %v905
    %1433 = vmatpush1.msra.mxu0 %v904
    %1434 = vmatprep.subr.mxu0 %v909
    %1435 = vmatpush1.msra.mxu0 %v908
    %1436 = vmatprep.subr.mxu0 %v913
    %1437 = vmatpush1.msra.mxu0 %v912
    %1438 = vmatprep.subr.mxu0 0.0
    %1439 = vmatpush1.msra.mxu0 0.0
    %1440 = vmatprep.subr.mxu0 0.0
    %1441 = vmatpush1.msra.mxu0 0.0
    %1442 = vmatprep.subr.mxu0 0.0
    %1443 = vmatpush1.msra.mxu0 0.0
    %1444 = vmatprep.subr.mxu0 0.0
    %1445 = vmatpush1.msra.mxu0 0.0
    %1446 = vmatprep.subr.mxu0 0.0
    %1447 = vmatpush1.msra.mxu0 0.0
    %1448 = vmatprep.subr.mxu0 0.0
    %1449 = vmatpush1.msra.mxu0 0.0
    %1450 = vmatprep.subr.mxu0 0.0
    %1451 = vmatpush1.msra.mxu0 0.0
    %1452 = vmatprep.subr.mxu0 0.0
    %1453 = vmatpush1.msra.mxu0 0.0
    %1454 = vmatprep.subr.mxu0 0.0
    %1455 = vmatpush1.msra.mxu0 0.0
    %1456 = vmatprep.subr.mxu0 0.0
    %1457 = vmatpush1.msra.mxu0 0.0
    %1458 = vmatprep.subr.mxu0 0.0
    %1459 = vmatpush1.msra.mxu0 0.0
    %1460 = vmatprep.subr.mxu0 0.0
    %1461 = vmatpush1.msra.mxu0 0.0
    %1462 = vmatprep.subr.mxu0 0.0
    %1463 = vmatpush1.msra.mxu0 0.0
    %1464 = vmatprep.subr.mxu0 0.0
    %1465 = vmatpush1.msra.mxu0 0.0
    %1466 = vmatprep.subr.mxu0 0.0
    %1467 = vmatpush1.msra.mxu0 0.0
    %1468 = vmatprep.subr.mxu0 0.0
    %1469 = vmatpush1.msra.mxu0 0.0
    %1470 = vmatprep.mubr.f32.mxu0 0.0
    %1471 = vmatmul.mubr.f32.gmra.mrb[0].mxu0 %v1327
    %v1472 = vpop.f32.mrb[0].mxu0
    %v1473 = vadd.f32 0.0, %v1472
    %v1474 = vpop.f32.mrb[0].mxu0
    %v1475 = vadd.f32 0.0, %v1474
    %1476 = vdwg.mxu0
    %v1477 = vadd.f32 %v1331, %v1402
    %v1478 = vadd.f32 %v1332, %v1404
    %v1479 = vadd.f32 %v1333, %v1473
    %v1480 = vadd.f32 %v1334, %v1475
    %v1481 = vxor.u32 %v1477, 2147483648
    %v1482 = vmul.f32 %v1481, 1.442695
    %v1483 = vpow.pop %v1482
    %v1484 = vadd.f32 %v1483, 1.0
    %v1485 = vrcp.pop %v1484
    %v1486 = vmul.f32 1.0, %v1485
    %v1487 = vxor.u32 %v1478, 2147483648
    %v1488 = vmul.f32 %v1487, 1.442695
    %v1489 = vpow.pop %v1488
    %v1490 = vadd.f32 %v1489, 1.0
    %v1491 = vrcp.pop %v1490
    %v1492 = vmul.f32 1.0, %v1491
    %v1493 = vtanh.pop %v1479
    %v1494 = vxor.u32 %v1480, 2147483648
    %v1495 = vmul.f32 %v1494, 1.442695
    %v1496 = vpow.pop %v1495
    %v1497 = vadd.f32 %v1496, 1.0
    %v1498 = vrcp.pop %v1497
    %v1499 = vmul.f32 1.0, %v1498
    %v1500 = vmul.f32 %v1492, %v1325
    %v1501 = vmul.f32 %v1486, %v1493
    %v1502 = vadd.f32 %v1500, %v1501
    %v1503 = vtanh.pop %v1502
    %v1504 = vmul.f32 %v1499, %v1503
    %s1505 = scalar_lea.vmem [#allocation4], 16
    %1506 = vst [vmem:[%s1505] sm:$0xff] %v1504
    %s1507 = scalar_lea.vmem [#allocation2], 96
    %v1508 = vld [vmem:[%s1507] sm:$0xff]
    %v1509 = vld [vmem:[%s1507 + $0x8] sm:$0xff]
    %v1510 = vld [vmem:[%s1507 + $0x10] sm:$0xff]
    %v1511 = vld [vmem:[%s1507 + $0x18] sm:$0xff]
    %1512 = vmatprep.subr.mxu0 %v851
    %1513 = vmatpush1.msra.mxu0 %v850
    %1514 = vmatprep.subr.mxu0 %v855
    %1515 = vmatpush1.msra.mxu0 %v854
    %1516 = vmatprep.subr.mxu0 %v859
    %1517 = vmatpush1.msra.mxu0 %v858
    %1518 = vmatprep.subr.mxu0 %v863
    %1519 = vmatpush1.msra.mxu0 %v862
    %1520 = vmatprep.subr.mxu0 %v867
    %1521 = vmatpush1.msra.mxu0 %v866
    %1522 = vmatprep.subr.mxu0 %v871
    %1523 = vmatpush1.msra.mxu0 %v870
    %1524 = vmatprep.subr.mxu0 %v875
    %1525 = vmatpush1.msra.mxu0 %v874
    %1526 = vmatprep.subr.mxu0 %v879
    %1527 = vmatpush1.msra.mxu0 %v878
    %1528 = vmatprep.subr.mxu0 %v883
    %1529 = vmatpush1.msra.mxu0 %v882
    %1530 = vmatprep.subr.mxu0 %v887
    %1531 = vmatpush1.msra.mxu0 %v886
    %1532 = vmatprep.subr.mxu0 %v891
    %1533 = vmatpush1.msra.mxu0 %v890
    %1534 = vmatprep.subr.mxu0 %v895
    %1535 = vmatpush1.msra.mxu0 %v894
    %1536 = vmatprep.subr.mxu0 %v899
    %1537 = vmatpush1.msra.mxu0 %v898
    %1538 = vmatprep.subr.mxu0 %v903
    %1539 = vmatpush1.msra.mxu0 %v902
    %1540 = vmatprep.subr.mxu0 %v907
    %1541 = vmatpush1.msra.mxu0 %v906
    %1542 = vmatprep.subr.mxu0 %v911
    %1543 = vmatpush1.msra.mxu0 %v910
    %1544 = vmatprep.subr.mxu0 0.0
    %1545 = vmatpush1.msra.mxu0 0.0
    %1546 = vmatprep.subr.mxu0 0.0
    %1547 = vmatpush1.msra.mxu0 0.0
    %1548 = vmatprep.subr.mxu0 0.0
    %1549 = vmatpush1.msra.mxu0 0.0
    %1550 = vmatprep.subr.mxu0 0.0
    %1551 = vmatpush1.msra.mxu0 0.0
    %1552 = vmatprep.subr.mxu0 0.0
    %1553 = vmatpush1.msra.mxu0 0.0
    %1554 = vmatprep.subr.mxu0 0.0
    %1555 = vmatpush1.msra.mxu0 0.0
    %1556 = vmatprep.subr.mxu0 0.0
    %1557 = vmatpush1.msra.mxu0 0.0
    %1558 = vmatprep.subr.mxu0 0.0
    %1559 = vmatpush1.msra.mxu0 0.0
    %1560 = vmatprep.subr.mxu0 0.0
    %1561 = vmatpush1.msra.mxu0 0.0
    %1562 = vmatprep.subr.mxu0 0.0
    %1563 = vmatpush1.msra.mxu0 0.0
    %1564 = vmatprep.subr.mxu0 0.0
    %1565 = vmatpush1.msra.mxu0 0.0
    %1566 = vmatprep.subr.mxu0 0.0
    %1567 = vmatpush1.msra.mxu0 0.0
    %1568 = vmatprep.subr.mxu0 0.0
    %1569 = vmatpush1.msra.mxu0 0.0
    %1570 = vmatprep.subr.mxu0 0.0
    %1571 = vmatpush1.msra.mxu0 0.0
    %1572 = vmatprep.subr.mxu0 0.0
    %1573 = vmatpush1.msra.mxu0 0.0
    %1574 = vmatprep.subr.mxu0 0.0
    %1575 = vmatpush1.msra.mxu0 0.0
    %1576 = vmatprep.mubr.f32.mxu0 0.0
    %1577 = vmatmul.mubr.f32.gmra.mrb[0].mxu0 %v1504
    %v1578 = vpop.f32.mrb[0].mxu0
    %v1579 = vadd.f32 0.0, %v1578
    %v1580 = vpop.f32.mrb[0].mxu0
    %v1581 = vadd.f32 0.0, %v1580
    %1582 = vdwg.mxu0
    %1583 = vmatprep.subr.mxu0 %v853
    %1584 = vmatpush1.msra.mxu0 %v852
    %1585 = vmatprep.subr.mxu0 %v857
    %1586 = vmatpush1.msra.mxu0 %v856
    %1587 = vmatprep.subr.mxu0 %v861
    %1588 = vmatpush1.msra.mxu0 %v860
    %1589 = vmatprep.subr.mxu0 %v865
    %1590 = vmatpush1.msra.mxu0 %v864
    %1591 = vmatprep.subr.mxu0 %v869
    %1592 = vmatpush1.msra.mxu0 %v868
    %1593 = vmatprep.subr.mxu0 %v873
    %1594 = vmatpush1.msra.mxu0 %v872
    %1595 = vmatprep.subr.mxu0 %v877
    %1596 = vmatpush1.msra.mxu0 %v876
    %1597 = vmatprep.subr.mxu0 %v881
    %1598 = vmatpush1.msra.mxu0 %v880
    %1599 = vmatprep.subr.mxu0 %v885
    %1600 = vmatpush1.msra.mxu0 %v884
    %1601 = vmatprep.subr.mxu0 %v889
    %1602 = vmatpush1.msra.mxu0 %v888
    %1603 = vmatprep.subr.mxu0 %v893
    %1604 = vmatpush1.msra.mxu0 %v892
    %1605 = vmatprep.subr.mxu0 %v897
    %1606 = vmatpush1.msra.mxu0 %v896
    %1607 = vmatprep.subr.mxu0 %v901
    %1608 = vmatpush1.msra.mxu0 %v900
    %1609 = vmatprep.subr.mxu0 %v905
    %1610 = vmatpush1.msra.mxu0 %v904
    %1611 = vmatprep.subr.mxu0 %v909
    %1612 = vmatpush1.msra.mxu0 %v908
    %1613 = vmatprep.subr.mxu0 %v913
    %1614 = vmatpush1.msra.mxu0 %v912
    %1615 = vmatprep.subr.mxu0 0.0
    %1616 = vmatpush1.msra.mxu0 0.0
    %1617 = vmatprep.subr.mxu0 0.0
    %1618 = vmatpush1.msra.mxu0 0.0
    %1619 = vmatprep.subr.mxu0 0.0
    %1620 = vmatpush1.msra.mxu0 0.0
    %1621 = vmatprep.subr.mxu0 0.0
    %1622 = vmatpush1.msra.mxu0 0.0
    %1623 = vmatprep.subr.mxu0 0.0
    %1624 = vmatpush1.msra.mxu0 0.0
    %1625 = vmatprep.subr.mxu0 0.0
    %1626 = vmatpush1.msra.mxu0 0.0
    %1627 = vmatprep.subr.mxu0 0.0
    %1628 = vmatpush1.msra.mxu0 0.0
    %1629 = vmatprep.subr.mxu0 0.0
    %1630 = vmatpush1.msra.mxu0 0.0
    %1631 = vmatprep.subr.mxu0 0.0
    %1632 = vmatpush1.msra.mxu0 0.0
    %1633 = vmatprep.subr.mxu0 0.0
    %1634 = vmatpush1.msra.mxu0 0.0
    %1635 = vmatprep.subr.mxu0 0.0
    %1636 = vmatpush1.msra.mxu0 0.0
    %1637 = vmatprep.subr.mxu0 0.0
    %1638 = vmatpush1.msra.mxu0 0.0
    %1639 = vmatprep.subr.mxu0 0.0
    %1640 = vmatpush1.msra.mxu0 0.0
    %1641 = vmatprep.subr.mxu0 0.0
    %1642 = vmatpush1.msra.mxu0 0.0
    %1643 = vmatprep.subr.mxu0 0.0
    %1644 = vmatpush1.msra.mxu0 0.0
    %1645 = vmatprep.subr.mxu0 0.0
    %1646 = vmatpush1.msra.mxu0 0.0
    %1647 = vmatprep.mubr.f32.mxu0 0.0
    %1648 = vmatmul.mubr.f32.gmra.mrb[0].mxu0 %v1504
    %v1649 = vpop.f32.mrb[0].mxu0
    %v1650 = vadd.f32 0.0, %v1649
    %v1651 = vpop.f32.mrb[0].mxu0
    %v1652 = vadd.f32 0.0, %v1651
    %1653 = vdwg.mxu0
    %v1654 = vadd.f32 %v1508, %v1579
    %v1655 = vadd.f32 %v1509, %v1581
    %v1656 = vadd.f32 %v1510, %v1650
    %v1657 = vadd.f32 %v1511, %v1652
    %v1658 = vxor.u32 %v1654, 2147483648
    %v1659 = vmul.f32 %v1658, 1.442695
    %v1660 = vpow.pop %v1659
    %v1661 = vadd.f32 %v1660, 1.0
    %v1662 = vrcp.pop %v1661
    %v1663 = vmul.f32 1.0, %v1662
    %v1664 = vxor.u32 %v1655, 2147483648
    %v1665 = vmul.f32 %v1664, 1.442695
    %v1666 = vpow.pop %v1665
    %v1667 = vadd.f32 %v1666, 1.0
    %v1668 = vrcp.pop %v1667
    %v1669 = vmul.f32 1.0, %v1668
    %v1670 = vtanh.pop %v1656
    %v1671 = vxor.u32 %v1657, 2147483648
    %v1672 = vmul.f32 %v1671, 1.442695
    %v1673 = vpow.pop %v1672
    %v1674 = vadd.f32 %v1673, 1.0
    %v1675 = vrcp.pop %v1674
    %v1676 = vmul.f32 1.0, %v1675
    %v1677 = vmul.f32 %v1669, %v1502
    %v1678 = vmul.f32 %v1663, %v1670
    %v1679 = vadd.f32 %v1677, %v1678
    %v1680 = vtanh.pop %v1679
    %v1681 = vmul.f32 %v1676, %v1680
    %s1682 = scalar_lea.vmem [#allocation4], 24
    %1683 = vst [vmem:[%s1682] sm:$0xff] %v1681
    %s1684 = scalar_lea.vmem [#allocation2], 128
    %v1685 = vld [vmem:[%s1684] sm:$0xff]
    %v1686 = vld [vmem:[%s1684 + $0x8] sm:$0xff]
    %v1687 = vld [vmem:[%s1684 + $0x10] sm:$0xff]
    %v1688 = vld [vmem:[%s1684 + $0x18] sm:$0xff]
    %1689 = vmatprep.subr.mxu0 %v851
    %1690 = vmatpush1.msra.mxu0 %v850
    %1691 = vmatprep.subr.mxu0 %v855
    %1692 = vmatpush1.msra.mxu0 %v854
    %1693 = vmatprep.subr.mxu0 %v859
    %1694 = vmatpush1.msra.mxu0 %v858
    %1695 = vmatprep.subr.mxu0 %v863
    %1696 = vmatpush1.msra.mxu0 %v862
    %1697 = vmatprep.subr.mxu0 %v867
    %1698 = vmatpush1.msra.mxu0 %v866
    %1699 = vmatprep.subr.mxu0 %v871
    %1700 = vmatpush1.msra.mxu0 %v870
    %1701 = vmatprep.subr.mxu0 %v875
    %1702 = vmatpush1.msra.mxu0 %v874
    %1703 = vmatprep.subr.mxu0 %v879
    %1704 = vmatpush1.msra.mxu0 %v878
    %1705 = vmatprep.subr.mxu0 %v883
    %1706 = vmatpush1.msra.mxu0 %v882
    %1707 = vmatprep.subr.mxu0 %v887
    %1708 = vmatpush1.msra.mxu0 %v886
    %1709 = vmatprep.subr.mxu0 %v891
    %1710 = vmatpush1.msra.mxu0 %v890
    %1711 = vmatprep.subr.mxu0 %v895
    %1712 = vmatpush1.msra.mxu0 %v894
    %1713 = vmatprep.subr.mxu0 %v899
    %1714 = vmatpush1.msra.mxu0 %v898
    %1715 = vmatprep.subr.mxu0 %v903
    %1716 = vmatpush1.msra.mxu0 %v902
    %1717 = vmatprep.subr.mxu0 %v907
    %1718 = vmatpush1.msra.mxu0 %v906
    %1719 = vmatprep.subr.mxu0 %v911
    %1720 = vmatpush1.msra.mxu0 %v910
    %1721 = vmatprep.subr.mxu0 0.0
    %1722 = vmatpush1.msra.mxu0 0.0
    %1723 = vmatprep.subr.mxu0 0.0
    %1724 = vmatpush1.msra.mxu0 0.0
    %1725 = vmatprep.subr.mxu0 0.0
    %1726 = vmatpush1.msra.mxu0 0.0
    %1727 = vmatprep.subr.mxu0 0.0
    %1728 = vmatpush1.msra.mxu0 0.0
    %1729 = vmatprep.subr.mxu0 0.0
    %1730 = vmatpush1.msra.mxu0 0.0
    %1731 = vmatprep.subr.mxu0 0.0
    %1732 = vmatpush1.msra.mxu0 0.0
    %1733 = vmatprep.subr.mxu0 0.0
    %1734 = vmatpush1.msra.mxu0 0.0
    %1735 = vmatprep.subr.mxu0 0.0
    %1736 = vmatpush1.msra.mxu0 0.0
    %1737 = vmatprep.subr.mxu0 0.0
    %1738 = vmatpush1.msra.mxu0 0.0
    %1739 = vmatprep.subr.mxu0 0.0
    %1740 = vmatpush1.msra.mxu0 0.0
    %1741 = vmatprep.subr.mxu0 0.0
    %1742 = vmatpush1.msra.mxu0 0.0
    %1743 = vmatprep.subr.mxu0 0.0
    %1744 = vmatpush1.msra.mxu0 0.0
    %1745 = vmatprep.subr.mxu0 0.0
    %1746 = vmatpush1.msra.mxu0 0.0
    %1747 = vmatprep.subr.mxu0 0.0
    %1748 = vmatpush1.msra.mxu0 0.0
    %1749 = vmatprep.subr.mxu0 0.0
    %1750 = vmatpush1.msra.mxu0 0.0
    %1751 = vmatprep.subr.mxu0 0.0
    %1752 = vmatpush1.msra.mxu0 0.0
    %1753 = vmatprep.mubr.f32.mxu0 0.0
    %1754 = vmatmul.mubr.f32.gmra.mrb[0].mxu0 %v1681
    %v1755 = vpop.f32.mrb[0].mxu0
    %v1756 = vadd.f32 0.0, %v1755
    %v1757 = vpop.f32.mrb[0].mxu0
    %v1758 = vadd.f32 0.0, %v1757
    %1759 = vdwg.mxu0
    %1760 = vmatprep.subr.mxu0 %v853
    %1761 = vmatpush1.msra.mxu0 %v852
    %1762 = vmatprep.subr.mxu0 %v857
    %1763 = vmatpush1.msra.mxu0 %v856
    %1764 = vmatprep.subr.mxu0 %v861
    %1765 = vmatpush1.msra.mxu0 %v860
    %1766 = vmatprep.subr.mxu0 %v865
    %1767 = vmatpush1.msra.mxu0 %v864
    %1768 = vmatprep.subr.mxu0 %v869
    %1769 = vmatpush1.msra.mxu0 %v868
    %1770 = vmatprep.subr.mxu0 %v873
    %1771 = vmatpush1.msra.mxu0 %v872
    %1772 = vmatprep.subr.mxu0 %v877
    %1773 = vmatpush1.msra.mxu0 %v876
    %1774 = vmatprep.subr.mxu0 %v881
    %1775 = vmatpush1.msra.mxu0 %v880
    %1776 = vmatprep.subr.mxu0 %v885
    %1777 = vmatpush1.msra.mxu0 %v884
    %1778 = vmatprep.subr.mxu0 %v889
    %1779 = vmatpush1.msra.mxu0 %v888
    %1780 = vmatprep.subr.mxu0 %v893
    %1781 = vmatpush1.msra.mxu0 %v892
    %1782 = vmatprep.subr.mxu0 %v897
    %1783 = vmatpush1.msra.mxu0 %v896
    %1784 = vmatprep.subr.mxu0 %v901
    %1785 = vmatpush1.msra.mxu0 %v900
    %1786 = vmatprep.subr.mxu0 %v905
    %1787 = vmatpush1.msra.mxu0 %v904
    %1788 = vmatprep.subr.mxu0 %v909
    %1789 = vmatpush1.msra.mxu0 %v908
    %1790 = vmatprep.subr.mxu0 %v913
    %1791 = vmatpush1.msra.mxu0 %v912
    %1792 = vmatprep.subr.mxu0 0.0
    %1793 = vmatpush1.msra.mxu0 0.0
    %1794 = vmatprep.subr.mxu0 0.0
    %1795 = vmatpush1.msra.mxu0 0.0
    %1796 = vmatprep.subr.mxu0 0.0
    %1797 = vmatpush1.msra.mxu0 0.0
    %1798 = vmatprep.subr.mxu0 0.0
    %1799 = vmatpush1.msra.mxu0 0.0
    %1800 = vmatprep.subr.mxu0 0.0
    %1801 = vmatpush1.msra.mxu0 0.0
    %1802 = vmatprep.subr.mxu0 0.0
    %1803 = vmatpush1.msra.mxu0 0.0
    %1804 = vmatprep.subr.mxu0 0.0
    %1805 = vmatpush1.msra.mxu0 0.0
    %1806 = vmatprep.subr.mxu0 0.0
    %1807 = vmatpush1.msra.mxu0 0.0
    %1808 = vmatprep.subr.mxu0 0.0
    %1809 = vmatpush1.msra.mxu0 0.0
    %1810 = vmatprep.subr.mxu0 0.0
    %1811 = vmatpush1.msra.mxu0 0.0
    %1812 = vmatprep.subr.mxu0 0.0
    %1813 = vmatpush1.msra.mxu0 0.0
    %1814 = vmatprep.subr.mxu0 0.0
    %1815 = vmatpush1.msra.mxu0 0.0
    %1816 = vmatprep.subr.mxu0 0.0
    %1817 = vmatpush1.msra.mxu0 0.0
    %1818 = vmatprep.subr.mxu0 0.0
    %1819 = vmatpush1.msra.mxu0 0.0
    %1820 = vmatprep.subr.mxu0 0.0
    %1821 = vmatpush1.msra.mxu0 0.0
    %1822 = vmatprep.subr.mxu0 0.0
    %1823 = vmatpush1.msra.mxu0 0.0
    %1824 = vmatprep.mubr.f32.mxu0 0.0
    %1825 = vmatmul.mubr.f32.gmra.mrb[0].mxu0 %v1681
    %v1826 = vpop.f32.mrb[0].mxu0
    %v1827 = vadd.f32 0.0, %v1826
    %v1828 = vpop.f32.mrb[0].mxu0
    %v1829 = vadd.f32 0.0, %v1828
    %1830 = vdwg.mxu0
    %v1831 = vadd.f32 %v1685, %v1756
    %v1832 = vadd.f32 %v1686, %v1758
    %v1833 = vadd.f32 %v1687, %v1827
    %v1834 = vadd.f32 %v1688, %v1829
    %v1835 = vxor.u32 %v1831, 2147483648
    %v1836 = vmul.f32 %v1835, 1.442695
    %v1837 = vpow.pop %v1836
    %v1838 = vadd.f32 %v1837, 1.0
    %v1839 = vrcp.pop %v1838
    %v1840 = vmul.f32 1.0, %v1839
    %v1841 = vxor.u32 %v1832, 2147483648
    %v1842 = vmul.f32 %v1841, 1.442695
    %v1843 = vpow.pop %v1842
    %v1844 = vadd.f32 %v1843, 1.0
    %v1845 = vrcp.pop %v1844
    %v1846 = vmul.f32 1.0, %v1845
    %v1847 = vtanh.pop %v1833
    %v1848 = vxor.u32 %v1834, 2147483648
    %v1849 = vmul.f32 %v1848, 1.442695
    %v1850 = vpow.pop %v1849
    %v1851 = vadd.f32 %v1850, 1.0
    %v1852 = vrcp.pop %v1851
    %v1853 = vmul.f32 1.0, %v1852
    %v1854 = vmul.f32 %v1846, %v1679
    %v1855 = vmul.f32 %v1840, %v1847
    %v1856 = vadd.f32 %v1854, %v1855
    %v1857 = vtanh.pop %v1856
    %v1858 = vmul.f32 %v1853, %v1857
    %s1859 = scalar_lea.vmem [#allocation4], 32
    %1860 = vst [vmem:[%s1859] sm:$0xff] %v1858
    %s1861 = scalar_lea.vmem [#allocation2], 160
    %v1862 = vld [vmem:[%s1861] sm:$0xff]
    %v1863 = vld [vmem:[%s1861 + $0x8] sm:$0xff]
    %v1864 = vld [vmem:[%s1861 + $0x10] sm:$0xff]
    %v1865 = vld [vmem:[%s1861 + $0x18] sm:$0xff]
    %1866 = vmatprep.subr.mxu0 %v851
    %1867 = vmatpush1.msra.mxu0 %v850
    %1868 = vmatprep.subr.mxu0 %v855
    %1869 = vmatpush1.msra.mxu0 %v854
    %1870 = vmatprep.subr.mxu0 %v859
    %1871 = vmatpush1.msra.mxu0 %v858
    %1872 = vmatprep.subr.mxu0 %v863
    %1873 = vmatpush1.msra.mxu0 %v862
    %1874 = vmatprep.subr.mxu0 %v867
    %1875 = vmatpush1.msra.mxu0 %v866
    %1876 = vmatprep.subr.mxu0 %v871
    %1877 = vmatpush1.msra.mxu0 %v870
    %1878 = vmatprep.subr.mxu0 %v875
    %1879 = vmatpush1.msra.mxu0 %v874
    %1880 = vmatprep.subr.mxu0 %v879
    %1881 = vmatpush1.msra.mxu0 %v878
    %1882 = vmatprep.subr.mxu0 %v883
    %1883 = vmatpush1.msra.mxu0 %v882
    %1884 = vmatprep.subr.mxu0 %v887
    %1885 = vmatpush1.msra.mxu0 %v886
    %1886 = vmatprep.subr.mxu0 %v891
    %1887 = vmatpush1.msra.mxu0 %v890
    %1888 = vmatprep.subr.mxu0 %v895
    %1889 = vmatpush1.msra.mxu0 %v894
    %1890 = vmatprep.subr.mxu0 %v899
    %1891 = vmatpush1.msra.mxu0 %v898
    %1892 = vmatprep.subr.mxu0 %v903
    %1893 = vmatpush1.msra.mxu0 %v902
    %1894 = vmatprep.subr.mxu0 %v907
    %1895 = vmatpush1.msra.mxu0 %v906
    %1896 = vmatprep.subr.mxu0 %v911
    %1897 = vmatpush1.msra.mxu0 %v910
    %1898 = vmatprep.subr.mxu0 0.0
    %1899 = vmatpush1.msra.mxu0 0.0
    %1900 = vmatprep.subr.mxu0 0.0
    %1901 = vmatpush1.msra.mxu0 0.0
    %1902 = vmatprep.subr.mxu0 0.0
    %1903 = vmatpush1.msra.mxu0 0.0
    %1904 = vmatprep.subr.mxu0 0.0
    %1905 = vmatpush1.msra.mxu0 0.0
    %1906 = vmatprep.subr.mxu0 0.0
    %1907 = vmatpush1.msra.mxu0 0.0
    %1908 = vmatprep.subr.mxu0 0.0
    %1909 = vmatpush1.msra.mxu0 0.0
    %1910 = vmatprep.subr.mxu0 0.0
    %1911 = vmatpush1.msra.mxu0 0.0
    %1912 = vmatprep.subr.mxu0 0.0
    %1913 = vmatpush1.msra.mxu0 0.0
    %1914 = vmatprep.subr.mxu0 0.0
    %1915 = vmatpush1.msra.mxu0 0.0
    %1916 = vmatprep.subr.mxu0 0.0
    %1917 = vmatpush1.msra.mxu0 0.0
    %1918 = vmatprep.subr.mxu0 0.0
    %1919 = vmatpush1.msra.mxu0 0.0
    %1920 = vmatprep.subr.mxu0 0.0
    %1921 = vmatpush1.msra.mxu0 0.0
    %1922 = vmatprep.subr.mxu0 0.0
    %1923 = vmatpush1.msra.mxu0 0.0
    %1924 = vmatprep.subr.mxu0 0.0
    %1925 = vmatpush1.msra.mxu0 0.0
    %1926 = vmatprep.subr.mxu0 0.0
    %1927 = vmatpush1.msra.mxu0 0.0
    %1928 = vmatprep.subr.mxu0 0.0
    %1929 = vmatpush1.msra.mxu0 0.0
    %1930 = vmatprep.mubr.f32.mxu0 0.0
    %1931 = vmatmul.mubr.f32.gmra.mrb[0].mxu0 %v1858
    %v1932 = vpop.f32.mrb[0].mxu0
    %v1933 = vadd.f32 0.0, %v1932
    %v1934 = vpop.f32.mrb[0].mxu0
    %v1935 = vadd.f32 0.0, %v1934
    %1936 = vdwg.mxu0
    %1937 = vmatprep.subr.mxu0 %v853
    %1938 = vmatpush1.msra.mxu0 %v852
    %1939 = vmatprep.subr.mxu0 %v857
    %1940 = vmatpush1.msra.mxu0 %v856
    %1941 = vmatprep.subr.mxu0 %v861
    %1942 = vmatpush1.msra.mxu0 %v860
    %1943 = vmatprep.subr.mxu0 %v865
    %1944 = vmatpush1.msra.mxu0 %v864
    %1945 = vmatprep.subr.mxu0 %v869
    %1946 = vmatpush1.msra.mxu0 %v868
    %1947 = vmatprep.subr.mxu0 %v873
    %1948 = vmatpush1.msra.mxu0 %v872
    %1949 = vmatprep.subr.mxu0 %v877
    %1950 = vmatpush1.msra.mxu0 %v876
    %1951 = vmatprep.subr.mxu0 %v881
    %1952 = vmatpush1.msra.mxu0 %v880
    %1953 = vmatprep.subr.mxu0 %v885
    %1954 = vmatpush1.msra.mxu0 %v884
    %1955 = vmatprep.subr.mxu0 %v889
    %1956 = vmatpush1.msra.mxu0 %v888
    %1957 = vmatprep.subr.mxu0 %v893
    %1958 = vmatpush1.msra.mxu0 %v892
    %1959 = vmatprep.subr.mxu0 %v897
    %1960 = vmatpush1.msra.mxu0 %v896
    %1961 = vmatprep.subr.mxu0 %v901
    %1962 = vmatpush1.msra.mxu0 %v900
    %1963 = vmatprep.subr.mxu0 %v905
    %1964 = vmatpush1.msra.mxu0 %v904
    %1965 = vmatprep.subr.mxu0 %v909
    %1966 = vmatpush1.msra.mxu0 %v908
    %1967 = vmatprep.subr.mxu0 %v913
    %1968 = vmatpush1.msra.mxu0 %v912
    %1969 = vmatprep.subr.mxu0 0.0
    %1970 = vmatpush1.msra.mxu0 0.0
    %1971 = vmatprep.subr.mxu0 0.0
    %1972 = vmatpush1.msra.mxu0 0.0
    %1973 = vmatprep.subr.mxu0 0.0
    %1974 = vmatpush1.msra.mxu0 0.0
    %1975 = vmatprep.subr.mxu0 0.0
    %1976 = vmatpush1.msra.mxu0 0.0
    %1977 = vmatprep.subr.mxu0 0.0
    %1978 = vmatpush1.msra.mxu0 0.0
    %1979 = vmatprep.subr.mxu0 0.0
    %1980 = vmatpush1.msra.mxu0 0.0
    %1981 = vmatprep.subr.mxu0 0.0
    %1982 = vmatpush1.msra.mxu0 0.0
    %1983 = vmatprep.subr.mxu0 0.0
    %1984 = vmatpush1.msra.mxu0 0.0
    %1985 = vmatprep.subr.mxu0 0.0
    %1986 = vmatpush1.msra.mxu0 0.0
    %1987 = vmatprep.subr.mxu0 0.0
    %1988 = vmatpush1.msra.mxu0 0.0
    %1989 = vmatprep.subr.mxu0 0.0
    %1990 = vmatpush1.msra.mxu0 0.0
    %1991 = vmatprep.subr.mxu0 0.0
    %1992 = vmatpush1.msra.mxu0 0.0
    %1993 = vmatprep.subr.mxu0 0.0
    %1994 = vmatpush1.msra.mxu0 0.0
    %1995 = vmatprep.subr.mxu0 0.0
    %1996 = vmatpush1.msra.mxu0 0.0
    %1997 = vmatprep.subr.mxu0 0.0
    %1998 = vmatpush1.msra.mxu0 0.0
    %1999 = vmatprep.subr.mxu0 0.0
    %2000 = vmatpush1.msra.mxu0 0.0
    %2001 = vmatprep.mubr.f32.mxu0 0.0
    %2002 = vmatmul.mubr.f32.gmra.mrb[0].mxu0 %v1858
    %v2003 = vpop.f32.mrb[0].mxu0
    %v2004 = vadd.f32 0.0, %v2003
    %v2005 = vpop.f32.mrb[0].mxu0
    %v2006 = vadd.f32 0.0, %v2005
    %2007 = vdwg.mxu0
    %v2008 = vadd.f32 %v1862, %v1933
    %v2009 = vadd.f32 %v1863, %v1935
    %v2010 = vadd.f32 %v1864, %v2004
    %v2011 = vadd.f32 %v1865, %v2006
    %v2012 = vxor.u32 %v2008, 2147483648
    %v2013 = vmul.f32 %v2012, 1.442695
    %v2014 = vpow.pop %v2013
    %v2015 = vadd.f32 %v2014, 1.0
    %v2016 = vrcp.pop %v2015
    %v2017 = vmul.f32 1.0, %v2016
    %v2018 = vxor.u32 %v2009, 2147483648
    %v2019 = vmul.f32 %v2018, 1.442695
    %v2020 = vpow.pop %v2019
    %v2021 = vadd.f32 %v2020, 1.0
    %v2022 = vrcp.pop %v2021
    %v2023 = vmul.f32 1.0, %v2022
    %v2024 = vtanh.pop %v2010
    %v2025 = vxor.u32 %v2011, 2147483648
    %v2026 = vmul.f32 %v2025, 1.442695
    %v2027 = vpow.pop %v2026
    %v2028 = vadd.f32 %v2027, 1.0
    %v2029 = vrcp.pop %v2028
    %v2030 = vmul.f32 1.0, %v2029
    %v2031 = vmul.f32 %v2023, %v1856
    %v2032 = vmul.f32 %v2017, %v2024
    %v2033 = vadd.f32 %v2031, %v2032
    %v2034 = vtanh.pop %v2033
    %v2035 = vmul.f32 %v2030, %v2034
    %s2036 = scalar_lea.vmem [#allocation4], 40
    %2037 = vst [vmem:[%s2036] sm:$0xff] %v2035
    %s2038 = scalar_lea.vmem [#allocation2], 192
    %v2039 = vld [vmem:[%s2038] sm:$0xff]
    %v2040 = vld [vmem:[%s2038 + $0x8] sm:$0xff]
    %v2041 = vld [vmem:[%s2038 + $0x10] sm:$0xff]
    %v2042 = vld [vmem:[%s2038 + $0x18] sm:$0xff]
    %2043 = vmatprep.subr.mxu0 %v851
    %2044 = vmatpush1.msra.mxu0 %v850
    %2045 = vmatprep.subr.mxu0 %v855
    %2046 = vmatpush1.msra.mxu0 %v854
    %2047 = vmatprep.subr.mxu0 %v859
    %2048 = vmatpush1.msra.mxu0 %v858
    %2049 = vmatprep.subr.mxu0 %v863
    %2050 = vmatpush1.msra.mxu0 %v862
    %2051 = vmatprep.subr.mxu0 %v867
    %2052 = vmatpush1.msra.mxu0 %v866
    %2053 = vmatprep.subr.mxu0 %v871
    %2054 = vmatpush1.msra.mxu0 %v870
    %2055 = vmatprep.subr.mxu0 %v875
    %2056 = vmatpush1.msra.mxu0 %v874
    %2057 = vmatprep.subr.mxu0 %v879
    %2058 = vmatpush1.msra.mxu0 %v878
    %2059 = vmatprep.subr.mxu0 %v883
    %2060 = vmatpush1.msra.mxu0 %v882
    %2061 = vmatprep.subr.mxu0 %v887
    %2062 = vmatpush1.msra.mxu0 %v886
    %2063 = vmatprep.subr.mxu0 %v891
    %2064 = vmatpush1.msra.mxu0 %v890
    %2065 = vmatprep.subr.mxu0 %v895
    %2066 = vmatpush1.msra.mxu0 %v894
    %2067 = vmatprep.subr.mxu0 %v899
    %2068 = vmatpush1.msra.mxu0 %v898
    %2069 = vmatprep.subr.mxu0 %v903
    %2070 = vmatpush1.msra.mxu0 %v902
    %2071 = vmatprep.subr.mxu0 %v907
    %2072 = vmatpush1.msra.mxu0 %v906
    %2073 = vmatprep.subr.mxu0 %v911
    %2074 = vmatpush1.msra.mxu0 %v910
    %2075 = vmatprep.subr.mxu0 0.0
    %2076 = vmatpush1.msra.mxu0 0.0
    %2077 = vmatprep.subr.mxu0 0.0
    %2078 = vmatpush1.msra.mxu0 0.0
    %2079 = vmatprep.subr.mxu0 0.0
    %2080 = vmatpush1.msra.mxu0 0.0
    %2081 = vmatprep.subr.mxu0 0.0
    %2082 = vmatpush1.msra.mxu0 0.0
    %2083 = vmatprep.subr.mxu0 0.0
    %2084 = vmatpush1.msra.mxu0 0.0
    %2085 = vmatprep.subr.mxu0 0.0
    %2086 = vmatpush1.msra.mxu0 0.0
    %2087 = vmatprep.subr.mxu0 0.0
    %2088 = vmatpush1.msra.mxu0 0.0
    %2089 = vmatprep.subr.mxu0 0.0
    %2090 = vmatpush1.msra.mxu0 0.0
    %2091 = vmatprep.subr.mxu0 0.0
    %2092 = vmatpush1.msra.mxu0 0.0
    %2093 = vmatprep.subr.mxu0 0.0
    %2094 = vmatpush1.msra.mxu0 0.0
    %2095 = vmatprep.subr.mxu0 0.0
    %2096 = vmatpush1.msra.mxu0 0.0
    %2097 = vmatprep.subr.mxu0 0.0
    %2098 = vmatpush1.msra.mxu0 0.0
    %2099 = vmatprep.subr.mxu0 0.0
    %2100 = vmatpush1.msra.mxu0 0.0
    %2101 = vmatprep.subr.mxu0 0.0
    %2102 = vmatpush1.msra.mxu0 0.0
    %2103 = vmatprep.subr.mxu0 0.0
    %2104 = vmatpush1.msra.mxu0 0.0
    %2105 = vmatprep.subr.mxu0 0.0
    %2106 = vmatpush1.msra.mxu0 0.0
    %2107 = vmatprep.mubr.f32.mxu0 0.0
    %2108 = vmatmul.mubr.f32.gmra.mrb[0].mxu0 %v2035
    %v2109 = vpop.f32.mrb[0].mxu0
    %v2110 = vadd.f32 0.0, %v2109
    %v2111 = vpop.f32.mrb[0].mxu0
    %v2112 = vadd.f32 0.0, %v2111
    %2113 = vdwg.mxu0
    %2114 = vmatprep.subr.mxu0 %v853
    %2115 = vmatpush1.msra.mxu0 %v852
    %2116 = vmatprep.subr.mxu0 %v857
    %2117 = vmatpush1.msra.mxu0 %v856
    %2118 = vmatprep.subr.mxu0 %v861
    %2119 = vmatpush1.msra.mxu0 %v860
    %2120 = vmatprep.subr.mxu0 %v865
    %2121 = vmatpush1.msra.mxu0 %v864
    %2122 = vmatprep.subr.mxu0 %v869
    %2123 = vmatpush1.msra.mxu0 %v868
    %2124 = vmatprep.subr.mxu0 %v873
    %2125 = vmatpush1.msra.mxu0 %v872
    %2126 = vmatprep.subr.mxu0 %v877
    %2127 = vmatpush1.msra.mxu0 %v876
    %2128 = vmatprep.subr.mxu0 %v881
    %2129 = vmatpush1.msra.mxu0 %v880
    %2130 = vmatprep.subr.mxu0 %v885
    %2131 = vmatpush1.msra.mxu0 %v884
    %2132 = vmatprep.subr.mxu0 %v889
    %2133 = vmatpush1.msra.mxu0 %v888
    %2134 = vmatprep.subr.mxu0 %v893
    %2135 = vmatpush1.msra.mxu0 %v892
    %2136 = vmatprep.subr.mxu0 %v897
    %2137 = vmatpush1.msra.mxu0 %v896
    %2138 = vmatprep.subr.mxu0 %v901
    %2139 = vmatpush1.msra.mxu0 %v900
    %2140 = vmatprep.subr.mxu0 %v905
    %2141 = vmatpush1.msra.mxu0 %v904
    %2142 = vmatprep.subr.mxu0 %v909
    %2143 = vmatpush1.msra.mxu0 %v908
    %2144 = vmatprep.subr.mxu0 %v913
    %2145 = vmatpush1.msra.mxu0 %v912
    %2146 = vmatprep.subr.mxu0 0.0
    %2147 = vmatpush1.msra.mxu0 0.0
    %2148 = vmatprep.subr.mxu0 0.0
    %2149 = vmatpush1.msra.mxu0 0.0
    %2150 = vmatprep.subr.mxu0 0.0
    %2151 = vmatpush1.msra.mxu0 0.0
    %2152 = vmatprep.subr.mxu0 0.0
    %2153 = vmatpush1.msra.mxu0 0.0
    %2154 = vmatprep.subr.mxu0 0.0
    %2155 = vmatpush1.msra.mxu0 0.0
    %2156 = vmatprep.subr.mxu0 0.0
    %2157 = vmatpush1.msra.mxu0 0.0
    %2158 = vmatprep.subr.mxu0 0.0
    %2159 = vmatpush1.msra.mxu0 0.0
    %2160 = vmatprep.subr.mxu0 0.0
    %2161 = vmatpush1.msra.mxu0 0.0
    %2162 = vmatprep.subr.mxu0 0.0
    %2163 = vmatpush1.msra.mxu0 0.0
    %2164 = vmatprep.subr.mxu0 0.0
    %2165 = vmatpush1.msra.mxu0 0.0
    %2166 = vmatprep.subr.mxu0 0.0
    %2167 = vmatpush1.msra.mxu0 0.0
    %2168 = vmatprep.subr.mxu0 0.0
    %2169 = vmatpush1.msra.mxu0 0.0
    %2170 = vmatprep.subr.mxu0 0.0
    %2171 = vmatpush1.msra.mxu0 0.0
    %2172 = vmatprep.subr.mxu0 0.0
    %2173 = vmatpush1.msra.mxu0 0.0
    %2174 = vmatprep.subr.mxu0 0.0
    %2175 = vmatpush1.msra.mxu0 0.0
    %2176 = vmatprep.subr.mxu0 0.0
    %2177 = vmatpush1.msra.mxu0 0.0
    %2178 = vmatprep.mubr.f32.mxu0 0.0
    %2179 = vmatmul.mubr.f32.gmra.mrb[0].mxu0 %v2035
    %v2180 = vpop.f32.mrb[0].mxu0
    %v2181 = vadd.f32 0.0, %v2180
    %v2182 = vpop.f32.mrb[0].mxu0
    %v2183 = vadd.f32 0.0, %v2182
    %2184 = vdwg.mxu0
    %v2185 = vadd.f32 %v2039, %v2110
    %v2186 = vadd.f32 %v2040, %v2112
    %v2187 = vadd.f32 %v2041, %v2181
    %v2188 = vadd.f32 %v2042, %v2183
    %v2189 = vxor.u32 %v2185, 2147483648
    %v2190 = vmul.f32 %v2189, 1.442695
    %v2191 = vpow.pop %v2190
    %v2192 = vadd.f32 %v2191, 1.0
    %v2193 = vrcp.pop %v2192
    %v2194 = vmul.f32 1.0, %v2193
    %v2195 = vxor.u32 %v2186, 2147483648
    %v2196 = vmul.f32 %v2195, 1.442695
    %v2197 = vpow.pop %v2196
    %v2198 = vadd.f32 %v2197, 1.0
    %v2199 = vrcp.pop %v2198
    %v2200 = vmul.f32 1.0, %v2199
    %v2201 = vtanh.pop %v2187
    %v2202 = vxor.u32 %v2188, 2147483648
    %v2203 = vmul.f32 %v2202, 1.442695
    %v2204 = vpow.pop %v2203
    %v2205 = vadd.f32 %v2204, 1.0
    %v2206 = vrcp.pop %v2205
    %v2207 = vmul.f32 1.0, %v2206
    %v2208 = vmul.f32 %v2200, %v2033
    %v2209 = vmul.f32 %v2194, %v2201
    %v2210 = vadd.f32 %v2208, %v2209
    %v2211 = vtanh.pop %v2210
    %v2212 = vmul.f32 %v2207, %v2211
    %s2213 = scalar_lea.vmem [#allocation4], 48
    %2214 = vst [vmem:[%s2213] sm:$0xff] %v2212
    %s2215 = scalar_lea.vmem [#allocation2], 224
    %v2216 = vld [vmem:[%s2215] sm:$0xff]
    %v2217 = vld [vmem:[%s2215 + $0x8] sm:$0xff]
    %v2218 = vld [vmem:[%s2215 + $0x10] sm:$0xff]
    %v2219 = vld [vmem:[%s2215 + $0x18] sm:$0xff]
    %2220 = vmatprep.subr.mxu0 %v851
    %2221 = vmatpush1.msra.mxu0 %v850
    %2222 = vmatprep.subr.mxu0 %v855
    %2223 = vmatpush1.msra.mxu0 %v854
    %2224 = vmatprep.subr.mxu0 %v859
    %2225 = vmatpush1.msra.mxu0 %v858
    %2226 = vmatprep.subr.mxu0 %v863
    %2227 = vmatpush1.msra.mxu0 %v862
    %2228 = vmatprep.subr.mxu0 %v867
    %2229 = vmatpush1.msra.mxu0 %v866
    %2230 = vmatprep.subr.mxu0 %v871
    %2231 = vmatpush1.msra.mxu0 %v870
    %2232 = vmatprep.subr.mxu0 %v875
    %2233 = vmatpush1.msra.mxu0 %v874
    %2234 = vmatprep.subr.mxu0 %v879
    %2235 = vmatpush1.msra.mxu0 %v878
    %2236 = vmatprep.subr.mxu0 %v883
    %2237 = vmatpush1.msra.mxu0 %v882
    %2238 = vmatprep.subr.mxu0 %v887
    %2239 = vmatpush1.msra.mxu0 %v886
    %2240 = vmatprep.subr.mxu0 %v891
    %2241 = vmatpush1.msra.mxu0 %v890
    %2242 = vmatprep.subr.mxu0 %v895
    %2243 = vmatpush1.msra.mxu0 %v894
    %2244 = vmatprep.subr.mxu0 %v899
    %2245 = vmatpush1.msra.mxu0 %v898
    %2246 = vmatprep.subr.mxu0 %v903
    %2247 = vmatpush1.msra.mxu0 %v902
    %2248 = vmatprep.subr.mxu0 %v907
    %2249 = vmatpush1.msra.mxu0 %v906
    %2250 = vmatprep.subr.mxu0 %v911
    %2251 = vmatpush1.msra.mxu0 %v910
    %2252 = vmatprep.subr.mxu0 0.0
    %2253 = vmatpush1.msra.mxu0 0.0
    %2254 = vmatprep.subr.mxu0 0.0
    %2255 = vmatpush1.msra.mxu0 0.0
    %2256 = vmatprep.subr.mxu0 0.0
    %2257 = vmatpush1.msra.mxu0 0.0
    %2258 = vmatprep.subr.mxu0 0.0
    %2259 = vmatpush1.msra.mxu0 0.0
    %2260 = vmatprep.subr.mxu0 0.0
    %2261 = vmatpush1.msra.mxu0 0.0
    %2262 = vmatprep.subr.mxu0 0.0
    %2263 = vmatpush1.msra.mxu0 0.0
    %2264 = vmatprep.subr.mxu0 0.0
    %2265 = vmatpush1.msra.mxu0 0.0
    %2266 = vmatprep.subr.mxu0 0.0
    %2267 = vmatpush1.msra.mxu0 0.0
    %2268 = vmatprep.subr.mxu0 0.0
    %2269 = vmatpush1.msra.mxu0 0.0
    %2270 = vmatprep.subr.mxu0 0.0
    %2271 = vmatpush1.msra.mxu0 0.0
    %2272 = vmatprep.subr.mxu0 0.0
    %2273 = vmatpush1.msra.mxu0 0.0
    %2274 = vmatprep.subr.mxu0 0.0
    %2275 = vmatpush1.msra.mxu0 0.0
    %2276 = vmatprep.subr.mxu0 0.0
    %2277 = vmatpush1.msra.mxu0 0.0
    %2278 = vmatprep.subr.mxu0 0.0
    %2279 = vmatpush1.msra.mxu0 0.0
    %2280 = vmatprep.subr.mxu0 0.0
    %2281 = vmatpush1.msra.mxu0 0.0
    %2282 = vmatprep.subr.mxu0 0.0
    %2283 = vmatpush1.msra.mxu0 0.0
    %2284 = vmatprep.mubr.f32.mxu0 0.0
    %2285 = vmatmul.mubr.f32.gmra.mrb[0].mxu0 %v2212
    %v2286 = vpop.f32.mrb[0].mxu0
    %v2287 = vadd.f32 0.0, %v2286
    %v2288 = vpop.f32.mrb[0].mxu0
    %v2289 = vadd.f32 0.0, %v2288
    %2290 = vdwg.mxu0
    %2291 = vmatprep.subr.mxu0 %v853
    %2292 = vmatpush1.msra.mxu0 %v852
    %2293 = vmatprep.subr.mxu0 %v857
    %2294 = vmatpush1.msra.mxu0 %v856
    %2295 = vmatprep.subr.mxu0 %v861
    %2296 = vmatpush1.msra.mxu0 %v860
    %2297 = vmatprep.subr.mxu0 %v865
    %2298 = vmatpush1.msra.mxu0 %v864
    %2299 = vmatprep.subr.mxu0 %v869
    %2300 = vmatpush1.msra.mxu0 %v868
    %2301 = vmatprep.subr.mxu0 %v873
    %2302 = vmatpush1.msra.mxu0 %v872
    %2303 = vmatprep.subr.mxu0 %v877
    %2304 = vmatpush1.msra.mxu0 %v876
    %2305 = vmatprep.subr.mxu0 %v881
    %2306 = vmatpush1.msra.mxu0 %v880
    %2307 = vmatprep.subr.mxu0 %v885
    %2308 = vmatpush1.msra.mxu0 %v884
    %2309 = vmatprep.subr.mxu0 %v889
    %2310 = vmatpush1.msra.mxu0 %v888
    %2311 = vmatprep.subr.mxu0 %v893
    %2312 = vmatpush1.msra.mxu0 %v892
    %2313 = vmatprep.subr.mxu0 %v897
    %2314 = vmatpush1.msra.mxu0 %v896
    %2315 = vmatprep.subr.mxu0 %v901
    %2316 = vmatpush1.msra.mxu0 %v900
    %2317 = vmatprep.subr.mxu0 %v905
    %2318 = vmatpush1.msra.mxu0 %v904
    %2319 = vmatprep.subr.mxu0 %v909
    %2320 = vmatpush1.msra.mxu0 %v908
    %2321 = vmatprep.subr.mxu0 %v913
    %2322 = vmatpush1.msra.mxu0 %v912
    %2323 = vmatprep.subr.mxu0 0.0
    %2324 = vmatpush1.msra.mxu0 0.0
    %2325 = vmatprep.subr.mxu0 0.0
    %2326 = vmatpush1.msra.mxu0 0.0
    %2327 = vmatprep.subr.mxu0 0.0
    %2328 = vmatpush1.msra.mxu0 0.0
    %2329 = vmatprep.subr.mxu0 0.0
    %2330 = vmatpush1.msra.mxu0 0.0
    %2331 = vmatprep.subr.mxu0 0.0
    %2332 = vmatpush1.msra.mxu0 0.0
    %2333 = vmatprep.subr.mxu0 0.0
    %2334 = vmatpush1.msra.mxu0 0.0
    %2335 = vmatprep.subr.mxu0 0.0
    %2336 = vmatpush1.msra.mxu0 0.0
    %2337 = vmatprep.subr.mxu0 0.0
    %2338 = vmatpush1.msra.mxu0 0.0
    %2339 = vmatprep.subr.mxu0 0.0
    %2340 = vmatpush1.msra.mxu0 0.0
    %2341 = vmatprep.subr.mxu0 0.0
    %2342 = vmatpush1.msra.mxu0 0.0
    %2343 = vmatprep.subr.mxu0 0.0
    %2344 = vmatpush1.msra.mxu0 0.0
    %2345 = vmatprep.subr.mxu0 0.0
    %2346 = vmatpush1.msra.mxu0 0.0
    %2347 = vmatprep.subr.mxu0 0.0
    %2348 = vmatpush1.msra.mxu0 0.0
    %2349 = vmatprep.subr.mxu0 0.0
    %2350 = vmatpush1.msra.mxu0 0.0
    %2351 = vmatprep.subr.mxu0 0.0
    %2352 = vmatpush1.msra.mxu0 0.0
    %2353 = vmatprep.subr.mxu0 0.0
    %2354 = vmatpush1.msra.mxu0 0.0
    %2355 = vmatprep.mubr.f32.mxu0 0.0
    %2356 = vmatmul.mubr.f32.gmra.mrb[0].mxu0 %v2212
    %v2357 = vpop.f32.mrb[0].mxu0
    %v2358 = vadd.f32 0.0, %v2357
    %v2359 = vpop.f32.mrb[0].mxu0
    %v2360 = vadd.f32 0.0, %v2359
    %2361 = vdwg.mxu0
    %v2362 = vadd.f32 %v2216, %v2287
    %v2363 = vadd.f32 %v2217, %v2289
    %v2364 = vadd.f32 %v2218, %v2358
    %v2365 = vadd.f32 %v2219, %v2360
    %v2366 = vxor.u32 %v2362, 2147483648
    %v2367 = vmul.f32 %v2366, 1.442695
    %v2368 = vpow.pop %v2367
    %v2369 = vadd.f32 %v2368, 1.0
    %v2370 = vrcp.pop %v2369
    %v2371 = vmul.f32 1.0, %v2370
    %v2372 = vxor.u32 %v2363, 2147483648
    %v2373 = vmul.f32 %v2372, 1.442695
    %v2374 = vpow.pop %v2373
    %v2375 = vadd.f32 %v2374, 1.0
    %v2376 = vrcp.pop %v2375
    %v2377 = vmul.f32 1.0, %v2376
    %v2378 = vtanh.pop %v2364
    %v2379 = vxor.u32 %v2365, 2147483648
    %v2380 = vmul.f32 %v2379, 1.442695
    %v2381 = vpow.pop %v2380
    %v2382 = vadd.f32 %v2381, 1.0
    %v2383 = vrcp.pop %v2382
    %v2384 = vmul.f32 1.0, %v2383
    %v2385 = vmul.f32 %v2377, %v2210
    %v2386 = vmul.f32 %v2371, %v2378
    %v2387 = vadd.f32 %v2385, %v2386
    %v2388 = vtanh.pop %v2387
    %v2389 = vmul.f32 %v2384, %v2388
    %s2390 = scalar_lea.vmem [#allocation4], 56
    %2391 = vst [vmem:[%s2390] sm:$0xff] %v2389
    %s2392 = scalar_lea.vmem [#allocation3], 224
    %v2393 = vld [vmem:[%s2392] sm:$0xff]
    %v2394 = vld [vmem:[%s2392 + $0x8] sm:$0xff]
    %v2395 = vld [vmem:[%s2392 + $0x10] sm:$0xff]
    %v2396 = vld [vmem:[%s2392 + $0x18] sm:$0xff]
    %2397 = vmatprep.subr.mxu0 %v915
    %2398 = vmatpush1.msra.mxu0 %v914
    %2399 = vmatprep.subr.mxu0 %v919
    %2400 = vmatpush1.msra.mxu0 %v918
    %2401 = vmatprep.subr.mxu0 %v923
    %2402 = vmatpush1.msra.mxu0 %v922
    %2403 = vmatprep.subr.mxu0 %v927
    %2404 = vmatpush1.msra.mxu0 %v926
    %2405 = vmatprep.subr.mxu0 %v931
    %2406 = vmatpush1.msra.mxu0 %v930
    %2407 = vmatprep.subr.mxu0 %v935
    %2408 = vmatpush1.msra.mxu0 %v934
    %2409 = vmatprep.subr.mxu0 %v939
    %2410 = vmatpush1.msra.mxu0 %v938
    %2411 = vmatprep.subr.mxu0 %v943
    %2412 = vmatpush1.msra.mxu0 %v942
    %2413 = vmatprep.subr.mxu0 %v947
    %2414 = vmatpush1.msra.mxu0 %v946
    %2415 = vmatprep.subr.mxu0 %v951
    %2416 = vmatpush1.msra.mxu0 %v950
    %2417 = vmatprep.subr.mxu0 %v955
    %2418 = vmatpush1.msra.mxu0 %v954
    %2419 = vmatprep.subr.mxu0 %v959
    %2420 = vmatpush1.msra.mxu0 %v958
    %2421 = vmatprep.subr.mxu0 %v963
    %2422 = vmatpush1.msra.mxu0 %v962
    %2423 = vmatprep.subr.mxu0 %v967
    %2424 = vmatpush1.msra.mxu0 %v966
    %2425 = vmatprep.subr.mxu0 %v971
    %2426 = vmatpush1.msra.mxu0 %v970
    %2427 = vmatprep.subr.mxu0 %v975
    %2428 = vmatpush1.msra.mxu0 %v974
    %2429 = vmatprep.subr.mxu0 0.0
    %2430 = vmatpush1.msra.mxu0 0.0
    %2431 = vmatprep.subr.mxu0 0.0
    %2432 = vmatpush1.msra.mxu0 0.0
    %2433 = vmatprep.subr.mxu0 0.0
    %2434 = vmatpush1.msra.mxu0 0.0
    %2435 = vmatprep.subr.mxu0 0.0
    %2436 = vmatpush1.msra.mxu0 0.0
    %2437 = vmatprep.subr.mxu0 0.0
    %2438 = vmatpush1.msra.mxu0 0.0
    %2439 = vmatprep.subr.mxu0 0.0
    %2440 = vmatpush1.msra.mxu0 0.0
    %2441 = vmatprep.subr.mxu0 0.0
    %2442 = vmatpush1.msra.mxu0 0.0
    %2443 = vmatprep.subr.mxu0 0.0
    %2444 = vmatpush1.msra.mxu0 0.0
    %2445 = vmatprep.subr.mxu0 0.0
    %2446 = vmatpush1.msra.mxu0 0.0
    %2447 = vmatprep.subr.mxu0 0.0
    %2448 = vmatpush1.msra.mxu0 0.0
    %2449 = vmatprep.subr.mxu0 0.0
    %2450 = vmatpush1.msra.mxu0 0.0
    %2451 = vmatprep.subr.mxu0 0.0
    %2452 = vmatpush1.msra.mxu0 0.0
    %2453 = vmatprep.subr.mxu0 0.0
    %2454 = vmatpush1.msra.mxu0 0.0
    %2455 = vmatprep.subr.mxu0 0.0
    %2456 = vmatpush1.msra.mxu0 0.0
    %2457 = vmatprep.subr.mxu0 0.0
    %2458 = vmatpush1.msra.mxu0 0.0
    %2459 = vmatprep.subr.mxu0 0.0
    %2460 = vmatpush1.msra.mxu0 0.0
    %2461 = vmatprep.mubr.f32.mxu0 0.0
    %2462 = vmatmul.mubr.f32.gmra.mrb[0].mxu0 0.0
    %v2463 = vpop.f32.mrb[0].mxu0
    %v2464 = vadd.f32 0.0, %v2463
    %v2465 = vpop.f32.mrb[0].mxu0
    %v2466 = vadd.f32 0.0, %v2465
    %2467 = vdwg.mxu0
    %2468 = vmatprep.subr.mxu0 %v917
    %2469 = vmatpush1.msra.mxu0 %v916
    %2470 = vmatprep.subr.mxu0 %v921
    %2471 = vmatpush1.msra.mxu0 %v920
    %2472 = vmatprep.subr.mxu0 %v925
    %2473 = vmatpush1.msra.mxu0 %v924
    %2474 = vmatprep.subr.mxu0 %v929
    %2475 = vmatpush1.msra.mxu0 %v928
    %2476 = vmatprep.subr.mxu0 %v933
    %2477 = vmatpush1.msra.mxu0 %v932
    %2478 = vmatprep.subr.mxu0 %v937
    %2479 = vmatpush1.msra.mxu0 %v936
    %2480 = vmatprep.subr.mxu0 %v941
    %2481 = vmatpush1.msra.mxu0 %v940
    %2482 = vmatprep.subr.mxu0 %v945
    %2483 = vmatpush1.msra.mxu0 %v944
    %2484 = vmatprep.subr.mxu0 %v949
    %2485 = vmatpush1.msra.mxu0 %v948
    %2486 = vmatprep.subr.mxu0 %v953
    %2487 = vmatpush1.msra.mxu0 %v952
    %2488 = vmatprep.subr.mxu0 %v957
    %2489 = vmatpush1.msra.mxu0 %v956
    %2490 = vmatprep.subr.mxu0 %v961
    %2491 = vmatpush1.msra.mxu0 %v960
    %2492 = vmatprep.subr.mxu0 %v965
    %2493 = vmatpush1.msra.mxu0 %v964
    %2494 = vmatprep.subr.mxu0 %v969
    %2495 = vmatpush1.msra.mxu0 %v968
    %2496 = vmatprep.subr.mxu0 %v973
    %2497 = vmatpush1.msra.mxu0 %v972
    %2498 = vmatprep.subr.mxu0 %v977
    %2499 = vmatpush1.msra.mxu0 %v976
    %2500 = vmatprep.subr.mxu0 0.0
    %2501 = vmatpush1.msra.mxu0 0.0
    %2502 = vmatprep.subr.mxu0 0.0
    %2503 = vmatpush1.msra.mxu0 0.0
    %2504 = vmatprep.subr.mxu0 0.0
    %2505 = vmatpush1.msra.mxu0 0.0
    %2506 = vmatprep.subr.mxu0 0.0
    %2507 = vmatpush1.msra.mxu0 0.0
    %2508 = vmatprep.subr.mxu0 0.0
    %2509 = vmatpush1.msra.mxu0 0.0
    %2510 = vmatprep.subr.mxu0 0.0
    %2511 = vmatpush1.msra.mxu0 0.0
    %2512 = vmatprep.subr.mxu0 0.0
    %2513 = vmatpush1.msra.mxu0 0.0
    %2514 = vmatprep.subr.mxu0 0.0
    %2515 = vmatpush1.msra.mxu0 0.0
    %2516 = vmatprep.subr.mxu0 0.0
    %2517 = vmatpush1.msra.mxu0 0.0
    %2518 = vmatprep.subr.mxu0 0.0
    %2519 = vmatpush1.msra.mxu0 0.0
    %2520 = vmatprep.subr.mxu0 0.0
    %2521 = vmatpush1.msra.mxu0 0.0
    %2522 = vmatprep.subr.mxu0 0.0
    %2523 = vmatpush1.msra.mxu0 0.0
    %2524 = vmatprep.subr.mxu0 0.0
    %2525 = vmatpush1.msra.mxu0 0.0
    %2526 = vmatprep.subr.mxu0 0.0
    %2527 = vmatpush1.msra.mxu0 0.0
    %2528 = vmatprep.subr.mxu0 0.0
    %2529 = vmatpush1.msra.mxu0 0.0
    %2530 = vmatprep.subr.mxu0 0.0
    %2531 = vmatpush1.msra.mxu0 0.0
    %2532 = vmatprep.mubr.f32.mxu0 0.0
    %2533 = vmatmul.mubr.f32.gmra.mrb[0].mxu0 0.0
    %v2534 = vpop.f32.mrb[0].mxu0
    %v2535 = vadd.f32 0.0, %v2534
    %v2536 = vpop.f32.mrb[0].mxu0
    %v2537 = vadd.f32 0.0, %v2536
    %2538 = vdwg.mxu0
    %v2539 = vadd.f32 %v2393, %v2464
    %v2540 = vadd.f32 %v2394, %v2466
    %v2541 = vadd.f32 %v2395, %v2535
    %v2542 = vadd.f32 %v2396, %v2537
    %v2543 = vxor.u32 %v2539, 2147483648
    %v2544 = vmul.f32 %v2543, 1.442695
    %v2545 = vpow.pop %v2544
    %v2546 = vadd.f32 %v2545, 1.0
    %v2547 = vrcp.pop %v2546
    %v2548 = vmul.f32 1.0, %v2547
    %v2549 = vxor.u32 %v2540, 2147483648
    %v2550 = vmul.f32 %v2549, 1.442695
    %v2551 = vpow.pop %v2550
    %v2552 = vadd.f32 %v2551, 1.0
    %v2553 = vrcp.pop %v2552
    %v2554 = vmul.f32 1.0, %v2553
    %v2555 = vtanh.pop %v2541
    %v2556 = vxor.u32 %v2542, 2147483648
    %v2557 = vmul.f32 %v2556, 1.442695
    %v2558 = vpow.pop %v2557
    %v2559 = vadd.f32 %v2558, 1.0
    %v2560 = vrcp.pop %v2559
    %v2561 = vmul.f32 1.0, %v2560
    %v2562 = vmul.f32 %v2554, 0.0
    %v2563 = vmul.f32 %v2548, %v2555
    %v2564 = vadd.f32 %v2562, %v2563
    %v2565 = vtanh.pop %v2564
    %v2566 = vmul.f32 %v2561, %v2565
    %s2567 = scalar_lea.vmem [#allocation5], 56
    %2568 = vst [vmem:[%s2567] sm:$0xff] %v2566
    %s2569 = scalar_lea.vmem [#allocation3], 192
    %v2570 = vld [vmem:[%s2569] sm:$0xff]
    %v2571 = vld [vmem:[%s2569 + $0x8] sm:$0xff]
    %v2572 = vld [vmem:[%s2569 + $0x10] sm:$0xff]
    %v2573 = vld [vmem:[%s2569 + $0x18] sm:$0xff]
    %2574 = vmatprep.subr.mxu0 %v915
    %2575 = vmatpush1.msra.mxu0 %v914
    %2576 = vmatprep.subr.mxu0 %v919
    %2577 = vmatpush1.msra.mxu0 %v918
    %2578 = vmatprep.subr.mxu0 %v923
    %2579 = vmatpush1.msra.mxu0 %v922
    %2580 = vmatprep.subr.mxu0 %v927
    %2581 = vmatpush1.msra.mxu0 %v926
    %2582 = vmatprep.subr.mxu0 %v931
    %2583 = vmatpush1.msra.mxu0 %v930
    %2584 = vmatprep.subr.mxu0 %v935
    %2585 = vmatpush1.msra.mxu0 %v934
    %2586 = vmatprep.subr.mxu0 %v939
    %2587 = vmatpush1.msra.mxu0 %v938
    %2588 = vmatprep.subr.mxu0 %v943
    %2589 = vmatpush1.msra.mxu0 %v942
    %2590 = vmatprep.subr.mxu0 %v947
    %2591 = vmatpush1.msra.mxu0 %v946
    %2592 = vmatprep.subr.mxu0 %v951
    %2593 = vmatpush1.msra.mxu0 %v950
    %2594 = vmatprep.subr.mxu0 %v955
    %2595 = vmatpush1.msra.mxu0 %v954
    %2596 = vmatprep.subr.mxu0 %v959
    %2597 = vmatpush1.msra.mxu0 %v958
    %2598 = vmatprep.subr.mxu0 %v963
    %2599 = vmatpush1.msra.mxu0 %v962
    %2600 = vmatprep.subr.mxu0 %v967
    %2601 = vmatpush1.msra.mxu0 %v966
    %2602 = vmatprep.subr.mxu0 %v971
    %2603 = vmatpush1.msra.mxu0 %v970
    %2604 = vmatprep.subr.mxu0 %v975
    %2605 = vmatpush1.msra.mxu0 %v974
    %2606 = vmatprep.subr.mxu0 0.0
    %2607 = vmatpush1.msra.mxu0 0.0
    %2608 = vmatprep.subr.mxu0 0.0
    %2609 = vmatpush1.msra.mxu0 0.0
    %2610 = vmatprep.subr.mxu0 0.0
    %2611 = vmatpush1.msra.mxu0 0.0
    %2612 = vmatprep.subr.mxu0 0.0
    %2613 = vmatpush1.msra.mxu0 0.0
    %2614 = vmatprep.subr.mxu0 0.0
    %2615 = vmatpush1.msra.mxu0 0.0
    %2616 = vmatprep.subr.mxu0 0.0
    %2617 = vmatpush1.msra.mxu0 0.0
    %2618 = vmatprep.subr.mxu0 0.0
    %2619 = vmatpush1.msra.mxu0 0.0
    %2620 = vmatprep.subr.mxu0 0.0
    %2621 = vmatpush1.msra.mxu0 0.0
    %2622 = vmatprep.subr.mxu0 0.0
    %2623 = vmatpush1.msra.mxu0 0.0
    %2624 = vmatprep.subr.mxu0 0.0
    %2625 = vmatpush1.msra.mxu0 0.0
    %2626 = vmatprep.subr.mxu0 0.0
    %2627 = vmatpush1.msra.mxu0 0.0
    %2628 = vmatprep.subr.mxu0 0.0
    %2629 = vmatpush1.msra.mxu0 0.0
    %2630 = vmatprep.subr.mxu0 0.0
    %2631 = vmatpush1.msra.mxu0 0.0
    %2632 = vmatprep.subr.mxu0 0.0
    %2633 = vmatpush1.msra.mxu0 0.0
    %2634 = vmatprep.subr.mxu0 0.0
    %2635 = vmatpush1.msra.mxu0 0.0
    %2636 = vmatprep.subr.mxu0 0.0
    %2637 = vmatpush1.msra.mxu0 0.0
    %2638 = vmatprep.mubr.f32.mxu0 0.0
    %2639 = vmatmul.mubr.f32.gmra.mrb[0].mxu0 %v2566
    %v2640 = vpop.f32.mrb[0].mxu0
    %v2641 = vadd.f32 0.0, %v2640
    %v2642 = vpop.f32.mrb[0].mxu0
    %v2643 = vadd.f32 0.0, %v2642
    %2644 = vdwg.mxu0
    %2645 = vmatprep.subr.mxu0 %v917
    %2646 = vmatpush1.msra.mxu0 %v916
    %2647 = vmatprep.subr.mxu0 %v921
    %2648 = vmatpush1.msra.mxu0 %v920
    %2649 = vmatprep.subr.mxu0 %v925
    %2650 = vmatpush1.msra.mxu0 %v924
    %2651 = vmatprep.subr.mxu0 %v929
    %2652 = vmatpush1.msra.mxu0 %v928
    %2653 = vmatprep.subr.mxu0 %v933
    %2654 = vmatpush1.msra.mxu0 %v932
    %2655 = vmatprep.subr.mxu0 %v937
    %2656 = vmatpush1.msra.mxu0 %v936
    %2657 = vmatprep.subr.mxu0 %v941
    %2658 = vmatpush1.msra.mxu0 %v940
    %2659 = vmatprep.subr.mxu0 %v945
    %2660 = vmatpush1.msra.mxu0 %v944
    %2661 = vmatprep.subr.mxu0 %v949
    %2662 = vmatpush1.msra.mxu0 %v948
    %2663 = vmatprep.subr.mxu0 %v953
    %2664 = vmatpush1.msra.mxu0 %v952
    %2665 = vmatprep.subr.mxu0 %v957
    %2666 = vmatpush1.msra.mxu0 %v956
    %2667 = vmatprep.subr.mxu0 %v961
    %2668 = vmatpush1.msra.mxu0 %v960
    %2669 = vmatprep.subr.mxu0 %v965
    %2670 = vmatpush1.msra.mxu0 %v964
    %2671 = vmatprep.subr.mxu0 %v969
    %2672 = vmatpush1.msra.mxu0 %v968
    %2673 = vmatprep.subr.mxu0 %v973
    %2674 = vmatpush1.msra.mxu0 %v972
    %2675 = vmatprep.subr.mxu0 %v977
    %2676 = vmatpush1.msra.mxu0 %v976
    %2677 = vmatprep.subr.mxu0 0.0
    %2678 = vmatpush1.msra.mxu0 0.0
    %2679 = vmatprep.subr.mxu0 0.0
    %2680 = vmatpush1.msra.mxu0 0.0
    %2681 = vmatprep.subr.mxu0 0.0
    %2682 = vmatpush1.msra.mxu0 0.0
    %2683 = vmatprep.subr.mxu0 0.0
    %2684 = vmatpush1.msra.mxu0 0.0
    %2685 = vmatprep.subr.mxu0 0.0
    %2686 = vmatpush1.msra.mxu0 0.0
    %2687 = vmatprep.subr.mxu0 0.0
    %2688 = vmatpush1.msra.mxu0 0.0
    %2689 = vmatprep.subr.mxu0 0.0
    %2690 = vmatpush1.msra.mxu0 0.0
    %2691 = vmatprep.subr.mxu0 0.0
    %2692 = vmatpush1.msra.mxu0 0.0
    %2693 = vmatprep.subr.mxu0 0.0
    %2694 = vmatpush1.msra.mxu0 0.0
    %2695 = vmatprep.subr.mxu0 0.0
    %2696 = vmatpush1.msra.mxu0 0.0
    %2697 = vmatprep.subr.mxu0 0.0
    %2698 = vmatpush1.msra.mxu0 0.0
    %2699 = vmatprep.subr.mxu0 0.0
    %2700 = vmatpush1.msra.mxu0 0.0
    %2701 = vmatprep.subr.mxu0 0.0
    %2702 = vmatpush1.msra.mxu0 0.0
    %2703 = vmatprep.subr.mxu0 0.0
    %2704 = vmatpush1.msra.mxu0 0.0
    %2705 = vmatprep.subr.mxu0 0.0
    %2706 = vmatpush1.msra.mxu0 0.0
    %2707 = vmatprep.subr.mxu0 0.0
    %2708 = vmatpush1.msra.mxu0 0.0
    %2709 = vmatprep.mubr.f32.mxu0 0.0
    %2710 = vmatmul.mubr.f32.gmra.mrb[0].mxu0 %v2566
    %v2711 = vpop.f32.mrb[0].mxu0
    %v2712 = vadd.f32 0.0, %v2711
    %v2713 = vpop.f32.mrb[0].mxu0
    %v2714 = vadd.f32 0.0, %v2713
    %2715 = vdwg.mxu0
    %v2716 = vadd.f32 %v2570, %v2641
    %v2717 = vadd.f32 %v2571, %v2643
    %v2718 = vadd.f32 %v2572, %v2712
    %v2719 = vadd.f32 %v2573, %v2714
    %v2720 = vxor.u32 %v2716, 2147483648
    %v2721 = vmul.f32 %v2720, 1.442695
    %v2722 = vpow.pop %v2721
    %v2723 = vadd.f32 %v2722, 1.0
    %v2724 = vrcp.pop %v2723
    %v2725 = vmul.f32 1.0, %v2724
    %v2726 = vxor.u32 %v2717, 2147483648
    %v2727 = vmul.f32 %v2726, 1.442695
    %v2728 = vpow.pop %v2727
    %v2729 = vadd.f32 %v2728, 1.0
    %v2730 = vrcp.pop %v2729
    %v2731 = vmul.f32 1.0, %v2730
    %v2732 = vtanh.pop %v2718
    %v2733 = vxor.u32 %v2719, 2147483648
    %v2734 = vmul.f32 %v2733, 1.442695
    %v2735 = vpow.pop %v2734
    %v2736 = vadd.f32 %v2735, 1.0
    %v2737 = vrcp.pop %v2736
    %v2738 = vmul.f32 1.0, %v2737
    %v2739 = vmul.f32 %v2731, %v2564
    %v2740 = vmul.f32 %v2725, %v2732
    %v2741 = vadd.f32 %v2739, %v2740
    %v2742 = vtanh.pop %v2741
    %v2743 = vmul.f32 %v2738, %v2742
    %s2744 = scalar_lea.vmem [#allocation5], 48
    %2745 = vst [vmem:[%s2744] sm:$0xff] %v2743
    %s2746 = scalar_lea.vmem [#allocation3], 160
    %v2747 = vld [vmem:[%s2746] sm:$0xff]
    %v2748 = vld [vmem:[%s2746 + $0x8] sm:$0xff]
    %v2749 = vld [vmem:[%s2746 + $0x10] sm:$0xff]
    %v2750 = vld [vmem:[%s2746 + $0x18] sm:$0xff]
    %2751 = vmatprep.subr.mxu0 %v915
    %2752 = vmatpush1.msra.mxu0 %v914
    %2753 = vmatprep.subr.mxu0 %v919
    %2754 = vmatpush1.msra.mxu0 %v918
    %2755 = vmatprep.subr.mxu0 %v923
    %2756 = vmatpush1.msra.mxu0 %v922
    %2757 = vmatprep.subr.mxu0 %v927
    %2758 = vmatpush1.msra.mxu0 %v926
    %2759 = vmatprep.subr.mxu0 %v931
    %2760 = vmatpush1.msra.mxu0 %v930
    %2761 = vmatprep.subr.mxu0 %v935
    %2762 = vmatpush1.msra.mxu0 %v934
    %2763 = vmatprep.subr.mxu0 %v939
    %2764 = vmatpush1.msra.mxu0 %v938
    %2765 = vmatprep.subr.mxu0 %v943
    %2766 = vmatpush1.msra.mxu0 %v942
    %2767 = vmatprep.subr.mxu0 %v947
    %2768 = vmatpush1.msra.mxu0 %v946
    %2769 = vmatprep.subr.mxu0 %v951
    %2770 = vmatpush1.msra.mxu0 %v950
    %2771 = vmatprep.subr.mxu0 %v955
    %2772 = vmatpush1.msra.mxu0 %v954
    %2773 = vmatprep.subr.mxu0 %v959
    %2774 = vmatpush1.msra.mxu0 %v958
    %2775 = vmatprep.subr.mxu0 %v963
    %2776 = vmatpush1.msra.mxu0 %v962
    %2777 = vmatprep.subr.mxu0 %v967
    %2778 = vmatpush1.msra.mxu0 %v966
    %2779 = vmatprep.subr.mxu0 %v971
    %2780 = vmatpush1.msra.mxu0 %v970
    %2781 = vmatprep.subr.mxu0 %v975
    %2782 = vmatpush1.msra.mxu0 %v974
    %2783 = vmatprep.subr.mxu0 0.0
    %2784 = vmatpush1.msra.mxu0 0.0
    %2785 = vmatprep.subr.mxu0 0.0
    %2786 = vmatpush1.msra.mxu0 0.0
    %2787 = vmatprep.subr.mxu0 0.0
    %2788 = vmatpush1.msra.mxu0 0.0
    %2789 = vmatprep.subr.mxu0 0.0
    %2790 = vmatpush1.msra.mxu0 0.0
    %2791 = vmatprep.subr.mxu0 0.0
    %2792 = vmatpush1.msra.mxu0 0.0
    %2793 = vmatprep.subr.mxu0 0.0
    %2794 = vmatpush1.msra.mxu0 0.0
    %2795 = vmatprep.subr.mxu0 0.0
    %2796 = vmatpush1.msra.mxu0 0.0
    %2797 = vmatprep.subr.mxu0 0.0
    %2798 = vmatpush1.msra.mxu0 0.0
    %2799 = vmatprep.subr.mxu0 0.0
    %2800 = vmatpush1.msra.mxu0 0.0
    %2801 = vmatprep.subr.mxu0 0.0
    %2802 = vmatpush1.msra.mxu0 0.0
    %2803 = vmatprep.subr.mxu0 0.0
    %2804 = vmatpush1.msra.mxu0 0.0
    %2805 = vmatprep.subr.mxu0 0.0
    %2806 = vmatpush1.msra.mxu0 0.0
    %2807 = vmatprep.subr.mxu0 0.0
    %2808 = vmatpush1.msra.mxu0 0.0
    %2809 = vmatprep.subr.mxu0 0.0
    %2810 = vmatpush1.msra.mxu0 0.0
    %2811 = vmatprep.subr.mxu0 0.0
    %2812 = vmatpush1.msra.mxu0 0.0
    %2813 = vmatprep.subr.mxu0 0.0
    %2814 = vmatpush1.msra.mxu0 0.0
    %2815 = vmatprep.mubr.f32.mxu0 0.0
    %2816 = vmatmul.mubr.f32.gmra.mrb[0].mxu0 %v2743
    %v2817 = vpop.f32.mrb[0].mxu0
    %v2818 = vadd.f32 0.0, %v2817
    %v2819 = vpop.f32.mrb[0].mxu0
    %v2820 = vadd.f32 0.0, %v2819
    %2821 = vdwg.mxu0
    %2822 = vmatprep.subr.mxu0 %v917
    %2823 = vmatpush1.msra.mxu0 %v916
    %2824 = vmatprep.subr.mxu0 %v921
    %2825 = vmatpush1.msra.mxu0 %v920
    %2826 = vmatprep.subr.mxu0 %v925
    %2827 = vmatpush1.msra.mxu0 %v924
    %2828 = vmatprep.subr.mxu0 %v929
    %2829 = vmatpush1.msra.mxu0 %v928
    %2830 = vmatprep.subr.mxu0 %v933
    %2831 = vmatpush1.msra.mxu0 %v932
    %2832 = vmatprep.subr.mxu0 %v937
    %2833 = vmatpush1.msra.mxu0 %v936
    %2834 = vmatprep.subr.mxu0 %v941
    %2835 = vmatpush1.msra.mxu0 %v940
    %2836 = vmatprep.subr.mxu0 %v945
    %2837 = vmatpush1.msra.mxu0 %v944
    %2838 = vmatprep.subr.mxu0 %v949
    %2839 = vmatpush1.msra.mxu0 %v948
    %2840 = vmatprep.subr.mxu0 %v953
    %2841 = vmatpush1.msra.mxu0 %v952
    %2842 = vmatprep.subr.mxu0 %v957
    %2843 = vmatpush1.msra.mxu0 %v956
    %2844 = vmatprep.subr.mxu0 %v961
    %2845 = vmatpush1.msra.mxu0 %v960
    %2846 = vmatprep.subr.mxu0 %v965
    %2847 = vmatpush1.msra.mxu0 %v964
    %2848 = vmatprep.subr.mxu0 %v969
    %2849 = vmatpush1.msra.mxu0 %v968
    %2850 = vmatprep.subr.mxu0 %v973
    %2851 = vmatpush1.msra.mxu0 %v972
    %2852 = vmatprep.subr.mxu0 %v977
    %2853 = vmatpush1.msra.mxu0 %v976
    %2854 = vmatprep.subr.mxu0 0.0
    %2855 = vmatpush1.msra.mxu0 0.0
    %2856 = vmatprep.subr.mxu0 0.0
    %2857 = vmatpush1.msra.mxu0 0.0
    %2858 = vmatprep.subr.mxu0 0.0
    %2859 = vmatpush1.msra.mxu0 0.0
    %2860 = vmatprep.subr.mxu0 0.0
    %2861 = vmatpush1.msra.mxu0 0.0
    %2862 = vmatprep.subr.mxu0 0.0
    %2863 = vmatpush1.msra.mxu0 0.0
    %2864 = vmatprep.subr.mxu0 0.0
    %2865 = vmatpush1.msra.mxu0 0.0
    %2866 = vmatprep.subr.mxu0 0.0
    %2867 = vmatpush1.msra.mxu0 0.0
    %2868 = vmatprep.subr.mxu0 0.0
    %2869 = vmatpush1.msra.mxu0 0.0
    %2870 = vmatprep.subr.mxu0 0.0
    %2871 = vmatpush1.msra.mxu0 0.0
    %2872 = vmatprep.subr.mxu0 0.0
    %2873 = vmatpush1.msra.mxu0 0.0
    %2874 = vmatprep.subr.mxu0 0.0
    %2875 = vmatpush1.msra.mxu0 0.0
    %2876 = vmatprep.subr.mxu0 0.0
    %2877 = vmatpush1.msra.mxu0 0.0
    %2878 = vmatprep.subr.mxu0 0.0
    %2879 = vmatpush1.msra.mxu0 0.0
    %2880 = vmatprep.subr.mxu0 0.0
    %2881 = vmatpush1.msra.mxu0 0.0
    %2882 = vmatprep.subr.mxu0 0.0
    %2883 = vmatpush1.msra.mxu0 0.0
    %2884 = vmatprep.subr.mxu0 0.0
    %2885 = vmatpush1.msra.mxu0 0.0
    %2886 = vmatprep.mubr.f32.mxu0 0.0
    %2887 = vmatmul.mubr.f32.gmra.mrb[0].mxu0 %v2743
    %v2888 = vpop.f32.mrb[0].mxu0
    %v2889 = vadd.f32 0.0, %v2888
    %v2890 = vpop.f32.mrb[0].mxu0
    %v2891 = vadd.f32 0.0, %v2890
    %2892 = vdwg.mxu0
    %v2893 = vadd.f32 %v2747, %v2818
    %v2894 = vadd.f32 %v2748, %v2820
    %v2895 = vadd.f32 %v2749, %v2889
    %v2896 = vadd.f32 %v2750, %v2891
    %v2897 = vxor.u32 %v2893, 2147483648
    %v2898 = vmul.f32 %v2897, 1.442695
    %v2899 = vpow.pop %v2898
    %v2900 = vadd.f32 %v2899, 1.0
    %v2901 = vrcp.pop %v2900
    %v2902 = vmul.f32 1.0, %v2901
    %v2903 = vxor.u32 %v2894, 2147483648
    %v2904 = vmul.f32 %v2903, 1.442695
    %v2905 = vpow.pop %v2904
    %v2906 = vadd.f32 %v2905, 1.0
    %v2907 = vrcp.pop %v2906
    %v2908 = vmul.f32 1.0, %v2907
    %v2909 = vtanh.pop %v2895
    %v2910 = vxor.u32 %v2896, 2147483648
    %v2911 = vmul.f32 %v2910, 1.442695
    %v2912 = vpow.pop %v2911
    %v2913 = vadd.f32 %v2912, 1.0
    %v2914 = vrcp.pop %v2913
    %v2915 = vmul.f32 1.0, %v2914
    %v2916 = vmul.f32 %v2908, %v2741
    %v2917 = vmul.f32 %v2902, %v2909
    %v2918 = vadd.f32 %v2916, %v2917
    %v2919 = vtanh.pop %v2918
    %v2920 = vmul.f32 %v2915, %v2919
    %s2921 = scalar_lea.vmem [#allocation5], 40
    %2922 = vst [vmem:[%s2921] sm:$0xff] %v2920
    %s2923 = scalar_lea.vmem [#allocation3], 128
    %v2924 = vld [vmem:[%s2923] sm:$0xff]
    %v2925 = vld [vmem:[%s2923 + $0x8] sm:$0xff]
    %v2926 = vld [vmem:[%s2923 + $0x10] sm:$0xff]
    %v2927 = vld [vmem:[%s2923 + $0x18] sm:$0xff]
    %2928 = vmatprep.subr.mxu0 %v915
    %2929 = vmatpush1.msra.mxu0 %v914
    %2930 = vmatprep.subr.mxu0 %v919
    %2931 = vmatpush1.msra.mxu0 %v918
    %2932 = vmatprep.subr.mxu0 %v923
    %2933 = vmatpush1.msra.mxu0 %v922
    %2934 = vmatprep.subr.mxu0 %v927
    %2935 = vmatpush1.msra.mxu0 %v926
    %2936 = vmatprep.subr.mxu0 %v931
    %2937 = vmatpush1.msra.mxu0 %v930
    %2938 = vmatprep.subr.mxu0 %v935
    %2939 = vmatpush1.msra.mxu0 %v934
    %2940 = vmatprep.subr.mxu0 %v939
    %2941 = vmatpush1.msra.mxu0 %v938
    %2942 = vmatprep.subr.mxu0 %v943
    %2943 = vmatpush1.msra.mxu0 %v942
    %2944 = vmatprep.subr.mxu0 %v947
    %2945 = vmatpush1.msra.mxu0 %v946
    %2946 = vmatprep.subr.mxu0 %v951
    %2947 = vmatpush1.msra.mxu0 %v950
    %2948 = vmatprep.subr.mxu0 %v955
    %2949 = vmatpush1.msra.mxu0 %v954
    %2950 = vmatprep.subr.mxu0 %v959
    %2951 = vmatpush1.msra.mxu0 %v958
    %2952 = vmatprep.subr.mxu0 %v963
    %2953 = vmatpush1.msra.mxu0 %v962
    %2954 = vmatprep.subr.mxu0 %v967
    %2955 = vmatpush1.msra.mxu0 %v966
    %2956 = vmatprep.subr.mxu0 %v971
    %2957 = vmatpush1.msra.mxu0 %v970
    %2958 = vmatprep.subr.mxu0 %v975
    %2959 = vmatpush1.msra.mxu0 %v974
    %2960 = vmatprep.subr.mxu0 0.0
    %2961 = vmatpush1.msra.mxu0 0.0
    %2962 = vmatprep.subr.mxu0 0.0
    %2963 = vmatpush1.msra.mxu0 0.0
    %2964 = vmatprep.subr.mxu0 0.0
    %2965 = vmatpush1.msra.mxu0 0.0
    %2966 = vmatprep.subr.mxu0 0.0
    %2967 = vmatpush1.msra.mxu0 0.0
    %2968 = vmatprep.subr.mxu0 0.0
    %2969 = vmatpush1.msra.mxu0 0.0
    %2970 = vmatprep.subr.mxu0 0.0
    %2971 = vmatpush1.msra.mxu0 0.0
    %2972 = vmatprep.subr.mxu0 0.0
    %2973 = vmatpush1.msra.mxu0 0.0
    %2974 = vmatprep.subr.mxu0 0.0
    %2975 = vmatpush1.msra.mxu0 0.0
    %2976 = vmatprep.subr.mxu0 0.0
    %2977 = vmatpush1.msra.mxu0 0.0
    %2978 = vmatprep.subr.mxu0 0.0
    %2979 = vmatpush1.msra.mxu0 0.0
    %2980 = vmatprep.subr.mxu0 0.0
    %2981 = vmatpush1.msra.mxu0 0.0
    %2982 = vmatprep.subr.mxu0 0.0
    %2983 = vmatpush1.msra.mxu0 0.0
    %2984 = vmatprep.subr.mxu0 0.0
    %2985 = vmatpush1.msra.mxu0 0.0
    %2986 = vmatprep.subr.mxu0 0.0
    %2987 = vmatpush1.msra.mxu0 0.0
    %2988 = vmatprep.subr.mxu0 0.0
    %2989 = vmatpush1.msra.mxu0 0.0
    %2990 = vmatprep.subr.mxu0 0.0
    %2991 = vmatpush1.msra.mxu0 0.0
    %2992 = vmatprep.mubr.f32.mxu0 0.0
    %2993 = vmatmul.mubr.f32.gmra.mrb[0].mxu0 %v2920
    %v2994 = vpop.f32.mrb[0].mxu0
    %v2995 = vadd.f32 0.0, %v2994
    %v2996 = vpop.f32.mrb[0].mxu0
    %v2997 = vadd.f32 0.0, %v2996
    %2998 = vdwg.mxu0
    %2999 = vmatprep.subr.mxu0 %v917
    %3000 = vmatpush1.msra.mxu0 %v916
    %3001 = vmatprep.subr.mxu0 %v921
    %3002 = vmatpush1.msra.mxu0 %v920
    %3003 = vmatprep.subr.mxu0 %v925
    %3004 = vmatpush1.msra.mxu0 %v924
    %3005 = vmatprep.subr.mxu0 %v929
    %3006 = vmatpush1.msra.mxu0 %v928
    %3007 = vmatprep.subr.mxu0 %v933
    %3008 = vmatpush1.msra.mxu0 %v932
    %3009 = vmatprep.subr.mxu0 %v937
    %3010 = vmatpush1.msra.mxu0 %v936
    %3011 = vmatprep.subr.mxu0 %v941
    %3012 = vmatpush1.msra.mxu0 %v940
    %3013 = vmatprep.subr.mxu0 %v945
    %3014 = vmatpush1.msra.mxu0 %v944
    %3015 = vmatprep.subr.mxu0 %v949
    %3016 = vmatpush1.msra.mxu0 %v948
    %3017 = vmatprep.subr.mxu0 %v953
    %3018 = vmatpush1.msra.mxu0 %v952
    %3019 = vmatprep.subr.mxu0 %v957
    %3020 = vmatpush1.msra.mxu0 %v956
    %3021 = vmatprep.subr.mxu0 %v961
    %3022 = vmatpush1.msra.mxu0 %v960
    %3023 = vmatprep.subr.mxu0 %v965
    %3024 = vmatpush1.msra.mxu0 %v964
    %3025 = vmatprep.subr.mxu0 %v969
    %3026 = vmatpush1.msra.mxu0 %v968
    %3027 = vmatprep.subr.mxu0 %v973
    %3028 = vmatpush1.msra.mxu0 %v972
    %3029 = vmatprep.subr.mxu0 %v977
    %3030 = vmatpush1.msra.mxu0 %v976
    %3031 = vmatprep.subr.mxu0 0.0
    %3032 = vmatpush1.msra.mxu0 0.0
    %3033 = vmatprep.subr.mxu0 0.0
    %3034 = vmatpush1.msra.mxu0 0.0
    %3035 = vmatprep.subr.mxu0 0.0
    %3036 = vmatpush1.msra.mxu0 0.0
    %3037 = vmatprep.subr.mxu0 0.0
    %3038 = vmatpush1.msra.mxu0 0.0
    %3039 = vmatprep.subr.mxu0 0.0
    %3040 = vmatpush1.msra.mxu0 0.0
    %3041 = vmatprep.subr.mxu0 0.0
    %3042 = vmatpush1.msra.mxu0 0.0
    %3043 = vmatprep.subr.mxu0 0.0
    %3044 = vmatpush1.msra.mxu0 0.0
    %3045 = vmatprep.subr.mxu0 0.0
    %3046 = vmatpush1.msra.mxu0 0.0
    %3047 = vmatprep.subr.mxu0 0.0
    %3048 = vmatpush1.msra.mxu0 0.0
    %3049 = vmatprep.subr.mxu0 0.0
    %3050 = vmatpush1.msra.mxu0 0.0
    %3051 = vmatprep.subr.mxu0 0.0
    %3052 = vmatpush1.msra.mxu0 0.0
    %3053 = vmatprep.subr.mxu0 0.0
    %3054 = vmatpush1.msra.mxu0 0.0
    %3055 = vmatprep.subr.mxu0 0.0
    %3056 = vmatpush1.msra.mxu0 0.0
    %3057 = vmatprep.subr.mxu0 0.0
    %3058 = vmatpush1.msra.mxu0 0.0
    %3059 = vmatprep.subr.mxu0 0.0
    %3060 = vmatpush1.msra.mxu0 0.0
    %3061 = vmatprep.subr.mxu0 0.0
    %3062 = vmatpush1.msra.mxu0 0.0
    %3063 = vmatprep.mubr.f32.mxu0 0.0
    %3064 = vmatmul.mubr.f32.gmra.mrb[0].mxu0 %v2920
    %v3065 = vpop.f32.mrb[0].mxu0
    %v3066 = vadd.f32 0.0, %v3065
    %v3067 = vpop.f32.mrb[0].mxu0
    %v3068 = vadd.f32 0.0, %v3067
    %3069 = vdwg.mxu0
    %v3070 = vadd.f32 %v2924, %v2995
    %v3071 = vadd.f32 %v2925, %v2997
    %v3072 = vadd.f32 %v2926, %v3066
    %v3073 = vadd.f32 %v2927, %v3068
    %v3074 = vxor.u32 %v3070, 2147483648
    %v3075 = vmul.f32 %v3074, 1.442695
    %v3076 = vpow.pop %v3075
    %v3077 = vadd.f32 %v3076, 1.0
    %v3078 = vrcp.pop %v3077
    %v3079 = vmul.f32 1.0, %v3078
    %v3080 = vxor.u32 %v3071, 2147483648
    %v3081 = vmul.f32 %v3080, 1.442695
    %v3082 = vpow.pop %v3081
    %v3083 = vadd.f32 %v3082, 1.0
    %v3084 = vrcp.pop %v3083
    %v3085 = vmul.f32 1.0, %v3084
    %v3086 = vtanh.pop %v3072
    %v3087 = vxor.u32 %v3073, 2147483648
    %v3088 = vmul.f32 %v3087, 1.442695
    %v3089 = vpow.pop %v3088
    %v3090 = vadd.f32 %v3089, 1.0
    %v3091 = vrcp.pop %v3090
    %v3092 = vmul.f32 1.0, %v3091
    %v3093 = vmul.f32 %v3085, %v2918
    %v3094 = vmul.f32 %v3079, %v3086
    %v3095 = vadd.f32 %v3093, %v3094
    %v3096 = vtanh.pop %v3095
    %v3097 = vmul.f32 %v3092, %v3096
    %s3098 = scalar_lea.vmem [#allocation5], 32
    %3099 = vst [vmem:[%s3098] sm:$0xff] %v3097
    %s3100 = scalar_lea.vmem [#allocation3], 96
    %v3101 = vld [vmem:[%s3100] sm:$0xff]
    %v3102 = vld [vmem:[%s3100 + $0x8] sm:$0xff]
    %v3103 = vld [vmem:[%s3100 + $0x10] sm:$0xff]
    %v3104 = vld [vmem:[%s3100 + $0x18] sm:$0xff]
    %3105 = vmatprep.subr.mxu0 %v915
    %3106 = vmatpush1.msra.mxu0 %v914
    %3107 = vmatprep.subr.mxu0 %v919
    %3108 = vmatpush1.msra.mxu0 %v918
    %3109 = vmatprep.subr.mxu0 %v923
    %3110 = vmatpush1.msra.mxu0 %v922
    %3111 = vmatprep.subr.mxu0 %v927
    %3112 = vmatpush1.msra.mxu0 %v926
    %3113 = vmatprep.subr.mxu0 %v931
    %3114 = vmatpush1.msra.mxu0 %v930
    %3115 = vmatprep.subr.mxu0 %v935
    %3116 = vmatpush1.msra.mxu0 %v934
    %3117 = vmatprep.subr.mxu0 %v939
    %3118 = vmatpush1.msra.mxu0 %v938
    %3119 = vmatprep.subr.mxu0 %v943
    %3120 = vmatpush1.msra.mxu0 %v942
    %3121 = vmatprep.subr.mxu0 %v947
    %3122 = vmatpush1.msra.mxu0 %v946
    %3123 = vmatprep.subr.mxu0 %v951
    %3124 = vmatpush1.msra.mxu0 %v950
    %3125 = vmatprep.subr.mxu0 %v955
    %3126 = vmatpush1.msra.mxu0 %v954
    %3127 = vmatprep.subr.mxu0 %v959
    %3128 = vmatpush1.msra.mxu0 %v958
    %3129 = vmatprep.subr.mxu0 %v963
    %3130 = vmatpush1.msra.mxu0 %v962
    %3131 = vmatprep.subr.mxu0 %v967
    %3132 = vmatpush1.msra.mxu0 %v966
    %3133 = vmatprep.subr.mxu0 %v971
    %3134 = vmatpush1.msra.mxu0 %v970
    %3135 = vmatprep.subr.mxu0 %v975
    %3136 = vmatpush1.msra.mxu0 %v974
    %3137 = vmatprep.subr.mxu0 0.0
    %3138 = vmatpush1.msra.mxu0 0.0
    %3139 = vmatprep.subr.mxu0 0.0
    %3140 = vmatpush1.msra.mxu0 0.0
    %3141 = vmatprep.subr.mxu0 0.0
    %3142 = vmatpush1.msra.mxu0 0.0
    %3143 = vmatprep.subr.mxu0 0.0
    %3144 = vmatpush1.msra.mxu0 0.0
    %3145 = vmatprep.subr.mxu0 0.0
    %3146 = vmatpush1.msra.mxu0 0.0
    %3147 = vmatprep.subr.mxu0 0.0
    %3148 = vmatpush1.msra.mxu0 0.0
    %3149 = vmatprep.subr.mxu0 0.0
    %3150 = vmatpush1.msra.mxu0 0.0
    %3151 = vmatprep.subr.mxu0 0.0
    %3152 = vmatpush1.msra.mxu0 0.0
    %3153 = vmatprep.subr.mxu0 0.0
    %3154 = vmatpush1.msra.mxu0 0.0
    %3155 = vmatprep.subr.mxu0 0.0
    %3156 = vmatpush1.msra.mxu0 0.0
    %3157 = vmatprep.subr.mxu0 0.0
    %3158 = vmatpush1.msra.mxu0 0.0
    %3159 = vmatprep.subr.mxu0 0.0
    %3160 = vmatpush1.msra.mxu0 0.0
    %3161 = vmatprep.subr.mxu0 0.0
    %3162 = vmatpush1.msra.mxu0 0.0
    %3163 = vmatprep.subr.mxu0 0.0
    %3164 = vmatpush1.msra.mxu0 0.0
    %3165 = vmatprep.subr.mxu0 0.0
    %3166 = vmatpush1.msra.mxu0 0.0
    %3167 = vmatprep.subr.mxu0 0.0
    %3168 = vmatpush1.msra.mxu0 0.0
    %3169 = vmatprep.mubr.f32.mxu0 0.0
    %3170 = vmatmul.mubr.f32.gmra.mrb[0].mxu0 %v3097
    %v3171 = vpop.f32.mrb[0].mxu0
    %v3172 = vadd.f32 0.0, %v3171
    %v3173 = vpop.f32.mrb[0].mxu0
    %v3174 = vadd.f32 0.0, %v3173
    %3175 = vdwg.mxu0
    %3176 = vmatprep.subr.mxu0 %v917
    %3177 = vmatpush1.msra.mxu0 %v916
    %3178 = vmatprep.subr.mxu0 %v921
    %3179 = vmatpush1.msra.mxu0 %v920
    %3180 = vmatprep.subr.mxu0 %v925
    %3181 = vmatpush1.msra.mxu0 %v924
    %3182 = vmatprep.subr.mxu0 %v929
    %3183 = vmatpush1.msra.mxu0 %v928
    %3184 = vmatprep.subr.mxu0 %v933
    %3185 = vmatpush1.msra.mxu0 %v932
    %3186 = vmatprep.subr.mxu0 %v937
    %3187 = vmatpush1.msra.mxu0 %v936
    %3188 = vmatprep.subr.mxu0 %v941
    %3189 = vmatpush1.msra.mxu0 %v940
    %3190 = vmatprep.subr.mxu0 %v945
    %3191 = vmatpush1.msra.mxu0 %v944
    %3192 = vmatprep.subr.mxu0 %v949
    %3193 = vmatpush1.msra.mxu0 %v948
    %3194 = vmatprep.subr.mxu0 %v953
    %3195 = vmatpush1.msra.mxu0 %v952
    %3196 = vmatprep.subr.mxu0 %v957
    %3197 = vmatpush1.msra.mxu0 %v956
    %3198 = vmatprep.subr.mxu0 %v961
    %3199 = vmatpush1.msra.mxu0 %v960
    %3200 = vmatprep.subr.mxu0 %v965
    %3201 = vmatpush1.msra.mxu0 %v964
    %3202 = vmatprep.subr.mxu0 %v969
    %3203 = vmatpush1.msra.mxu0 %v968
    %3204 = vmatprep.subr.mxu0 %v973
    %3205 = vmatpush1.msra.mxu0 %v972
    %3206 = vmatprep.subr.mxu0 %v977
    %3207 = vmatpush1.msra.mxu0 %v976
    %3208 = vmatprep.subr.mxu0 0.0
    %3209 = vmatpush1.msra.mxu0 0.0
    %3210 = vmatprep.subr.mxu0 0.0
    %3211 = vmatpush1.msra.mxu0 0.0
    %3212 = vmatprep.subr.mxu0 0.0
    %3213 = vmatpush1.msra.mxu0 0.0
    %3214 = vmatprep.subr.mxu0 0.0
    %3215 = vmatpush1.msra.mxu0 0.0
    %3216 = vmatprep.subr.mxu0 0.0
    %3217 = vmatpush1.msra.mxu0 0.0
    %3218 = vmatprep.subr.mxu0 0.0
    %3219 = vmatpush1.msra.mxu0 0.0
    %3220 = vmatprep.subr.mxu0 0.0
    %3221 = vmatpush1.msra.mxu0 0.0
    %3222 = vmatprep.subr.mxu0 0.0
    %3223 = vmatpush1.msra.mxu0 0.0
    %3224 = vmatprep.subr.mxu0 0.0
    %3225 = vmatpush1.msra.mxu0 0.0
    %3226 = vmatprep.subr.mxu0 0.0
    %3227 = vmatpush1.msra.mxu0 0.0
    %3228 = vmatprep.subr.mxu0 0.0
    %3229 = vmatpush1.msra.mxu0 0.0
    %3230 = vmatprep.subr.mxu0 0.0
    %3231 = vmatpush1.msra.mxu0 0.0
    %3232 = vmatprep.subr.mxu0 0.0
    %3233 = vmatpush1.msra.mxu0 0.0
    %3234 = vmatprep.subr.mxu0 0.0
    %3235 = vmatpush1.msra.mxu0 0.0
    %3236 = vmatprep.subr.mxu0 0.0
    %3237 = vmatpush1.msra.mxu0 0.0
    %3238 = vmatprep.subr.mxu0 0.0
    %3239 = vmatpush1.msra.mxu0 0.0
    %3240 = vmatprep.mubr.f32.mxu0 0.0
    %3241 = vmatmul.mubr.f32.gmra.mrb[0].mxu0 %v3097
    %v3242 = vpop.f32.mrb[0].mxu0
    %v3243 = vadd.f32 0.0, %v3242
    %v3244 = vpop.f32.mrb[0].mxu0
    %v3245 = vadd.f32 0.0, %v3244
    %3246 = vdwg.mxu0
    %v3247 = vadd.f32 %v3101, %v3172
    %v3248 = vadd.f32 %v3102, %v3174
    %v3249 = vadd.f32 %v3103, %v3243
    %v3250 = vadd.f32 %v3104, %v3245
    %v3251 = vxor.u32 %v3247, 2147483648
    %v3252 = vmul.f32 %v3251, 1.442695
    %v3253 = vpow.pop %v3252
    %v3254 = vadd.f32 %v3253, 1.0
    %v3255 = vrcp.pop %v3254
    %v3256 = vmul.f32 1.0, %v3255
    %v3257 = vxor.u32 %v3248, 2147483648
    %v3258 = vmul.f32 %v3257, 1.442695
    %v3259 = vpow.pop %v3258
    %v3260 = vadd.f32 %v3259, 1.0
    %v3261 = vrcp.pop %v3260
    %v3262 = vmul.f32 1.0, %v3261
    %v3263 = vtanh.pop %v3249
    %v3264 = vxor.u32 %v3250, 2147483648
    %v3265 = vmul.f32 %v3264, 1.442695
    %v3266 = vpow.pop %v3265
    %v3267 = vadd.f32 %v3266, 1.0
    %v3268 = vrcp.pop %v3267
    %v3269 = vmul.f32 1.0, %v3268
    %v3270 = vmul.f32 %v3262, %v3095
    %v3271 = vmul.f32 %v3256, %v3263
    %v3272 = vadd.f32 %v3270, %v3271
    %v3273 = vtanh.pop %v3272
    %v3274 = vmul.f32 %v3269, %v3273
    %s3275 = scalar_lea.vmem [#allocation5], 24
    %3276 = vst [vmem:[%s3275] sm:$0xff] %v3274
    %s3277 = scalar_lea.vmem [#allocation3], 64
    %v3278 = vld [vmem:[%s3277] sm:$0xff]
    %v3279 = vld [vmem:[%s3277 + $0x8] sm:$0xff]
    %v3280 = vld [vmem:[%s3277 + $0x10] sm:$0xff]
    %v3281 = vld [vmem:[%s3277 + $0x18] sm:$0xff]
    %3282 = vmatprep.subr.mxu0 %v915
    %3283 = vmatpush1.msra.mxu0 %v914
    %3284 = vmatprep.subr.mxu0 %v919
    %3285 = vmatpush1.msra.mxu0 %v918
    %3286 = vmatprep.subr.mxu0 %v923
    %3287 = vmatpush1.msra.mxu0 %v922
    %3288 = vmatprep.subr.mxu0 %v927
    %3289 = vmatpush1.msra.mxu0 %v926
    %3290 = vmatprep.subr.mxu0 %v931
    %3291 = vmatpush1.msra.mxu0 %v930
    %3292 = vmatprep.subr.mxu0 %v935
    %3293 = vmatpush1.msra.mxu0 %v934
    %3294 = vmatprep.subr.mxu0 %v939
    %3295 = vmatpush1.msra.mxu0 %v938
    %3296 = vmatprep.subr.mxu0 %v943
    %3297 = vmatpush1.msra.mxu0 %v942
    %3298 = vmatprep.subr.mxu0 %v947
    %3299 = vmatpush1.msra.mxu0 %v946
    %3300 = vmatprep.subr.mxu0 %v951
    %3301 = vmatpush1.msra.mxu0 %v950
    %3302 = vmatprep.subr.mxu0 %v955
    %3303 = vmatpush1.msra.mxu0 %v954
    %3304 = vmatprep.subr.mxu0 %v959
    %3305 = vmatpush1.msra.mxu0 %v958
    %3306 = vmatprep.subr.mxu0 %v963
    %3307 = vmatpush1.msra.mxu0 %v962
    %3308 = vmatprep.subr.mxu0 %v967
    %3309 = vmatpush1.msra.mxu0 %v966
    %3310 = vmatprep.subr.mxu0 %v971
    %3311 = vmatpush1.msra.mxu0 %v970
    %3312 = vmatprep.subr.mxu0 %v975
    %3313 = vmatpush1.msra.mxu0 %v974
    %3314 = vmatprep.subr.mxu0 0.0
    %3315 = vmatpush1.msra.mxu0 0.0
    %3316 = vmatprep.subr.mxu0 0.0
    %3317 = vmatpush1.msra.mxu0 0.0
    %3318 = vmatprep.subr.mxu0 0.0
    %3319 = vmatpush1.msra.mxu0 0.0
    %3320 = vmatprep.subr.mxu0 0.0
    %3321 = vmatpush1.msra.mxu0 0.0
    %3322 = vmatprep.subr.mxu0 0.0
    %3323 = vmatpush1.msra.mxu0 0.0
    %3324 = vmatprep.subr.mxu0 0.0
    %3325 = vmatpush1.msra.mxu0 0.0
    %3326 = vmatprep.subr.mxu0 0.0
    %3327 = vmatpush1.msra.mxu0 0.0
    %3328 = vmatprep.subr.mxu0 0.0
    %3329 = vmatpush1.msra.mxu0 0.0
    %3330 = vmatprep.subr.mxu0 0.0
    %3331 = vmatpush1.msra.mxu0 0.0
    %3332 = vmatprep.subr.mxu0 0.0
    %3333 = vmatpush1.msra.mxu0 0.0
    %3334 = vmatprep.subr.mxu0 0.0
    %3335 = vmatpush1.msra.mxu0 0.0
    %3336 = vmatprep.subr.mxu0 0.0
    %3337 = vmatpush1.msra.mxu0 0.0
    %3338 = vmatprep.subr.mxu0 0.0
    %3339 = vmatpush1.msra.mxu0 0.0
    %3340 = vmatprep.subr.mxu0 0.0
    %3341 = vmatpush1.msra.mxu0 0.0
    %3342 = vmatprep.subr.mxu0 0.0
    %3343 = vmatpush1.msra.mxu0 0.0
    %3344 = vmatprep.subr.mxu0 0.0
    %3345 = vmatpush1.msra.mxu0 0.0
    %3346 = vmatprep.mubr.f32.mxu0 0.0
    %3347 = vmatmul.mubr.f32.gmra.mrb[0].mxu0 %v3274
    %v3348 = vpop.f32.mrb[0].mxu0
    %v3349 = vadd.f32 0.0, %v3348
    %v3350 = vpop.f32.mrb[0].mxu0
    %v3351 = vadd.f32 0.0, %v3350
    %3352 = vdwg.mxu0
    %3353 = vmatprep.subr.mxu0 %v917
    %3354 = vmatpush1.msra.mxu0 %v916
    %3355 = vmatprep.subr.mxu0 %v921
    %3356 = vmatpush1.msra.mxu0 %v920
    %3357 = vmatprep.subr.mxu0 %v925
    %3358 = vmatpush1.msra.mxu0 %v924
    %3359 = vmatprep.subr.mxu0 %v929
    %3360 = vmatpush1.msra.mxu0 %v928
    %3361 = vmatprep.subr.mxu0 %v933
    %3362 = vmatpush1.msra.mxu0 %v932
    %3363 = vmatprep.subr.mxu0 %v937
    %3364 = vmatpush1.msra.mxu0 %v936
    %3365 = vmatprep.subr.mxu0 %v941
    %3366 = vmatpush1.msra.mxu0 %v940
    %3367 = vmatprep.subr.mxu0 %v945
    %3368 = vmatpush1.msra.mxu0 %v944
    %3369 = vmatprep.subr.mxu0 %v949
    %3370 = vmatpush1.msra.mxu0 %v948
    %3371 = vmatprep.subr.mxu0 %v953
    %3372 = vmatpush1.msra.mxu0 %v952
    %3373 = vmatprep.subr.mxu0 %v957
    %3374 = vmatpush1.msra.mxu0 %v956
    %3375 = vmatprep.subr.mxu0 %v961
    %3376 = vmatpush1.msra.mxu0 %v960
    %3377 = vmatprep.subr.mxu0 %v965
    %3378 = vmatpush1.msra.mxu0 %v964
    %3379 = vmatprep.subr.mxu0 %v969
    %3380 = vmatpush1.msra.mxu0 %v968
    %3381 = vmatprep.subr.mxu0 %v973
    %3382 = vmatpush1.msra.mxu0 %v972
    %3383 = vmatprep.subr.mxu0 %v977
    %3384 = vmatpush1.msra.mxu0 %v976
    %3385 = vmatprep.subr.mxu0 0.0
    %3386 = vmatpush1.msra.mxu0 0.0
    %3387 = vmatprep.subr.mxu0 0.0
    %3388 = vmatpush1.msra.mxu0 0.0
    %3389 = vmatprep.subr.mxu0 0.0
    %3390 = vmatpush1.msra.mxu0 0.0
    %3391 = vmatprep.subr.mxu0 0.0
    %3392 = vmatpush1.msra.mxu0 0.0
    %3393 = vmatprep.subr.mxu0 0.0
    %3394 = vmatpush1.msra.mxu0 0.0
    %3395 = vmatprep.subr.mxu0 0.0
    %3396 = vmatpush1.msra.mxu0 0.0
    %3397 = vmatprep.subr.mxu0 0.0
    %3398 = vmatpush1.msra.mxu0 0.0
    %3399 = vmatprep.subr.mxu0 0.0
    %3400 = vmatpush1.msra.mxu0 0.0
    %3401 = vmatprep.subr.mxu0 0.0
    %3402 = vmatpush1.msra.mxu0 0.0
    %3403 = vmatprep.subr.mxu0 0.0
    %3404 = vmatpush1.msra.mxu0 0.0
    %3405 = vmatprep.subr.mxu0 0.0
    %3406 = vmatpush1.msra.mxu0 0.0
    %3407 = vmatprep.subr.mxu0 0.0
    %3408 = vmatpush1.msra.mxu0 0.0
    %3409 = vmatprep.subr.mxu0 0.0
    %3410 = vmatpush1.msra.mxu0 0.0
    %3411 = vmatprep.subr.mxu0 0.0
    %3412 = vmatpush1.msra.mxu0 0.0
    %3413 = vmatprep.subr.mxu0 0.0
    %3414 = vmatpush1.msra.mxu0 0.0
    %3415 = vmatprep.subr.mxu0 0.0
    %3416 = vmatpush1.msra.mxu0 0.0
    %3417 = vmatprep.mubr.f32.mxu0 0.0
    %3418 = vmatmul.mubr.f32.gmra.mrb[0].mxu0 %v3274
    %v3419 = vpop.f32.mrb[0].mxu0
    %v3420 = vadd.f32 0.0, %v3419
    %v3421 = vpop.f32.mrb[0].mxu0
    %v3422 = vadd.f32 0.0, %v3421
    %3423 = vdwg.mxu0
    %v3424 = vadd.f32 %v3278, %v3349
    %v3425 = vadd.f32 %v3279, %v3351
    %v3426 = vadd.f32 %v3280, %v3420
    %v3427 = vadd.f32 %v3281, %v3422
    %v3428 = vxor.u32 %v3424, 2147483648
    %v3429 = vmul.f32 %v3428, 1.442695
    %v3430 = vpow.pop %v3429
    %v3431 = vadd.f32 %v3430, 1.0
    %v3432 = vrcp.pop %v3431
    %v3433 = vmul.f32 1.0, %v3432
    %v3434 = vxor.u32 %v3425, 2147483648
    %v3435 = vmul.f32 %v3434, 1.442695
    %v3436 = vpow.pop %v3435
    %v3437 = vadd.f32 %v3436, 1.0
    %v3438 = vrcp.pop %v3437
    %v3439 = vmul.f32 1.0, %v3438
    %v3440 = vtanh.pop %v3426
    %v3441 = vxor.u32 %v3427, 2147483648
    %v3442 = vmul.f32 %v3441, 1.442695
    %v3443 = vpow.pop %v3442
    %v3444 = vadd.f32 %v3443, 1.0
    %v3445 = vrcp.pop %v3444
    %v3446 = vmul.f32 1.0, %v3445
    %v3447 = vmul.f32 %v3439, %v3272
    %v3448 = vmul.f32 %v3433, %v3440
    %v3449 = vadd.f32 %v3447, %v3448
    %v3450 = vtanh.pop %v3449
    %v3451 = vmul.f32 %v3446, %v3450
    %s3452 = scalar_lea.vmem [#allocation5], 16
    %3453 = vst [vmem:[%s3452] sm:$0xff] %v3451
    %s3454 = scalar_lea.vmem [#allocation3], 32
    %v3455 = vld [vmem:[%s3454] sm:$0xff]
    %v3456 = vld [vmem:[%s3454 + $0x8] sm:$0xff]
    %v3457 = vld [vmem:[%s3454 + $0x10] sm:$0xff]
    %v3458 = vld [vmem:[%s3454 + $0x18] sm:$0xff]
    %3459 = vmatprep.subr.mxu0 %v915
    %3460 = vmatpush1.msra.mxu0 %v914
    %3461 = vmatprep.subr.mxu0 %v919
    %3462 = vmatpush1.msra.mxu0 %v918
    %3463 = vmatprep.subr.mxu0 %v923
    %3464 = vmatpush1.msra.mxu0 %v922
    %3465 = vmatprep.subr.mxu0 %v927
    %3466 = vmatpush1.msra.mxu0 %v926
    %3467 = vmatprep.subr.mxu0 %v931
    %3468 = vmatpush1.msra.mxu0 %v930
    %3469 = vmatprep.subr.mxu0 %v935
    %3470 = vmatpush1.msra.mxu0 %v934
    %3471 = vmatprep.subr.mxu0 %v939
    %3472 = vmatpush1.msra.mxu0 %v938
    %3473 = vmatprep.subr.mxu0 %v943
    %3474 = vmatpush1.msra.mxu0 %v942
    %3475 = vmatprep.subr.mxu0 %v947
    %3476 = vmatpush1.msra.mxu0 %v946
    %3477 = vmatprep.subr.mxu0 %v951
    %3478 = vmatpush1.msra.mxu0 %v950
    %3479 = vmatprep.subr.mxu0 %v955
    %3480 = vmatpush1.msra.mxu0 %v954
    %3481 = vmatprep.subr.mxu0 %v959
    %3482 = vmatpush1.msra.mxu0 %v958
    %3483 = vmatprep.subr.mxu0 %v963
    %3484 = vmatpush1.msra.mxu0 %v962
    %3485 = vmatprep.subr.mxu0 %v967
    %3486 = vmatpush1.msra.mxu0 %v966
    %3487 = vmatprep.subr.mxu0 %v971
    %3488 = vmatpush1.msra.mxu0 %v970
    %3489 = vmatprep.subr.mxu0 %v975
    %3490 = vmatpush1.msra.mxu0 %v974
    %3491 = vmatprep.subr.mxu0 0.0
    %3492 = vmatpush1.msra.mxu0 0.0
    %3493 = vmatprep.subr.mxu0 0.0
    %3494 = vmatpush1.msra.mxu0 0.0
    %3495 = vmatprep.subr.mxu0 0.0
    %3496 = vmatpush1.msra.mxu0 0.0
    %3497 = vmatprep.subr.mxu0 0.0
    %3498 = vmatpush1.msra.mxu0 0.0
    %3499 = vmatprep.subr.mxu0 0.0
    %3500 = vmatpush1.msra.mxu0 0.0
    %3501 = vmatprep.subr.mxu0 0.0
    %3502 = vmatpush1.msra.mxu0 0.0
    %3503 = vmatprep.subr.mxu0 0.0
    %3504 = vmatpush1.msra.mxu0 0.0
    %3505 = vmatprep.subr.mxu0 0.0
    %3506 = vmatpush1.msra.mxu0 0.0
    %3507 = vmatprep.subr.mxu0 0.0
    %3508 = vmatpush1.msra.mxu0 0.0
    %3509 = vmatprep.subr.mxu0 0.0
    %3510 = vmatpush1.msra.mxu0 0.0
    %3511 = vmatprep.subr.mxu0 0.0
    %3512 = vmatpush1.msra.mxu0 0.0
    %3513 = vmatprep.subr.mxu0 0.0
    %3514 = vmatpush1.msra.mxu0 0.0
    %3515 = vmatprep.subr.mxu0 0.0
    %3516 = vmatpush1.msra.mxu0 0.0
    %3517 = vmatprep.subr.mxu0 0.0
    %3518 = vmatpush1.msra.mxu0 0.0
    %3519 = vmatprep.subr.mxu0 0.0
    %3520 = vmatpush1.msra.mxu0 0.0
    %3521 = vmatprep.subr.mxu0 0.0
    %3522 = vmatpush1.msra.mxu0 0.0
    %3523 = vmatprep.mubr.f32.mxu0 0.0
    %3524 = vmatmul.mubr.f32.gmra.mrb[0].mxu0 %v3451
    %v3525 = vpop.f32.mrb[0].mxu0
    %v3526 = vadd.f32 0.0, %v3525
    %v3527 = vpop.f32.mrb[0].mxu0
    %v3528 = vadd.f32 0.0, %v3527
    %3529 = vdwg.mxu0
    %3530 = vmatprep.subr.mxu0 %v917
    %3531 = vmatpush1.msra.mxu0 %v916
    %3532 = vmatprep.subr.mxu0 %v921
    %3533 = vmatpush1.msra.mxu0 %v920
    %3534 = vmatprep.subr.mxu0 %v925
    %3535 = vmatpush1.msra.mxu0 %v924
    %3536 = vmatprep.subr.mxu0 %v929
    %3537 = vmatpush1.msra.mxu0 %v928
    %3538 = vmatprep.subr.mxu0 %v933
    %3539 = vmatpush1.msra.mxu0 %v932
    %3540 = vmatprep.subr.mxu0 %v937
    %3541 = vmatpush1.msra.mxu0 %v936
    %3542 = vmatprep.subr.mxu0 %v941
    %3543 = vmatpush1.msra.mxu0 %v940
    %3544 = vmatprep.subr.mxu0 %v945
    %3545 = vmatpush1.msra.mxu0 %v944
    %3546 = vmatprep.subr.mxu0 %v949
    %3547 = vmatpush1.msra.mxu0 %v948
    %3548 = vmatprep.subr.mxu0 %v953
    %3549 = vmatpush1.msra.mxu0 %v952
    %3550 = vmatprep.subr.mxu0 %v957
    %3551 = vmatpush1.msra.mxu0 %v956
    %3552 = vmatprep.subr.mxu0 %v961
    %3553 = vmatpush1.msra.mxu0 %v960
    %3554 = vmatprep.subr.mxu0 %v965
    %3555 = vmatpush1.msra.mxu0 %v964
    %3556 = vmatprep.subr.mxu0 %v969
    %3557 = vmatpush1.msra.mxu0 %v968
    %3558 = vmatprep.subr.mxu0 %v973
    %3559 = vmatpush1.msra.mxu0 %v972
    %3560 = vmatprep.subr.mxu0 %v977
    %3561 = vmatpush1.msra.mxu0 %v976
    %3562 = vmatprep.subr.mxu0 0.0
    %3563 = vmatpush1.msra.mxu0 0.0
    %3564 = vmatprep.subr.mxu0 0.0
    %3565 = vmatpush1.msra.mxu0 0.0
    %3566 = vmatprep.subr.mxu0 0.0
    %3567 = vmatpush1.msra.mxu0 0.0
    %3568 = vmatprep.subr.mxu0 0.0
    %3569 = vmatpush1.msra.mxu0 0.0
    %3570 = vmatprep.subr.mxu0 0.0
    %3571 = vmatpush1.msra.mxu0 0.0
    %3572 = vmatprep.subr.mxu0 0.0
    %3573 = vmatpush1.msra.mxu0 0.0
    %3574 = vmatprep.subr.mxu0 0.0
    %3575 = vmatpush1.msra.mxu0 0.0
    %3576 = vmatprep.subr.mxu0 0.0
    %3577 = vmatpush1.msra.mxu0 0.0
    %3578 = vmatprep.subr.mxu0 0.0
    %3579 = vmatpush1.msra.mxu0 0.0
    %3580 = vmatprep.subr.mxu0 0.0
    %3581 = vmatpush1.msra.mxu0 0.0
    %3582 = vmatprep.subr.mxu0 0.0
    %3583 = vmatpush1.msra.mxu0 0.0
    %3584 = vmatprep.subr.mxu0 0.0
    %3585 = vmatpush1.msra.mxu0 0.0
    %3586 = vmatprep.subr.mxu0 0.0
    %3587 = vmatpush1.msra.mxu0 0.0
    %3588 = vmatprep.subr.mxu0 0.0
    %3589 = vmatpush1.msra.mxu0 0.0
    %3590 = vmatprep.subr.mxu0 0.0
    %3591 = vmatpush1.msra.mxu0 0.0
    %3592 = vmatprep.subr.mxu0 0.0
    %3593 = vmatpush1.msra.mxu0 0.0
    %3594 = vmatprep.mubr.f32.mxu0 0.0
    %3595 = vmatmul.mubr.f32.gmra.mrb[0].mxu0 %v3451
    %v3596 = vpop.f32.mrb[0].mxu0
    %v3597 = vadd.f32 0.0, %v3596
    %v3598 = vpop.f32.mrb[0].mxu0
    %v3599 = vadd.f32 0.0, %v3598
    %3600 = vdwg.mxu0
    %v3601 = vadd.f32 %v3455, %v3526
    %v3602 = vadd.f32 %v3456, %v3528
    %v3603 = vadd.f32 %v3457, %v3597
    %v3604 = vadd.f32 %v3458, %v3599
    %v3605 = vxor.u32 %v3601, 2147483648
    %v3606 = vmul.f32 %v3605, 1.442695
    %v3607 = vpow.pop %v3606
    %v3608 = vadd.f32 %v3607, 1.0
    %v3609 = vrcp.pop %v3608
    %v3610 = vmul.f32 1.0, %v3609
    %v3611 = vxor.u32 %v3602, 2147483648
    %v3612 = vmul.f32 %v3611, 1.442695
    %v3613 = vpow.pop %v3612
    %v3614 = vadd.f32 %v3613, 1.0
    %v3615 = vrcp.pop %v3614
    %v3616 = vmul.f32 1.0, %v3615
    %v3617 = vtanh.pop %v3603
    %v3618 = vxor.u32 %v3604, 2147483648
    %v3619 = vmul.f32 %v3618, 1.442695
    %v3620 = vpow.pop %v3619
    %v3621 = vadd.f32 %v3620, 1.0
    %v3622 = vrcp.pop %v3621
    %v3623 = vmul.f32 1.0, %v3622
    %v3624 = vmul.f32 %v3616, %v3449
    %v3625 = vmul.f32 %v3610, %v3617
    %v3626 = vadd.f32 %v3624, %v3625
    %v3627 = vtanh.pop %v3626
    %v3628 = vmul.f32 %v3623, %v3627
    %s3629 = scalar_lea.vmem [#allocation5], 8
    %3630 = vst [vmem:[%s3629] sm:$0xff] %v3628
    %v3631 = vld [vmem:[#allocation3] sm:$0xff]
    %v3632 = vld [vmem:[#allocation3 + $0x8] sm:$0xff]
    %v3633 = vld [vmem:[#allocation3 + $0x10] sm:$0xff]
    %v3634 = vld [vmem:[#allocation3 + $0x18] sm:$0xff]
    %3635 = vmatprep.subr.mxu0 %v915
    %3636 = vmatpush1.msra.mxu0 %v914
    %3637 = vmatprep.subr.mxu0 %v919
    %3638 = vmatpush1.msra.mxu0 %v918
    %3639 = vmatprep.subr.mxu0 %v923
    %3640 = vmatpush1.msra.mxu0 %v922
    %3641 = vmatprep.subr.mxu0 %v927
    %3642 = vmatpush1.msra.mxu0 %v926
    %3643 = vmatprep.subr.mxu0 %v931
    %3644 = vmatpush1.msra.mxu0 %v930
    %3645 = vmatprep.subr.mxu0 %v935
    %3646 = vmatpush1.msra.mxu0 %v934
    %3647 = vmatprep.subr.mxu0 %v939
    %3648 = vmatpush1.msra.mxu0 %v938
    %3649 = vmatprep.subr.mxu0 %v943
    %3650 = vmatpush1.msra.mxu0 %v942
    %3651 = vmatprep.subr.mxu0 %v947
    %3652 = vmatpush1.msra.mxu0 %v946
    %3653 = vmatprep.subr.mxu0 %v951
    %3654 = vmatpush1.msra.mxu0 %v950
    %3655 = vmatprep.subr.mxu0 %v955
    %3656 = vmatpush1.msra.mxu0 %v954
    %3657 = vmatprep.subr.mxu0 %v959
    %3658 = vmatpush1.msra.mxu0 %v958
    %3659 = vmatprep.subr.mxu0 %v963
    %3660 = vmatpush1.msra.mxu0 %v962
    %3661 = vmatprep.subr.mxu0 %v967
    %3662 = vmatpush1.msra.mxu0 %v966
    %3663 = vmatprep.subr.mxu0 %v971
    %3664 = vmatpush1.msra.mxu0 %v970
    %3665 = vmatprep.subr.mxu0 %v975
    %3666 = vmatpush1.msra.mxu0 %v974
    %3667 = vmatprep.subr.mxu0 0.0
    %3668 = vmatpush1.msra.mxu0 0.0
    %3669 = vmatprep.subr.mxu0 0.0
    %3670 = vmatpush1.msra.mxu0 0.0
    %3671 = vmatprep.subr.mxu0 0.0
    %3672 = vmatpush1.msra.mxu0 0.0
    %3673 = vmatprep.subr.mxu0 0.0
    %3674 = vmatpush1.msra.mxu0 0.0
    %3675 = vmatprep.subr.mxu0 0.0
    %3676 = vmatpush1.msra.mxu0 0.0
    %3677 = vmatprep.subr.mxu0 0.0
    %3678 = vmatpush1.msra.mxu0 0.0
    %3679 = vmatprep.subr.mxu0 0.0
    %3680 = vmatpush1.msra.mxu0 0.0
    %3681 = vmatprep.subr.mxu0 0.0
    %3682 = vmatpush1.msra.mxu0 0.0
    %3683 = vmatprep.subr.mxu0 0.0
    %3684 = vmatpush1.msra.mxu0 0.0
    %3685 = vmatprep.subr.mxu0 0.0
    %3686 = vmatpush1.msra.mxu0 0.0
    %3687 = vmatprep.subr.mxu0 0.0
    %3688 = vmatpush1.msra.mxu0 0.0
    %3689 = vmatprep.subr.mxu0 0.0
    %3690 = vmatpush1.msra.mxu0 0.0
    %3691 = vmatprep.subr.mxu0 0.0
    %3692 = vmatpush1.msra.mxu0 0.0
    %3693 = vmatprep.subr.mxu0 0.0
    %3694 = vmatpush1.msra.mxu0 0.0
    %3695 = vmatprep.subr.mxu0 0.0
    %3696 = vmatpush1.msra.mxu0 0.0
    %3697 = vmatprep.subr.mxu0 0.0
    %3698 = vmatpush1.msra.mxu0 0.0
    %3699 = vmatprep.mubr.f32.mxu0 0.0
    %3700 = vmatmul.mubr.f32.gmra.mrb[0].mxu0 %v3628
    %v3701 = vpop.f32.mrb[0].mxu0
    %v3702 = vadd.f32 0.0, %v3701
    %v3703 = vpop.f32.mrb[0].mxu0
    %v3704 = vadd.f32 0.0, %v3703
    %3705 = vdwg.mxu0
    %3706 = vmatprep.subr.mxu0 %v917
    %3707 = vmatpush1.msra.mxu0 %v916
    %3708 = vmatprep.subr.mxu0 %v921
    %3709 = vmatpush1.msra.mxu0 %v920
    %3710 = vmatprep.subr.mxu0 %v925
    %3711 = vmatpush1.msra.mxu0 %v924
    %3712 = vmatprep.subr.mxu0 %v929
    %3713 = vmatpush1.msra.mxu0 %v928
    %3714 = vmatprep.subr.mxu0 %v933
    %3715 = vmatpush1.msra.mxu0 %v932
    %3716 = vmatprep.subr.mxu0 %v937
    %3717 = vmatpush1.msra.mxu0 %v936
    %3718 = vmatprep.subr.mxu0 %v941
    %3719 = vmatpush1.msra.mxu0 %v940
    %3720 = vmatprep.subr.mxu0 %v945
    %3721 = vmatpush1.msra.mxu0 %v944
    %3722 = vmatprep.subr.mxu0 %v949
    %3723 = vmatpush1.msra.mxu0 %v948
    %3724 = vmatprep.subr.mxu0 %v953
    %3725 = vmatpush1.msra.mxu0 %v952
    %3726 = vmatprep.subr.mxu0 %v957
    %3727 = vmatpush1.msra.mxu0 %v956
    %3728 = vmatprep.subr.mxu0 %v961
    %3729 = vmatpush1.msra.mxu0 %v960
    %3730 = vmatprep.subr.mxu0 %v965
    %3731 = vmatpush1.msra.mxu0 %v964
    %3732 = vmatprep.subr.mxu0 %v969
    %3733 = vmatpush1.msra.mxu0 %v968
    %3734 = vmatprep.subr.mxu0 %v973
    %3735 = vmatpush1.msra.mxu0 %v972
    %3736 = vmatprep.subr.mxu0 %v977
    %3737 = vmatpush1.msra.mxu0 %v976
    %3738 = vmatprep.subr.mxu0 0.0
    %3739 = vmatpush1.msra.mxu0 0.0
    %3740 = vmatprep.subr.mxu0 0.0
    %3741 = vmatpush1.msra.mxu0 0.0
    %3742 = vmatprep.subr.mxu0 0.0
    %3743 = vmatpush1.msra.mxu0 0.0
    %3744 = vmatprep.subr.mxu0 0.0
    %3745 = vmatpush1.msra.mxu0 0.0
    %3746 = vmatprep.subr.mxu0 0.0
    %3747 = vmatpush1.msra.mxu0 0.0
    %3748 = vmatprep.subr.mxu0 0.0
    %3749 = vmatpush1.msra.mxu0 0.0
    %3750 = vmatprep.subr.mxu0 0.0
    %3751 = vmatpush1.msra.mxu0 0.0
    %3752 = vmatprep.subr.mxu0 0.0
    %3753 = vmatpush1.msra.mxu0 0.0
    %3754 = vmatprep.subr.mxu0 0.0
    %3755 = vmatpush1.msra.mxu0 0.0
    %3756 = vmatprep.subr.mxu0 0.0
    %3757 = vmatpush1.msra.mxu0 0.0
    %3758 = vmatprep.subr.mxu0 0.0
    %3759 = vmatpush1.msra.mxu0 0.0
    %3760 = vmatprep.subr.mxu0 0.0
    %3761 = vmatpush1.msra.mxu0 0.0
    %3762 = vmatprep.subr.mxu0 0.0
    %3763 = vmatpush1.msra.mxu0 0.0
    %3764 = vmatprep.subr.mxu0 0.0
    %3765 = vmatpush1.msra.mxu0 0.0
    %3766 = vmatprep.subr.mxu0 0.0
    %3767 = vmatpush1.msra.mxu0 0.0
    %3768 = vmatprep.subr.mxu0 0.0
    %3769 = vmatpush1.msra.mxu0 0.0
    %3770 = vmatprep.mubr.f32.mxu0 0.0
    %3771 = vmatmul.mubr.f32.gmra.mrb[0].mxu0 %v3628
    %v3772 = vpop.f32.mrb[0].mxu0
    %v3773 = vadd.f32 0.0, %v3772
    %v3774 = vpop.f32.mrb[0].mxu0
    %v3775 = vadd.f32 0.0, %v3774
    %3776 = vdwg.mxu0
    %v3777 = vadd.f32 %v3631, %v3702
    %v3778 = vadd.f32 %v3632, %v3704
    %v3779 = vadd.f32 %v3633, %v3773
    %v3780 = vadd.f32 %v3634, %v3775
    %v3781 = vxor.u32 %v3777, 2147483648
    %v3782 = vmul.f32 %v3781, 1.442695
    %v3783 = vpow.pop %v3782
    %v3784 = vadd.f32 %v3783, 1.0
    %v3785 = vrcp.pop %v3784
    %v3786 = vmul.f32 1.0, %v3785
    %v3787 = vxor.u32 %v3778, 2147483648
    %v3788 = vmul.f32 %v3787, 1.442695
    %v3789 = vpow.pop %v3788
    %v3790 = vadd.f32 %v3789, 1.0
    %v3791 = vrcp.pop %v3790
    %v3792 = vmul.f32 1.0, %v3791
    %v3793 = vtanh.pop %v3779
    %v3794 = vxor.u32 %v3780, 2147483648
    %v3795 = vmul.f32 %v3794, 1.442695
    %v3796 = vpow.pop %v3795
    %v3797 = vadd.f32 %v3796, 1.0
    %v3798 = vrcp.pop %v3797
    %v3799 = vmul.f32 1.0, %v3798
    %v3800 = vmul.f32 %v3792, %v3626
    %v3801 = vmul.f32 %v3786, %v3793
    %v3802 = vadd.f32 %v3800, %v3801
    %v3803 = vtanh.pop %v3802
    %v3804 = vmul.f32 %v3799, %v3803
    %3805 = vst [vmem:[#allocation5] sm:$0xff] %v3804
    %v3806 = vld [vmem:[#allocation4] sm:$0xff]
    %v3807 = vld [vmem:[#allocation4 + $0x8] sm:$0xff]
    %v3808 = vld [vmem:[#allocation4 + $0x10] sm:$0xff]
    %v3809 = vld [vmem:[#allocation4 + $0x18] sm:$0xff]
    %v3810 = vld [vmem:[#allocation4 + $0x20] sm:$0xff]
    %v3811 = vld [vmem:[#allocation4 + $0x28] sm:$0xff]
    %v3812 = vld [vmem:[#allocation4 + $0x30] sm:$0xff]
    %v3813 = vld [vmem:[#allocation4 + $0x38] sm:$0xff]
    %v3814 = vld [vmem:[#allocation5] sm:$0xff]
    %v3815 = vld [vmem:[#allocation5 + $0x8] sm:$0xff]
    %v3816 = vld [vmem:[#allocation5 + $0x10] sm:$0xff]
    %v3817 = vld [vmem:[#allocation5 + $0x18] sm:$0xff]
    %v3818 = vld [vmem:[#allocation5 + $0x20] sm:$0xff]
    %v3819 = vld [vmem:[#allocation5 + $0x28] sm:$0xff]
    %v3820 = vld [vmem:[#allocation5 + $0x30] sm:$0xff]
    %v3821 = vld [vmem:[#allocation5 + $0x38] sm:$0xff]
    %v3822 = vtanh.pop %v3806
    %v3823 = vtanh.pop %v3807
    %v3824 = vtanh.pop %v3808
    %v3825 = vtanh.pop %v3809
    %v3826 = vtanh.pop %v3810
    %v3827 = vtanh.pop %v3811
    %v3828 = vtanh.pop %v3812
    %v3829 = vtanh.pop %v3813
    %v3830 = vld [vmem:[#allocation15] sm:$0xff]
    %v3831 = vld [vmem:[#allocation15 + $0x8] sm:$0xff]
    %v3832 = vld [vmem:[#allocation15 + $0x10] sm:$0xff]
    %v3833 = vld [vmem:[#allocation15 + $0x18] sm:$0xff]
    %v3834 = vld [vmem:[#allocation15 + $0x20] sm:$0xff]
    %v3835 = vld [vmem:[#allocation15 + $0x28] sm:$0xff]
    %v3836 = vld [vmem:[#allocation15 + $0x30] sm:$0xff]
    %v3837 = vld [vmem:[#allocation15 + $0x38] sm:$0xff]
    %v3838 = vld [vmem:[#allocation15 + $0x40] sm:$0xff]
    %v3839 = vld [vmem:[#allocation15 + $0x48] sm:$0xff]
    %v3840 = vld [vmem:[#allocation15 + $0x50] sm:$0xff]
    %v3841 = vld [vmem:[#allocation15 + $0x58] sm:$0xff]
    %v3842 = vld [vmem:[#allocation15 + $0x60] sm:$0xff]
    %v3843 = vld [vmem:[#allocation15 + $0x68] sm:$0xff]
    %v3844 = vld [vmem:[#allocation15 + $0x70] sm:$0xff]
    %v3845 = vld [vmem:[#allocation15 + $0x78] sm:$0xff]
    %v3846 = vtanh.pop %v3814
    %v3847 = vtanh.pop %v3815
    %v3848 = vtanh.pop %v3816
    %v3849 = vtanh.pop %v3817
    %v3850 = vtanh.pop %v3818
    %v3851 = vtanh.pop %v3819
    %v3852 = vtanh.pop %v3820
    %v3853 = vtanh.pop %v3821
    %v3854 = vld [vmem:[#allocation17] sm:$0xff]
    %v3855 = vld [vmem:[#allocation17 + $0x8] sm:$0xff]
    %v3856 = vld [vmem:[#allocation17 + $0x10] sm:$0xff]
    %v3857 = vld [vmem:[#allocation17 + $0x18] sm:$0xff]
    %v3858 = vld [vmem:[#allocation17 + $0x20] sm:$0xff]
    %v3859 = vld [vmem:[#allocation17 + $0x28] sm:$0xff]
    %v3860 = vld [vmem:[#allocation17 + $0x30] sm:$0xff]
    %v3861 = vld [vmem:[#allocation17 + $0x38] sm:$0xff]
    %v3862 = vld [vmem:[#allocation17 + $0x40] sm:$0xff]
    %v3863 = vld [vmem:[#allocation17 + $0x48] sm:$0xff]
    %v3864 = vld [vmem:[#allocation17 + $0x50] sm:$0xff]
    %v3865 = vld [vmem:[#allocation17 + $0x58] sm:$0xff]
    %v3866 = vld [vmem:[#allocation17 + $0x60] sm:$0xff]
    %v3867 = vld [vmem:[#allocation17 + $0x68] sm:$0xff]
    %v3868 = vld [vmem:[#allocation17 + $0x70] sm:$0xff]
    %v3869 = vld [vmem:[#allocation17 + $0x78] sm:$0xff]
    %3870 = vmatprep.subr.mxu0 0.0
    %3871 = vmatpush1.msra.mxu0 %v3854
    %3872 = vmatprep.subr.mxu0 0.0
    %3873 = vmatpush1.msra.mxu0 %v3855
    %3874 = vmatprep.subr.mxu0 0.0
    %3875 = vmatpush1.msra.mxu0 %v3856
    %3876 = vmatprep.subr.mxu0 0.0
    %3877 = vmatpush1.msra.mxu0 %v3857
    %3878 = vmatprep.subr.mxu0 0.0
    %3879 = vmatpush1.msra.mxu0 %v3858
    %3880 = vmatprep.subr.mxu0 0.0
    %3881 = vmatpush1.msra.mxu0 %v3859
    %3882 = vmatprep.subr.mxu0 0.0
    %3883 = vmatpush1.msra.mxu0 %v3860
    %3884 = vmatprep.subr.mxu0 0.0
    %3885 = vmatpush1.msra.mxu0 %v3861
    %3886 = vmatprep.subr.mxu0 0.0
    %3887 = vmatpush1.msra.mxu0 %v3862
    %3888 = vmatprep.subr.mxu0 0.0
    %3889 = vmatpush1.msra.mxu0 %v3863
    %3890 = vmatprep.subr.mxu0 0.0
    %3891 = vmatpush1.msra.mxu0 %v3864
    %3892 = vmatprep.subr.mxu0 0.0
    %3893 = vmatpush1.msra.mxu0 %v3865
    %3894 = vmatprep.subr.mxu0 0.0
    %3895 = vmatpush1.msra.mxu0 %v3866
    %3896 = vmatprep.subr.mxu0 0.0
    %3897 = vmatpush1.msra.mxu0 %v3867
    %3898 = vmatprep.subr.mxu0 0.0
    %3899 = vmatpush1.msra.mxu0 %v3868
    %3900 = vmatprep.subr.mxu0 0.0
    %3901 = vmatpush1.msra.mxu0 %v3869
    %3902 = vmatprep.subr.mxu0 0.0
    %3903 = vmatpush1.msra.mxu0 0.0
    %3904 = vmatprep.subr.mxu0 0.0
    %3905 = vmatpush1.msra.mxu0 0.0
    %3906 = vmatprep.subr.mxu0 0.0
    %3907 = vmatpush1.msra.mxu0 0.0
    %3908 = vmatprep.subr.mxu0 0.0
    %3909 = vmatpush1.msra.mxu0 0.0
    %3910 = vmatprep.subr.mxu0 0.0
    %3911 = vmatpush1.msra.mxu0 0.0
    %3912 = vmatprep.subr.mxu0 0.0
    %3913 = vmatpush1.msra.mxu0 0.0
    %3914 = vmatprep.subr.mxu0 0.0
    %3915 = vmatpush1.msra.mxu0 0.0
    %3916 = vmatprep.subr.mxu0 0.0
    %3917 = vmatpush1.msra.mxu0 0.0
    %3918 = vmatprep.subr.mxu0 0.0
    %3919 = vmatpush1.msra.mxu0 0.0
    %3920 = vmatprep.subr.mxu0 0.0
    %3921 = vmatpush1.msra.mxu0 0.0
    %3922 = vmatprep.subr.mxu0 0.0
    %3923 = vmatpush1.msra.mxu0 0.0
    %3924 = vmatprep.subr.mxu0 0.0
    %3925 = vmatpush1.msra.mxu0 0.0
    %3926 = vmatprep.subr.mxu0 0.0
    %3927 = vmatpush1.msra.mxu0 0.0
    %3928 = vmatprep.subr.mxu0 0.0
    %3929 = vmatpush1.msra.mxu0 0.0
    %3930 = vmatprep.subr.mxu0 0.0
    %3931 = vmatpush1.msra.mxu0 0.0
    %3932 = vmatprep.subr.mxu0 0.0
    %3933 = vmatpush1.msra.mxu0 0.0
    %3934 = vmatprep.mubr.f32.mxu0 0.0
    %3935 = vmatmul.mubr.f32.gmra.mrb[0].mxu0 %v3846
    %v3936 = vpop.f32.mrb[0].mxu0
    %v3937 = vadd.f32 0.0, %v3936
    %v3938 = vpop.f32.mrb[0].mxu0
    %3939 = vmatprep.mubr.f32.mxu0 0.0
    %3940 = vmatmul.mubr.f32.gmra.mrb[0].mxu0 %v3847
    %v3941 = vpop.f32.mrb[0].mxu0
    %v3942 = vadd.f32 0.0, %v3941
    %v3943 = vpop.f32.mrb[0].mxu0
    %3944 = vmatprep.mubr.f32.mxu0 0.0
    %3945 = vmatmul.mubr.f32.gmra.mrb[0].mxu0 %v3848
    %v3946 = vpop.f32.mrb[0].mxu0
    %v3947 = vadd.f32 0.0, %v3946
    %v3948 = vpop.f32.mrb[0].mxu0
    %3949 = vmatprep.mubr.f32.mxu0 0.0
    %3950 = vmatmul.mubr.f32.gmra.mrb[0].mxu0 %v3849
    %v3951 = vpop.f32.mrb[0].mxu0
    %v3952 = vadd.f32 0.0, %v3951
    %v3953 = vpop.f32.mrb[0].mxu0
    %3954 = vmatprep.mubr.f32.mxu0 0.0
    %3955 = vmatmul.mubr.f32.gmra.mrb[0].mxu0 %v3850
    %v3956 = vpop.f32.mrb[0].mxu0
    %v3957 = vadd.f32 0.0, %v3956
    %v3958 = vpop.f32.mrb[0].mxu0
    %3959 = vmatprep.mubr.f32.mxu0 0.0
    %3960 = vmatmul.mubr.f32.gmra.mrb[0].mxu0 %v3851
    %v3961 = vpop.f32.mrb[0].mxu0
    %v3962 = vadd.f32 0.0, %v3961
    %v3963 = vpop.f32.mrb[0].mxu0
    %3964 = vmatprep.mubr.f32.mxu0 0.0
    %3965 = vmatmul.mubr.f32.gmra.mrb[0].mxu0 %v3852
    %v3966 = vpop.f32.mrb[0].mxu0
    %v3967 = vadd.f32 0.0, %v3966
    %v3968 = vpop.f32.mrb[0].mxu0
    %3969 = vmatprep.mubr.f32.mxu0 0.0
    %3970 = vmatmul.mubr.f32.gmra.mrb[0].mxu0 %v3853
    %v3971 = vpop.f32.mrb[0].mxu0
    %v3972 = vadd.f32 0.0, %v3971
    %v3973 = vpop.f32.mrb[0].mxu0
    %3974 = vdwg.mxu0
    %3975 = vmatprep.subr.mxu0 0.0
    %3976 = vmatpush1.msra.mxu0 %v3830
    %3977 = vmatprep.subr.mxu0 0.0
    %3978 = vmatpush1.msra.mxu0 %v3831
    %3979 = vmatprep.subr.mxu0 0.0
    %3980 = vmatpush1.msra.mxu0 %v3832
    %3981 = vmatprep.subr.mxu0 0.0
    %3982 = vmatpush1.msra.mxu0 %v3833
    %3983 = vmatprep.subr.mxu0 0.0
    %3984 = vmatpush1.msra.mxu0 %v3834
    %3985 = vmatprep.subr.mxu0 0.0
    %3986 = vmatpush1.msra.mxu0 %v3835
    %3987 = vmatprep.subr.mxu0 0.0
    %3988 = vmatpush1.msra.mxu0 %v3836
    %3989 = vmatprep.subr.mxu0 0.0
    %3990 = vmatpush1.msra.mxu0 %v3837
    %3991 = vmatprep.subr.mxu0 0.0
    %3992 = vmatpush1.msra.mxu0 %v3838
    %3993 = vmatprep.subr.mxu0 0.0
    %3994 = vmatpush1.msra.mxu0 %v3839
    %3995 = vmatprep.subr.mxu0 0.0
    %3996 = vmatpush1.msra.mxu0 %v3840
    %3997 = vmatprep.subr.mxu0 0.0
    %3998 = vmatpush1.msra.mxu0 %v3841
    %3999 = vmatprep.subr.mxu0 0.0
    %4000 = vmatpush1.msra.mxu0 %v3842
    %4001 = vmatprep.subr.mxu0 0.0
    %4002 = vmatpush1.msra.mxu0 %v3843
    %4003 = vmatprep.subr.mxu0 0.0
    %4004 = vmatpush1.msra.mxu0 %v3844
    %4005 = vmatprep.subr.mxu0 0.0
    %4006 = vmatpush1.msra.mxu0 %v3845
    %4007 = vmatprep.subr.mxu0 0.0
    %4008 = vmatpush1.msra.mxu0 0.0
    %4009 = vmatprep.subr.mxu0 0.0
    %4010 = vmatpush1.msra.mxu0 0.0
    %4011 = vmatprep.subr.mxu0 0.0
    %4012 = vmatpush1.msra.mxu0 0.0
    %4013 = vmatprep.subr.mxu0 0.0
    %4014 = vmatpush1.msra.mxu0 0.0
    %4015 = vmatprep.subr.mxu0 0.0
    %4016 = vmatpush1.msra.mxu0 0.0
    %4017 = vmatprep.subr.mxu0 0.0
    %4018 = vmatpush1.msra.mxu0 0.0
    %4019 = vmatprep.subr.mxu0 0.0
    %4020 = vmatpush1.msra.mxu0 0.0
    %4021 = vmatprep.subr.mxu0 0.0
    %4022 = vmatpush1.msra.mxu0 0.0
    %4023 = vmatprep.subr.mxu0 0.0
    %4024 = vmatpush1.msra.mxu0 0.0
    %4025 = vmatprep.subr.mxu0 0.0
    %4026 = vmatpush1.msra.mxu0 0.0
    %4027 = vmatprep.subr.mxu0 0.0
    %4028 = vmatpush1.msra.mxu0 0.0
    %4029 = vmatprep.subr.mxu0 0.0
    %4030 = vmatpush1.msra.mxu0 0.0
    %4031 = vmatprep.subr.mxu0 0.0
    %4032 = vmatpush1.msra.mxu0 0.0
    %4033 = vmatprep.subr.mxu0 0.0
    %4034 = vmatpush1.msra.mxu0 0.0
    %4035 = vmatprep.subr.mxu0 0.0
    %4036 = vmatpush1.msra.mxu0 0.0
    %4037 = vmatprep.subr.mxu0 0.0
    %4038 = vmatpush1.msra.mxu0 0.0
    %4039 = vmatprep.mubr.f32.mxu0 0.0
    %4040 = vmatmul.mubr.f32.gmra.mrb[0].mxu0 %v3822
    %v4041 = vpop.f32.mrb[0].mxu0
    %v4042 = vadd.f32 %v3937, %v4041
    %v4043 = vpop.f32.mrb[0].mxu0
    %4044 = vmatprep.mubr.f32.mxu0 0.0
    %4045 = vmatmul.mubr.f32.gmra.mrb[0].mxu0 %v3823
    %v4046 = vpop.f32.mrb[0].mxu0
    %v4047 = vadd.f32 %v3942, %v4046
    %v4048 = vpop.f32.mrb[0].mxu0
    %4049 = vmatprep.mubr.f32.mxu0 0.0
    %4050 = vmatmul.mubr.f32.gmra.mrb[0].mxu0 %v3824
    %v4051 = vpop.f32.mrb[0].mxu0
    %v4052 = vadd.f32 %v3947, %v4051
    %v4053 = vpop.f32.mrb[0].mxu0
    %4054 = vmatprep.mubr.f32.mxu0 0.0
    %4055 = vmatmul.mubr.f32.gmra.mrb[0].mxu0 %v3825
    %v4056 = vpop.f32.mrb[0].mxu0
    %v4057 = vadd.f32 %v3952, %v4056
    %v4058 = vpop.f32.mrb[0].mxu0
    %4059 = vmatprep.mubr.f32.mxu0 0.0
    %4060 = vmatmul.mubr.f32.gmra.mrb[0].mxu0 %v3826
    %v4061 = vpop.f32.mrb[0].mxu0
    %v4062 = vadd.f32 %v3957, %v4061
    %v4063 = vpop.f32.mrb[0].mxu0
    %4064 = vmatprep.mubr.f32.mxu0 0.0
    %4065 = vmatmul.mubr.f32.gmra.mrb[0].mxu0 %v3827
    %v4066 = vpop.f32.mrb[0].mxu0
    %v4067 = vadd.f32 %v3962, %v4066
    %v4068 = vpop.f32.mrb[0].mxu0
    %4069 = vmatprep.mubr.f32.mxu0 0.0
    %4070 = vmatmul.mubr.f32.gmra.mrb[0].mxu0 %v3828
    %v4071 = vpop.f32.mrb[0].mxu0
    %v4072 = vadd.f32 %v3967, %v4071
    %v4073 = vpop.f32.mrb[0].mxu0
    %4074 = vmatprep.mubr.f32.mxu0 0.0
    %4075 = vmatmul.mubr.f32.gmra.mrb[0].mxu0 %v3829
    %v4076 = vpop.f32.mrb[0].mxu0
    %v4077 = vadd.f32 %v3972, %v4076
    %v4078 = vpop.f32.mrb[0].mxu0
    %4079 = vdwg.mxu0
    %v4080 = vmax.f32 %v4042, %v4062
    %v4081 = vmax.f32 %v4047, %v4067
    %v4082 = vmax.f32 %v4052, %v4072
    %v4083 = vmax.f32 %v4057, %v4077
    %v4084 = vmax.f32 %v4080, %v4081
    %v4085 = vmax.f32 %v4082, %v4083
    %v4086 = vmax.f32 %v4084, %v4085
    %v4087 = vsub.f32 %v4042, %v4086
    %v4088 = vsub.f32 %v4047, %v4086
    %v4089 = vsub.f32 %v4052, %v4086
    %v4090 = vsub.f32 %v4057, %v4086
    %v4091 = vsub.f32 %v4062, %v4086
    %v4092 = vsub.f32 %v4067, %v4086
    %v4093 = vsub.f32 %v4072, %v4086
    %v4094 = vsub.f32 %v4077, %v4086
    %v4095 = vmul.f32 %v4087, 1.442695
    %v4096 = vpow.pop %v4095
    %v4097 = vmul.f32 %v4088, 1.442695
    %v4098 = vpow.pop %v4097
    %v4099 = vmul.f32 %v4089, 1.442695
    %v4100 = vpow.pop %v4099
    %v4101 = vmul.f32 %v4090, 1.442695
    %v4102 = vpow.pop %v4101
    %v4103 = vmul.f32 %v4091, 1.442695
    %v4104 = vpow.pop %v4103
    %v4105 = vmul.f32 %v4092, 1.442695
    %v4106 = vpow.pop %v4105
    %v4107 = vmul.f32 %v4093, 1.442695
    %v4108 = vpow.pop %v4107
    %v4109 = vmul.f32 %v4094, 1.442695
    %v4110 = vpow.pop %v4109
    %v4111 = vadd.f32 %v4096, %v4098
    %v4112 = vadd.f32 %v4111, %v4100
    %v4113 = vadd.f32 %v4112, %v4102
    %v4114 = vadd.f32 %v4113, %v4104
    %v4115 = vadd.f32 %v4114, %v4106
    %v4116 = vadd.f32 %v4115, %v4108
    %v4117 = vadd.f32 %v4116, %v4110
    %v4118 = vrcp.pop %v4117
    %v4119 = vmul.f32 %v4096, %v4118
    %v4120 = vmul.f32 %v4098, %v4118
    %v4121 = vmul.f32 %v4100, %v4118
    %v4122 = vmul.f32 %v4102, %v4118
    %v4123 = vmul.f32 %v4104, %v4118
    %v4124 = vmul.f32 %v4106, %v4118
    %v4125 = vmul.f32 %v4108, %v4118
    %v4126 = vmul.f32 %v4110, %v4118
    %v4127 = vmul.f32 %v4119, %v3806
    %v4128 = vmul.f32 %v4120, %v3807
    %v4129 = vmul.f32 %v4121, %v3808
    %v4130 = vmul.f32 %v4122, %v3809
    %v4131 = vmul.f32 %v4123, %v3810
    %v4132 = vmul.f32 %v4124, %v3811
    %v4133 = vmul.f32 %v4125, %v3812
    %v4134 = vmul.f32 %v4126, %v3813
    %v4135 = vadd.f32 %v4127, %v4128
    %v4136 = vadd.f32 %v4135, %v4129
    %v4137 = vadd.f32 %v4136, %v4130
    %v4138 = vadd.f32 %v4137, %v4131
    %v4139 = vadd.f32 %v4138, %v4132
    %v4140 = vadd.f32 %v4139, %v4133
    %v4141 = vadd.f32 %v4140, %v4134
    %v4142 = vtanh.pop %v4141
    %v4143 = vmul.f32 %v4119, %v3814
    %v4144 = vmul.f32 %v4120, %v3815
    %v4145 = vmul.f32 %v4121, %v3816
    %v4146 = vmul.f32 %v4122, %v3817
    %v4147 = vmul.f32 %v4123, %v3818
    %v4148 = vmul.f32 %v4124, %v3819
    %v4149 = vmul.f32 %v4125, %v3820
    %v4150 = vmul.f32 %v4126, %v3821
    %v4151 = vadd.f32 %v4143, %v4144
    %v4152 = vadd.f32 %v4151, %v4145
    %v4153 = vadd.f32 %v4152, %v4146
    %v4154 = vadd.f32 %v4153, %v4147
    %v4155 = vadd.f32 %v4154, %v4148
    %v4156 = vadd.f32 %v4155, %v4149
    %v4157 = vadd.f32 %v4156, %v4150
    %v4158 = vtanh.pop %v4157
    %v4159 = vld [vmem:[#allocation18] sm:$0xff]
    %v4160 = vld [vmem:[#allocation18 + $0x8] sm:$0xff]
    %v4161 = vld [vmem:[#allocation18 + $0x10] sm:$0xff]
    %v4162 = vld [vmem:[#allocation18 + $0x18] sm:$0xff]
    %v4163 = vld [vmem:[#allocation18 + $0x20] sm:$0xff]
    %v4164 = vld [vmem:[#allocation18 + $0x28] sm:$0xff]
    %v4165 = vld [vmem:[#allocation18 + $0x30] sm:$0xff]
    %v4166 = vld [vmem:[#allocation18 + $0x38] sm:$0xff]
    %v4167 = vld [vmem:[#allocation18 + $0x40] sm:$0xff]
    %v4168 = vld [vmem:[#allocation18 + $0x48] sm:$0xff]
    %v4169 = vld [vmem:[#allocation18 + $0x50] sm:$0xff]
    %v4170 = vld [vmem:[#allocation18 + $0x58] sm:$0xff]
    %v4171 = vld [vmem:[#allocation18 + $0x60] sm:$0xff]
    %v4172 = vld [vmem:[#allocation18 + $0x68] sm:$0xff]
    %v4173 = vld [vmem:[#allocation18 + $0x70] sm:$0xff]
    %v4174 = vld [vmem:[#allocation18 + $0x78] sm:$0xff]
    %v4175 = vld [vmem:[#allocation20] sm:$0xff]
    %v4176 = vld [vmem:[#allocation20 + $0x8] sm:$0xff]
    %v4177 = vld [vmem:[#allocation20 + $0x10] sm:$0xff]
    %v4178 = vld [vmem:[#allocation20 + $0x18] sm:$0xff]
    %v4179 = vld [vmem:[#allocation20 + $0x20] sm:$0xff]
    %v4180 = vld [vmem:[#allocation20 + $0x28] sm:$0xff]
    %v4181 = vld [vmem:[#allocation20 + $0x30] sm:$0xff]
    %v4182 = vld [vmem:[#allocation20 + $0x38] sm:$0xff]
    %v4183 = vld [vmem:[#allocation20 + $0x40] sm:$0xff]
    %v4184 = vld [vmem:[#allocation20 + $0x48] sm:$0xff]
    %v4185 = vld [vmem:[#allocation20 + $0x50] sm:$0xff]
    %v4186 = vld [vmem:[#allocation20 + $0x58] sm:$0xff]
    %v4187 = vld [vmem:[#allocation20 + $0x60] sm:$0xff]
    %v4188 = vld [vmem:[#allocation20 + $0x68] sm:$0xff]
    %v4189 = vld [vmem:[#allocation20 + $0x70] sm:$0xff]
    %v4190 = vld [vmem:[#allocation20 + $0x78] sm:$0xff]
    %4191 = vmatprep.subr.mxu0 0.0
    %4192 = vmatpush1.msra.mxu0 %v4175
    %4193 = vmatprep.subr.mxu0 0.0
    %4194 = vmatpush1.msra.mxu0 %v4176
    %4195 = vmatprep.subr.mxu0 0.0
    %4196 = vmatpush1.msra.mxu0 %v4177
    %4197 = vmatprep.subr.mxu0 0.0
    %4198 = vmatpush1.msra.mxu0 %v4178
    %4199 = vmatprep.subr.mxu0 0.0
    %4200 = vmatpush1.msra.mxu0 %v4179
    %4201 = vmatprep.subr.mxu0 0.0
    %4202 = vmatpush1.msra.mxu0 %v4180
    %4203 = vmatprep.subr.mxu0 0.0
    %4204 = vmatpush1.msra.mxu0 %v4181
    %4205 = vmatprep.subr.mxu0 0.0
    %4206 = vmatpush1.msra.mxu0 %v4182
    %4207 = vmatprep.subr.mxu0 0.0
    %4208 = vmatpush1.msra.mxu0 %v4183
    %4209 = vmatprep.subr.mxu0 0.0
    %4210 = vmatpush1.msra.mxu0 %v4184
    %4211 = vmatprep.subr.mxu0 0.0
    %4212 = vmatpush1.msra.mxu0 %v4185
    %4213 = vmatprep.subr.mxu0 0.0
    %4214 = vmatpush1.msra.mxu0 %v4186
    %4215 = vmatprep.subr.mxu0 0.0
    %4216 = vmatpush1.msra.mxu0 %v4187
    %4217 = vmatprep.subr.mxu0 0.0
    %4218 = vmatpush1.msra.mxu0 %v4188
    %4219 = vmatprep.subr.mxu0 0.0
    %4220 = vmatpush1.msra.mxu0 %v4189
    %4221 = vmatprep.subr.mxu0 0.0
    %4222 = vmatpush1.msra.mxu0 %v4190
    %4223 = vmatprep.subr.mxu0 0.0
    %4224 = vmatpush1.msra.mxu0 0.0
    %4225 = vmatprep.subr.mxu0 0.0
    %4226 = vmatpush1.msra.mxu0 0.0
    %4227 = vmatprep.subr.mxu0 0.0
    %4228 = vmatpush1.msra.mxu0 0.0
    %4229 = vmatprep.subr.mxu0 0.0
    %4230 = vmatpush1.msra.mxu0 0.0
    %4231 = vmatprep.subr.mxu0 0.0
    %4232 = vmatpush1.msra.mxu0 0.0
    %4233 = vmatprep.subr.mxu0 0.0
    %4234 = vmatpush1.msra.mxu0 0.0
    %4235 = vmatprep.subr.mxu0 0.0
    %4236 = vmatpush1.msra.mxu0 0.0
    %4237 = vmatprep.subr.mxu0 0.0
    %4238 = vmatpush1.msra.mxu0 0.0
    %4239 = vmatprep.subr.mxu0 0.0
    %4240 = vmatpush1.msra.mxu0 0.0
    %4241 = vmatprep.subr.mxu0 0.0
    %4242 = vmatpush1.msra.mxu0 0.0
    %4243 = vmatprep.subr.mxu0 0.0
    %4244 = vmatpush1.msra.mxu0 0.0
    %4245 = vmatprep.subr.mxu0 0.0
    %4246 = vmatpush1.msra.mxu0 0.0
    %4247 = vmatprep.subr.mxu0 0.0
    %4248 = vmatpush1.msra.mxu0 0.0
    %4249 = vmatprep.subr.mxu0 0.0
    %4250 = vmatpush1.msra.mxu0 0.0
    %4251 = vmatprep.subr.mxu0 0.0
    %4252 = vmatpush1.msra.mxu0 0.0
    %4253 = vmatprep.subr.mxu0 0.0
    %4254 = vmatpush1.msra.mxu0 0.0
    %4255 = vmatprep.mubr.f32.mxu0 0.0
    %4256 = vmatmul.mubr.f32.gmra.mrb[0].mxu0 %v4158
    %v4257 = vpop.f32.mrb[0].mxu0
    %v4258 = vadd.f32 0.0, %v4257
    %v4259 = vpop.f32.mrb[0].mxu0
    %4260 = vdwg.mxu0
    %4261 = vmatprep.subr.mxu0 0.0
    %4262 = vmatpush1.msra.mxu0 %v4159
    %4263 = vmatprep.subr.mxu0 0.0
    %4264 = vmatpush1.msra.mxu0 %v4160
    %4265 = vmatprep.subr.mxu0 0.0
    %4266 = vmatpush1.msra.mxu0 %v4161
    %4267 = vmatprep.subr.mxu0 0.0
    %4268 = vmatpush1.msra.mxu0 %v4162
    %4269 = vmatprep.subr.mxu0 0.0
    %4270 = vmatpush1.msra.mxu0 %v4163
    %4271 = vmatprep.subr.mxu0 0.0
    %4272 = vmatpush1.msra.mxu0 %v4164
    %4273 = vmatprep.subr.mxu0 0.0
    %4274 = vmatpush1.msra.mxu0 %v4165
    %4275 = vmatprep.subr.mxu0 0.0
    %4276 = vmatpush1.msra.mxu0 %v4166
    %4277 = vmatprep.subr.mxu0 0.0
    %4278 = vmatpush1.msra.mxu0 %v4167
    %4279 = vmatprep.subr.mxu0 0.0
    %4280 = vmatpush1.msra.mxu0 %v4168
    %4281 = vmatprep.subr.mxu0 0.0
    %4282 = vmatpush1.msra.mxu0 %v4169
    %4283 = vmatprep.subr.mxu0 0.0
    %4284 = vmatpush1.msra.mxu0 %v4170
    %4285 = vmatprep.subr.mxu0 0.0
    %4286 = vmatpush1.msra.mxu0 %v4171
    %4287 = vmatprep.subr.mxu0 0.0
    %4288 = vmatpush1.msra.mxu0 %v4172
    %4289 = vmatprep.subr.mxu0 0.0
    %4290 = vmatpush1.msra.mxu0 %v4173
    %4291 = vmatprep.subr.mxu0 0.0
    %4292 = vmatpush1.msra.mxu0 %v4174
    %4293 = vmatprep.subr.mxu0 0.0
    %4294 = vmatpush1.msra.mxu0 0.0
    %4295 = vmatprep.subr.mxu0 0.0
    %4296 = vmatpush1.msra.mxu0 0.0
    %4297 = vmatprep.subr.mxu0 0.0
    %4298 = vmatpush1.msra.mxu0 0.0
    %4299 = vmatprep.subr.mxu0 0.0
    %4300 = vmatpush1.msra.mxu0 0.0
    %4301 = vmatprep.subr.mxu0 0.0
    %4302 = vmatpush1.msra.mxu0 0.0
    %4303 = vmatprep.subr.mxu0 0.0
    %4304 = vmatpush1.msra.mxu0 0.0
    %4305 = vmatprep.subr.mxu0 0.0
    %4306 = vmatpush1.msra.mxu0 0.0
    %4307 = vmatprep.subr.mxu0 0.0
    %4308 = vmatpush1.msra.mxu0 0.0
    %4309 = vmatprep.subr.mxu0 0.0
    %4310 = vmatpush1.msra.mxu0 0.0
    %4311 = vmatprep.subr.mxu0 0.0
    %4312 = vmatpush1.msra.mxu0 0.0
    %4313 = vmatprep.subr.mxu0 0.0
    %4314 = vmatpush1.msra.mxu0 0.0
    %4315 = vmatprep.subr.mxu0 0.0
    %4316 = vmatpush1.msra.mxu0 0.0
    %4317 = vmatprep.subr.mxu0 0.0
    %4318 = vmatpush1.msra.mxu0 0.0
    %4319 = vmatprep.subr.mxu0 0.0
    %4320 = vmatpush1.msra.mxu0 0.0
    %4321 = vmatprep.subr.mxu0 0.0
    %4322 = vmatpush1.msra.mxu0 0.0
    %4323 = vmatprep.subr.mxu0 0.0
    %4324 = vmatpush1.msra.mxu0 0.0
    %4325 = vmatprep.mubr.f32.mxu0 0.0
    %4326 = vmatmul.mubr.f32.gmra.mrb[0].mxu0 %v4142
    %v4327 = vpop.f32.mrb[0].mxu0
    %v4328 = vadd.f32 %v4258, %v4327
    %v4329 = vpop.f32.mrb[0].mxu0
    %4330 = vdwg.mxu0
    %v4331 = vld [vmem:[%s9] sm:$0x1]
    %v4333 = vlaneseq
    %v4334 = vshrl.u32 %v4333, 7
    %v4335 = vsub.s32 0, %v4334
    %v4336 = vrot.slane %v4331, %v4335
    %v4338 = vadd.f32 %v4328, %v4336
    %4339 = vst [vmem:[#allocation21] sm:$0xff] %v4338
    // Predicated region
    $region78: #{tpu_custom_call.1} parent=1 // pred_check
      _
    $region79: #{tpu_custom_call.1} parent=1 // pred_check_branch
      %4341 = sbr.rel (0) target = $region81
    $region80: #{tpu_custom_call.1} parent=1 // pred_region
      %s4343 = ssub.s32 128, 128
      %4344 = vsyncadd [#allocation8], %s4343
      %s4346 = sshll.u32 [#allocation21], 4
      %s4347 = int_to_ptr.vmem [resolvable:$true] %s4346
      %4349 = dma.vmem_to_hbm [thread:$0]  %s4347, 128, %s10, [#allocation8]
    $region81: #{tpu_custom_call.1} parent=1 // pred_fallthru
      _
    // Predicated region
    $region82: #{tpu_custom_call.1} parent=1 // pred_check
      _
    $region83: #{tpu_custom_call.1} parent=1 // pred_check_branch
      %4351 = sbr.rel (0) target = $region85
    $region84: #{tpu_custom_call.1} parent=1 // pred_region
      %4352 = dma.done [#allocation8], 128
    $region85: #{tpu_custom_call.1} parent=1 // pred_fallthru
      _
    %4353 = vsyncpa [#allocation7], 1
    %4354 = vsyncpa [#allocation10], 1
    %4355 = vsyncpa [#allocation13], 1
    %4356 = vsyncpa [#allocation16], 1
    %4357 = vsyncpa [#allocation19], 1
    %4358 = vsyncpa [#allocation8], 1

</llo_original>
